<compile_context>
chip_gen: v6e
topology: v6e:2x2x1
jax: 0.10.0
libtpu: 0.0.40
codegen_flags: <defaults>
</compile_context>

<pallas_src>
import functools

import jax
import jax.numpy as jnp
from jax.experimental import pallas as pl
from jax.experimental.pallas import tpu as pltpu


# ----------------------------------------------------------------------------
# Pallas kernel: Bb batch elements per grid step, full (Bb, S, H) tile in VMEM.
# ----------------------------------------------------------------------------
def _fastformer_kernel(h_ref, m_ref, e_ref,
                       wqk_ref, bqk_ref, wks_ref, bks_ref,
                       wt_ref, bt_ref,
                       wso_ref, bso_ref, g1_ref, b1_ref,
                       wi_ref, bi_ref, wo_ref, bo_ref, g2_ref, b2_ref,
                       out_ref, *, batch_block, seq_len, hidden_size, num_heads):
    Bb, S, H, nh = batch_block, seq_len, hidden_size, num_heads
    M = Bb * S

    x3 = h_ref[...]               # (Bb, S, H) f32
    mask = m_ref[...]             # (Bb, 1, S) additive mask (native layout)
    expand = e_ref[...]           # (nh, H) head-expansion matrix (0/1), f32

    x2 = x3.reshape(M, H)
    xb = x2.astype(jnp.bfloat16)

    def dense(v_bf16, w_ref, b_ref):
        # bf16 x bf16 MXU matmul with f32 accumulation, f32 bias add.
        return jnp.dot(v_bf16, w_ref[...],
                       preferred_element_type=jnp.float32) + b_ref[...]

    def softmax_last(s):  # softmax along the last (sequence) axis
        mx = jnp.max(s, axis=-1, keepdims=True)
        e = jnp.exp(s - mx)
        return e * pl.reciprocal(jnp.sum(e, axis=-1, keepdims=True), approx=True)

    def pool(score_flat, values3):
        # score_flat: (M, nh) raw (already scaled) attention scores
        # values3:    (Bb, S, H) values to pool per batch element
        s_t = jnp.swapaxes(score_flat.reshape(Bb, S, nh), 1, 2) + mask   # (Bb, nh, S)
        w = softmax_last(s_t)                                            # (Bb, nh, S)
        # K=S contraction on the MXU (flash-attention batched matmul pattern)
        a = jnp.einsum('bns,bsh->bnh', w, values3,
                       preferred_element_type=jnp.float32)               # (Bb, nh, H)
        # pick the matching head per hidden column and reduce the nh rows
        return jnp.sum(a * expand[None], axis=1)                         # (Bb, H)

    def layer_norm(v, g_ref, b_ref):
        mu = jnp.mean(v, axis=-1, keepdims=True)
        var = jnp.mean((v - mu) ** 2, axis=-1, keepdims=True)
        return (v - mu) * jax.lax.rsqrt(var + 1e-12) * g_ref[...] + b_ref[...]

    def gelu(v):  # tanh approximation
        return 0.5 * v * (1.0 + jnp.tanh(0.7978845608028654 * (v + 0.044715 * v * v * v)))

    # ---- FastSelfAttention --------------------------------------------------
    # One fused projection of x: [:, :H] = query, [:, H:2H] = key,
    # [:, 2H:2H+nh] = scaled query attention scores (wq @ wqa * 1/sqrt(d) pre-fused).
    qk3 = dense(xb, wqk_ref, bqk_ref)                  # (M, 2H + pad)
    mixed_q = qk3[:, :H]                               # (M, H)
    mq3 = mixed_q.reshape(Bb, S, H)
    mixed_k3 = qk3[:, H:2 * H].reshape(Bb, S, H)

    pooled_q = pool(qk3[:, 2 * H:2 * H + nh], mq3)     # (Bb, H)
    mixed_qk3 = mixed_k3 * pooled_q[:, None, :]        # (Bb, S, H)

    k_score = dense(mixed_qk3.reshape(M, H).astype(jnp.bfloat16),
                    wks_ref, bks_ref)                  # (M, nh), scale folded in
    pooled_k = pool(k_score, mixed_qk3)                # (Bb, H)

    weighted_value = (mq3 * pooled_k[:, None, :]).reshape(M, H)
    self_out = dense(weighted_value.astype(jnp.bfloat16), wt_ref, bt_ref) + mixed_q

    # ---- BertSelfOutput -----------------------------------------------------
    attn = layer_norm(dense(self_out.astype(jnp.bfloat16), wso_ref, bso_ref) + x2,
                      g1_ref, b1_ref)                  # (M, H)

    # ---- BertIntermediate + BertOutput --------------------------------------
    # TODO(synk): at production S (>=512) with I=4H, tile this section over S
    #             (nested pltpu.emit_pipeline) to bound the live (M, I) tensor on v7x.
    inter = gelu(dense(attn.astype(jnp.bfloat16), wi_ref, bi_ref))       # (M, I)
    out = layer_norm(dense(inter.astype(jnp.bfloat16), wo_ref, bo_ref) + attn,
                     g2_ref, b2_ref)                   # (M, H)

    out_ref[...] = out.reshape(Bb, S, H).astype(out_ref.dtype)


# ----------------------------------------------------------------------------
# Wrapper: weight fusion / bf16 cast (plain JAX glue) + pallas_call
# ----------------------------------------------------------------------------
_WEIGHT_ORDER = ['wqk', 'bqk', 'wks', 'bks', 'wt', 'bt', 'wso', 'bso',
                 'g1', 'b1', 'wi', 'bi', 'wo', 'bo', 'g2', 'b2']


def _head_expand_matrix(num_heads, head_dim):
    H = num_heads * head_dim
    rows = jnp.arange(num_heads)[:, None]
    cols = jnp.arange(H)[None, :]
    return ((cols >= rows * head_dim) & (cols < (rows + 1) * head_dim)).astype(jnp.float32)


def _prepare_weights(params, num_heads):
    H = params['wq'].shape[0]
    nh = num_heads
    d = H // nh
    scale = 1.0 / (float(d) ** 0.5)
    bf16 = jnp.bfloat16

    # q_score = x @ (wq @ wqa * scale) + (bq @ wqa + bqa) * scale
    wqs = params['wq'] @ params['wqa'] * scale                      # (H, nh)
    bqs = (params['bq'] @ params['wqa'] + params['bqa']) * scale    # (1, nh)

    # fused [query | key | q_score] projection, zero-padded to a multiple of 128 lanes
    n_total = 2 * H + nh
    n_padded = ((n_total + 127) // 128) * 128
    pad = n_padded - n_total
    wqk = jnp.concatenate(
        [params['wq'], params['wk'], wqs, jnp.zeros((H, pad), jnp.float32)], axis=1)
    bqk = jnp.concatenate(
        [params['bq'], params['bk'], bqs, jnp.zeros((1, pad), jnp.float32)], axis=1)

    return {
        'wqk': wqk.astype(bf16), 'bqk': bqk,
        'wks': (params['wka'] * scale).astype(bf16), 'bks': params['bka'] * scale,
        'wt': params['wt'].astype(bf16), 'bt': params['bt'],
        'wso': params['wso'].astype(bf16), 'bso': params['bso'],
        'g1': params['g1'], 'b1': params['b1'],
        'wi': params['wi'].astype(bf16), 'bi': params['bi'],
        'wo': params['wo'].astype(bf16), 'bo': params['bo'],
        'g2': params['g2'], 'b2': params['b2'],
    }


def _pick_batch_block(batch, seq_len, target_rows=256):
    """Largest divisor of `batch` giving ~target_rows MXU rows per step while
    keeping >= 2 grid steps (so v7x's two TensorCores both get work)."""
    if batch <= 1:
        return max(batch, 1)
    max_bb = batch // 2
    want = max(1, -(-target_rows // seq_len))   # cdiv(target_rows, seq_len)
    best = 1
    for bb in range(1, max_bb + 1):
        if batch % bb == 0 and bb <= want:
            best = bb
    return best


def fastformer_layer(hidden_states, attention_mask, params, *, num_heads):
    B, S, H = hidden_states.shape
    nh = num_heads
    d = H // nh
    inter_dim = params['wi'].shape[1]

    expand = _head_expand_matrix(nh, d)             # (nh, H)
    fused = _prepare_weights(params, nh)
    Bb = _pick_batch_block(B, S)
    grid = (B // Bb,)

    # TODO(synk): at production H on v7x, add pipeline_mode=pl.Buffered(1) to these
    #             constant-index specs to single-buffer the resident weights.
    def const_spec(shape):
        return pl.BlockSpec(shape, lambda b, _n=len(shape): (0,) * _n)

    in_specs = [
        pl.BlockSpec((Bb, S, H), lambda b: (b, 0, 0)),
        pl.BlockSpec((Bb, 1, S), lambda b: (b, 0, 0)),
        const_spec(expand.shape),
    ]
    args = [hidden_states, attention_mask, expand]
    for name in _WEIGHT_ORDER:
        w = fused[name]
        in_specs.append(const_spec(w.shape))
        args.append(w)

    # VMEM budget: weights + per-step activation blocks (x2 for double buffering)
    # + live f32 temporaries, capped at 80% of the chip's VMEM (v7x: ~51 MiB,
    # v5e/v6e: ~102 MiB so production shapes can use blocks > 64 MiB worth).
    weight_bytes = sum(int(a.size) * a.dtype.itemsize for a in args[2:])
    block_bytes = (Bb * S * H * 2 + Bb * S) * 4
    widest = max(fused['wqk'].shape[1], inter_dim, H)
    temp_bytes = 12 * Bb * S * widest * 4
    est = 2 * (weight_bytes + block_bytes) + temp_bytes + (4 << 20)
    try:
        cap = int(0.8 * pltpu.get_tpu_info().vmem_capacity_bytes)
    except Exception:
        cap = 48 << 20                       # conservative (safe for v7x's 64 MiB)
    vmem_limit = int(min(cap, max(32 << 20, est)))

    kernel = functools.partial(_fastformer_kernel, batch_block=Bb, seq_len=S,
                               hidden_size=H, num_heads=nh)
    return pl.pallas_call(
        kernel,
        out_shape=jax.ShapeDtypeStruct((B, S, H), hidden_states.dtype),
        grid_spec=pltpu.PrefetchScalarGridSpec(
            num_scalar_prefetch=0,
            grid=grid,
            in_specs=in_specs,
            out_specs=pl.BlockSpec((Bb, S, H), lambda b: (b, 0, 0)),
        ),
        compiler_params=pltpu.CompilerParams(
            dimension_semantics=("parallel",),
            vmem_limit_bytes=vmem_limit,
        ),
    )(*args)


# ----------------------------------------------------------------------------
# Pure-JAX reference (mirrors the PyTorch forward with explicit head reshapes)
# ----------------------------------------------------------------------------
def _gelu(v):
    return 0.5 * v * (1.0 + jnp.tanh(0.7978845608028654 * (v + 0.044715 * v * v * v)))


def _layer_norm(v, g, b):
    mu = jnp.mean(v, axis=-1, keepdims=True)
    var = jnp.mean((v - mu) ** 2, axis=-1, keepdims=True)
    return (v - mu) * jax.lax.rsqrt(var + 1e-12) * g + b


def fastformer_reference(h, mask, p, *, num_heads):
    B, S, H = h.shape
    nh = num_heads
    d = H // nh
    scale = 1.0 / (float(d) ** 0.5)

    mq = h @ p['wq'] + p['bq']
    mk = h @ p['wk'] + p['bk']

    qs = (mq @ p['wqa'] + p['bqa']) * scale
    qs = jnp.swapaxes(qs, 1, 2) + mask                       # (B, nh, S)
    qw = jax.nn.softmax(qs, axis=-1)
    ql = jnp.swapaxes(mq.reshape(B, S, nh, d), 1, 2)         # (B, nh, S, d)
    pooled_q = jnp.einsum('bhs,bhsd->bhd', qw, ql).reshape(B, 1, H)

    mqk = mk * pooled_q
    ks = (mqk @ p['wka'] + p['bka']) * scale
    ks = jnp.swapaxes(ks, 1, 2) + mask
    kw = jax.nn.softmax(ks, axis=-1)
    kl = jnp.swapaxes(mqk.reshape(B, S, nh, d), 1, 2)
    pooled_k = jnp.einsum('bhs,bhsd->bhd', kw, kl)           # (B, nh, d)

    wv = pooled_k[:, :, None, :] * ql                        # (B, nh, S, d)
    wv = jnp.swapaxes(wv, 1, 2).reshape(B, S, H)
    self_out = wv @ p['wt'] + p['bt'] + mq

    attn = _layer_norm(self_out @ p['wso'] + p['bso'] + h, p['g1'], p['b1'])
    inter = _gelu(attn @ p['wi'] + p['bi'])
    out = _layer_norm(inter @ p['wo'] + p['bo'] + attn, p['g2'], p['b2'])
    return out


# ----------------------------------------------------------------------------
# Main
# ----------------------------------------------------------------------------
if __name__ == "__main__":
    # H and INTER are multiples of 128 so every tile is lane-dense; B=8 so the
    # kernel runs 2 grid steps with Bb=4 batch elements (32 MXU rows) per step.
    B, S, H, NH, INTER = 8, 8, 128, 4, 256

    key = jax.random.PRNGKey(0)
    k_x, k_w = jax.random.split(key)
    wkeys = jax.random.split(k_w, 8)

    def w(k, shape):
        return (0.2 * jax.random.normal(k, shape)).astype(jnp.float32)

    params = {
        'wq':  w(wkeys[0], (H, H)),      'bq':  jnp.zeros((1, H), jnp.float32),
        'wk':  w(wkeys[1], (H, H)),      'bk':  jnp.zeros((1, H), jnp.float32),
        'wqa': w(wkeys[2], (H, NH)),     'bqa': jnp.zeros((1, NH), jnp.float32),
        'wka': w(wkeys[3], (H, NH)),     'bka': jnp.zeros((1, NH), jnp.float32),
        'wt':  w(wkeys[4], (H, H)),      'bt':  jnp.zeros((1, H), jnp.float32),
        'wso': w(wkeys[5], (H, H)),      'bso': jnp.zeros((1, H), jnp.float32),
        'g1':  jnp.ones((1, H), jnp.float32), 'b1': jnp.zeros((1, H), jnp.float32),
        'wi':  w(wkeys[6], (H, INTER)),  'bi':  jnp.zeros((1, INTER), jnp.float32),
        'wo':  w(wkeys[7], (INTER, H)),  'bo':  jnp.zeros((1, H), jnp.float32),
        'g2':  jnp.ones((1, H), jnp.float32), 'b2': jnp.zeros((1, H), jnp.float32),
    }

    hidden_states = jax.random.normal(k_x, (B, S, H), jnp.float32)
    # additive attention mask (B, 1, S): 0 for valid tokens, -1e4 for padding
    lengths = S - (jnp.arange(B) % 4)
    pos = jnp.arange(S)
    attention_mask = jnp.where(pos[None, :] < lengths[:, None], 0.0, -10000.0)
    attention_mask = attention_mask.astype(jnp.float32)[:, None, :]   # (B, 1, S)

    out = fastformer_layer(hidden_states, attention_mask, params, num_heads=NH)
    out = jax.block_until_ready(out)

    ref = fastformer_reference(hidden_states, attention_mask, params, num_heads=NH)
    assert out.shape == (B, S, H)
    # kernel runs dense layers in bf16 (f32 accumulation); reference is pure f32
    max_abs = float(jnp.max(jnp.abs(out - ref)))
    rel = float(jnp.linalg.norm(out - ref) / jnp.linalg.norm(ref))
    assert max_abs < 1e-1 and rel < 3e-2, ("kernel/reference mismatch", max_abs, rel)

    print("KERNEL_OK")
</pallas_src>

<mosaic_0001>
module attributes {stable_mosaic.version = 11 : i64} {
  func.func @_fastformer_kernel(%arg0: i32, %arg1: memref<4x8x128xf32, #tpu.memory_space<vmem>>, %arg2: memref<4x1x8xf32, #tpu.memory_space<vmem>>, %arg3: memref<4x128xf32, #tpu.memory_space<vmem>>, %arg4: memref<128x384xbf16, #tpu.memory_space<vmem>>, %arg5: memref<1x384xf32, #tpu.memory_space<vmem>>, %arg6: memref<128x4xbf16, #tpu.memory_space<vmem>>, %arg7: memref<1x4xf32, #tpu.memory_space<vmem>>, %arg8: memref<128x128xbf16, #tpu.memory_space<vmem>>, %arg9: memref<1x128xf32, #tpu.memory_space<vmem>>, %arg10: memref<128x128xbf16, #tpu.memory_space<vmem>>, %arg11: memref<1x128xf32, #tpu.memory_space<vmem>>, %arg12: memref<1x128xf32, #tpu.memory_space<vmem>>, %arg13: memref<1x128xf32, #tpu.memory_space<vmem>>, %arg14: memref<128x256xbf16, #tpu.memory_space<vmem>>, %arg15: memref<1x256xf32, #tpu.memory_space<vmem>>, %arg16: memref<256x128xbf16, #tpu.memory_space<vmem>>, %arg17: memref<1x128xf32, #tpu.memory_space<vmem>>, %arg18: memref<1x128xf32, #tpu.memory_space<vmem>>, %arg19: memref<1x128xf32, #tpu.memory_space<vmem>>, %arg20: memref<4x8x128xf32, #tpu.memory_space<vmem>>) attributes {dimension_semantics = [#tpu.dimension_semantics<parallel>], iteration_bounds = array<i64: 2>, scalar_prefetch = 0 : i64, scratch_operands = 0 : i64, tpu.core_type = #tpu.core_type<tc>, window_params = [{transform_indices = @transform_0, window_bounds = array<i64: 4, 8, 128>}, {transform_indices = @transform_1, window_bounds = array<i64: 4, 1, 8>}, {pipeline_mode = #tpu.pipeline_mode<synchronous>, transform_indices = @transform_2, window_bounds = array<i64: 4, 128>}, {pipeline_mode = #tpu.pipeline_mode<synchronous>, transform_indices = @transform_3, window_bounds = array<i64: 128, 384>}, {pipeline_mode = #tpu.pipeline_mode<synchronous>, transform_indices = @transform_4, window_bounds = array<i64: 1, 384>}, {pipeline_mode = #tpu.pipeline_mode<synchronous>, transform_indices = @transform_5, window_bounds = array<i64: 128, 4>}, {pipeline_mode = #tpu.pipeline_mode<synchronous>, transform_indices = @transform_6, window_bounds = array<i64: 1, 4>}, {pipeline_mode = #tpu.pipeline_mode<synchronous>, transform_indices = @transform_7, window_bounds = array<i64: 128, 128>}, {pipeline_mode = #tpu.pipeline_mode<synchronous>, transform_indices = @transform_8, window_bounds = array<i64: 1, 128>}, {pipeline_mode = #tpu.pipeline_mode<synchronous>, transform_indices = @transform_9, window_bounds = array<i64: 128, 128>}, {pipeline_mode = #tpu.pipeline_mode<synchronous>, transform_indices = @transform_10, window_bounds = array<i64: 1, 128>}, {pipeline_mode = #tpu.pipeline_mode<synchronous>, transform_indices = @transform_11, window_bounds = array<i64: 1, 128>}, {pipeline_mode = #tpu.pipeline_mode<synchronous>, transform_indices = @transform_12, window_bounds = array<i64: 1, 128>}, {pipeline_mode = #tpu.pipeline_mode<synchronous>, transform_indices = @transform_13, window_bounds = array<i64: 128, 256>}, {pipeline_mode = #tpu.pipeline_mode<synchronous>, transform_indices = @transform_14, window_bounds = array<i64: 1, 256>}, {pipeline_mode = #tpu.pipeline_mode<synchronous>, transform_indices = @transform_15, window_bounds = array<i64: 256, 128>}, {pipeline_mode = #tpu.pipeline_mode<synchronous>, transform_indices = @transform_16, window_bounds = array<i64: 1, 128>}, {pipeline_mode = #tpu.pipeline_mode<synchronous>, transform_indices = @transform_17, window_bounds = array<i64: 1, 128>}, {pipeline_mode = #tpu.pipeline_mode<synchronous>, transform_indices = @transform_18, window_bounds = array<i64: 1, 128>}, {transform_indices = @transform_19, window_bounds = array<i64: 4, 8, 128>}]} {
    %c0 = arith.constant 0 : index
    %c0_0 = arith.constant 0 : index
    %c0_1 = arith.constant 0 : index
    %0 = vector.load %arg1[%c0, %c0_0, %c0_1] : memref<4x8x128xf32, #tpu.memory_space<vmem>>, vector<4x8x128xf32>
    %c0_2 = arith.constant 0 : index
    %c0_3 = arith.constant 0 : index
    %c0_4 = arith.constant 0 : index
    %1 = vector.load %arg2[%c0_2, %c0_3, %c0_4] : memref<4x1x8xf32, #tpu.memory_space<vmem>>, vector<4x1x8xf32>
    %c0_5 = arith.constant 0 : index
    %c0_6 = arith.constant 0 : index
    %2 = vector.load %arg3[%c0_5, %c0_6] : memref<4x128xf32, #tpu.memory_space<vmem>>, vector<4x128xf32>
    %3 = vector.shape_cast %0 : vector<4x8x128xf32> to vector<32x128xf32>
    %4 = arith.truncf %3 : vector<32x128xf32> to vector<32x128xbf16>
    %c0_7 = arith.constant 0 : index
    %c0_8 = arith.constant 0 : index
    %5 = vector.load %arg4[%c0_7, %c0_8] : memref<128x384xbf16, #tpu.memory_space<vmem>>, vector<128x384xbf16>
    %cst = arith.constant dense<0.000000e+00> : vector<32x384xf32>
    %6 = tpu.matmul %4, %5, %cst {dimension_numbers = #tpu.dot_dimension_numbers<[1], [0], [0], [1], [0, 0, 1, 1], [], []>} : vector<32x128xbf16>, vector<128x384xbf16>, vector<32x384xf32> -> vector<32x384xf32>
    %c0_9 = arith.constant 0 : index
    %c0_10 = arith.constant 0 : index
    %7 = vector.load %arg5[%c0_9, %c0_10] : memref<1x384xf32, #tpu.memory_space<vmem>>, vector<1x384xf32>
    %8 = vector.broadcast %7 : vector<1x384xf32> to vector<32x384xf32>
    %9 = arith.addf %6, %8 : vector<32x384xf32>
    %10 = vector.extract_strided_slice %9 {offsets = [0, 0], sizes = [32, 128], strides = [1, 1]} : vector<32x384xf32> to vector<32x128xf32>
    %11 = vector.shape_cast %10 : vector<32x128xf32> to vector<4x8x128xf32>
    %12 = vector.extract_strided_slice %9 {offsets = [0, 128], sizes = [32, 128], strides = [1, 1]} : vector<32x384xf32> to vector<32x128xf32>
    %13 = vector.shape_cast %12 : vector<32x128xf32> to vector<4x8x128xf32>
    %14 = vector.extract_strided_slice %9 {offsets = [0, 256], sizes = [32, 4], strides = [1, 1]} : vector<32x384xf32> to vector<32x4xf32>
    %15 = vector.shape_cast %14 : vector<32x4xf32> to vector<4x8x4xf32>
    %16 = tpu.transpose %15, [0, 2, 1] : vector<4x8x4xf32> -> vector<4x4x8xf32>
    %17 = vector.broadcast %1 : vector<4x1x8xf32> to vector<4x4x8xf32>
    %18 = arith.addf %16, %17 : vector<4x4x8xf32>
    %cst_11 = arith.constant dense<0xFF800000> : vector<4x4xf32>
    %19 = vector.multi_reduction <maximumf>, %18, %cst_11 [2] : vector<4x4x8xf32> to vector<4x4xf32>
    %20 = vector.shape_cast %19 : vector<4x4xf32> to vector<4x4x1xf32>
    %21 = vector.broadcast %20 : vector<4x4x1xf32> to vector<4x4x8xf32>
    %22 = arith.subf %18, %21 : vector<4x4x8xf32>
    %23 = math.exp %22 : vector<4x4x8xf32>
    %cst_12 = arith.constant dense<0.000000e+00> : vector<4x4xf32>
    %24 = vector.multi_reduction <add>, %23, %cst_12 [2] : vector<4x4x8xf32> to vector<4x4xf32>
    %25 = vector.shape_cast %24 : vector<4x4xf32> to vector<4x4x1xf32>
    %26 = tpu.reciprocal %25 {approx = true} : vector<4x4x1xf32> -> vector<4x4x1xf32>
    %27 = vector.broadcast %26 : vector<4x4x1xf32> to vector<4x4x8xf32>
    %28 = arith.mulf %23, %27 : vector<4x4x8xf32>
    "tpu.trace_start"() <{level = 10 : i32, message = "bns,bsh->bnh"}> : () -> ()
    %cst_13 = arith.constant dense<0.000000e+00> : vector<4x4x128xf32>
    %29 = tpu.matmul %28, %11, %cst_13 {dimension_numbers = #tpu.dot_dimension_numbers<[2], [1], [1], [2], [0, 0, 0, 1, 1, 2], [0], [0]>} : vector<4x4x8xf32>, vector<4x8x128xf32>, vector<4x4x128xf32> -> vector<4x4x128xf32>
    "tpu.trace_stop"() : () -> ()
    %30 = vector.shape_cast %2 : vector<4x128xf32> to vector<1x4x128xf32>
    %31 = vector.broadcast %30 : vector<1x4x128xf32> to vector<4x4x128xf32>
    %32 = arith.mulf %29, %31 : vector<4x4x128xf32>
    %cst_14 = arith.constant dense<0.000000e+00> : vector<4x128xf32>
    %33 = vector.multi_reduction <add>, %32, %cst_14 [1] : vector<4x4x128xf32> to vector<4x128xf32>
    %34 = vector.shape_cast %33 : vector<4x128xf32> to vector<4x1x128xf32>
    %35 = vector.broadcast %34 : vector<4x1x128xf32> to vector<4x8x128xf32>
    %36 = arith.mulf %13, %35 : vector<4x8x128xf32>
    %37 = vector.shape_cast %36 : vector<4x8x128xf32> to vector<32x128xf32>
    %38 = arith.truncf %37 : vector<32x128xf32> to vector<32x128xbf16>
    %c0_15 = arith.constant 0 : index
    %c0_16 = arith.constant 0 : index
    %39 = vector.load %arg6[%c0_15, %c0_16] : memref<128x4xbf16, #tpu.memory_space<vmem>>, vector<128x4xbf16>
    %cst_17 = arith.constant dense<0.000000e+00> : vector<32x4xf32>
    %40 = tpu.matmul %38, %39, %cst_17 {dimension_numbers = #tpu.dot_dimension_numbers<[1], [0], [0], [1], [0, 0, 1, 1], [], []>} : vector<32x128xbf16>, vector<128x4xbf16>, vector<32x4xf32> -> vector<32x4xf32>
    %c0_18 = arith.constant 0 : index
    %c0_19 = arith.constant 0 : index
    %41 = vector.load %arg7[%c0_18, %c0_19] : memref<1x4xf32, #tpu.memory_space<vmem>>, vector<1x4xf32>
    %42 = vector.broadcast %41 : vector<1x4xf32> to vector<32x4xf32>
    %43 = arith.addf %40, %42 : vector<32x4xf32>
    %44 = vector.shape_cast %43 : vector<32x4xf32> to vector<4x8x4xf32>
    %45 = tpu.transpose %44, [0, 2, 1] : vector<4x8x4xf32> -> vector<4x4x8xf32>
    %46 = vector.broadcast %1 : vector<4x1x8xf32> to vector<4x4x8xf32>
    %47 = arith.addf %45, %46 : vector<4x4x8xf32>
    %cst_20 = arith.constant dense<0xFF800000> : vector<4x4xf32>
    %48 = vector.multi_reduction <maximumf>, %47, %cst_20 [2] : vector<4x4x8xf32> to vector<4x4xf32>
    %49 = vector.shape_cast %48 : vector<4x4xf32> to vector<4x4x1xf32>
    %50 = vector.broadcast %49 : vector<4x4x1xf32> to vector<4x4x8xf32>
    %51 = arith.subf %47, %50 : vector<4x4x8xf32>
    %52 = math.exp %51 : vector<4x4x8xf32>
    %cst_21 = arith.constant dense<0.000000e+00> : vector<4x4xf32>
    %53 = vector.multi_reduction <add>, %52, %cst_21 [2] : vector<4x4x8xf32> to vector<4x4xf32>
    %54 = vector.shape_cast %53 : vector<4x4xf32> to vector<4x4x1xf32>
    %55 = tpu.reciprocal %54 {approx = true} : vector<4x4x1xf32> -> vector<4x4x1xf32>
    %56 = vector.broadcast %55 : vector<4x4x1xf32> to vector<4x4x8xf32>
    %57 = arith.mulf %52, %56 : vector<4x4x8xf32>
    "tpu.trace_start"() <{level = 10 : i32, message = "bns,bsh->bnh"}> : () -> ()
    %cst_22 = arith.constant dense<0.000000e+00> : vector<4x4x128xf32>
    %58 = tpu.matmul %57, %36, %cst_22 {dimension_numbers = #tpu.dot_dimension_numbers<[2], [1], [1], [2], [0, 0, 0, 1, 1, 2], [0], [0]>} : vector<4x4x8xf32>, vector<4x8x128xf32>, vector<4x4x128xf32> -> vector<4x4x128xf32>
    "tpu.trace_stop"() : () -> ()
    %59 = vector.shape_cast %2 : vector<4x128xf32> to vector<1x4x128xf32>
    %60 = vector.broadcast %59 : vector<1x4x128xf32> to vector<4x4x128xf32>
    %61 = arith.mulf %58, %60 : vector<4x4x128xf32>
    %cst_23 = arith.constant dense<0.000000e+00> : vector<4x128xf32>
    %62 = vector.multi_reduction <add>, %61, %cst_23 [1] : vector<4x4x128xf32> to vector<4x128xf32>
    %63 = vector.shape_cast %62 : vector<4x128xf32> to vector<4x1x128xf32>
    %64 = vector.broadcast %63 : vector<4x1x128xf32> to vector<4x8x128xf32>
    %65 = arith.mulf %11, %64 : vector<4x8x128xf32>
    %66 = vector.shape_cast %65 : vector<4x8x128xf32> to vector<32x128xf32>
    %67 = arith.truncf %66 : vector<32x128xf32> to vector<32x128xbf16>
    %c0_24 = arith.constant 0 : index
    %c0_25 = arith.constant 0 : index
    %68 = vector.load %arg8[%c0_24, %c0_25] : memref<128x128xbf16, #tpu.memory_space<vmem>>, vector<128x128xbf16>
    %cst_26 = arith.constant dense<0.000000e+00> : vector<32x128xf32>
    %69 = tpu.matmul %67, %68, %cst_26 {dimension_numbers = #tpu.dot_dimension_numbers<[1], [0], [0], [1], [0, 0, 1, 1], [], []>} : vector<32x128xbf16>, vector<128x128xbf16>, vector<32x128xf32> -> vector<32x128xf32>
    %c0_27 = arith.constant 0 : index
    %c0_28 = arith.constant 0 : index
    %70 = vector.load %arg9[%c0_27, %c0_28] : memref<1x128xf32, #tpu.memory_space<vmem>>, vector<1x128xf32>
    %71 = vector.broadcast %70 : vector<1x128xf32> to vector<32x128xf32>
    %72 = arith.addf %69, %71 : vector<32x128xf32>
    %73 = arith.addf %72, %10 : vector<32x128xf32>
    %74 = arith.truncf %73 : vector<32x128xf32> to vector<32x128xbf16>
    %c0_29 = arith.constant 0 : index
    %c0_30 = arith.constant 0 : index
    %75 = vector.load %arg10[%c0_29, %c0_30] : memref<128x128xbf16, #tpu.memory_space<vmem>>, vector<128x128xbf16>
    %cst_31 = arith.constant dense<0.000000e+00> : vector<32x128xf32>
    %76 = tpu.matmul %74, %75, %cst_31 {dimension_numbers = #tpu.dot_dimension_numbers<[1], [0], [0], [1], [0, 0, 1, 1], [], []>} : vector<32x128xbf16>, vector<128x128xbf16>, vector<32x128xf32> -> vector<32x128xf32>
    %c0_32 = arith.constant 0 : index
    %c0_33 = arith.constant 0 : index
    %77 = vector.load %arg11[%c0_32, %c0_33] : memref<1x128xf32, #tpu.memory_space<vmem>>, vector<1x128xf32>
    %78 = vector.broadcast %77 : vector<1x128xf32> to vector<32x128xf32>
    %79 = arith.addf %76, %78 : vector<32x128xf32>
    %80 = arith.addf %79, %3 : vector<32x128xf32>
    %cst_34 = arith.constant dense<0.000000e+00> : vector<32xf32>
    %81 = vector.multi_reduction <add>, %80, %cst_34 [1] : vector<32x128xf32> to vector<32xf32>
    %82 = vector.shape_cast %81 : vector<32xf32> to vector<32x1xf32>
    %cst_35 = arith.constant 1.280000e+02 : f32
    %83 = vector.broadcast %cst_35 : f32 to vector<32x1xf32>
    %84 = arith.divf %82, %83 : vector<32x1xf32>
    %85 = vector.broadcast %84 : vector<32x1xf32> to vector<32x128xf32>
    %86 = arith.subf %80, %85 : vector<32x128xf32>
    %87 = arith.mulf %86, %86 : vector<32x128xf32>
    %cst_36 = arith.constant dense<0.000000e+00> : vector<32xf32>
    %88 = vector.multi_reduction <add>, %87, %cst_36 [1] : vector<32x128xf32> to vector<32xf32>
    %89 = vector.shape_cast %88 : vector<32xf32> to vector<32x1xf32>
    %cst_37 = arith.constant 1.280000e+02 : f32
    %90 = vector.broadcast %cst_37 : f32 to vector<32x1xf32>
    %91 = arith.divf %89, %90 : vector<32x1xf32>
    %92 = vector.broadcast %84 : vector<32x1xf32> to vector<32x128xf32>
    %93 = arith.subf %80, %92 : vector<32x128xf32>
    %cst_38 = arith.constant 9.99999996E-13 : f32
    %94 = vector.broadcast %cst_38 : f32 to vector<32x1xf32>
    %95 = arith.addf %91, %94 : vector<32x1xf32>
    %96 = math.rsqrt %95 : vector<32x1xf32>
    %97 = vector.broadcast %96 : vector<32x1xf32> to vector<32x128xf32>
    %98 = arith.mulf %93, %97 : vector<32x128xf32>
    %c0_39 = arith.constant 0 : index
    %c0_40 = arith.constant 0 : index
    %99 = vector.load %arg12[%c0_39, %c0_40] : memref<1x128xf32, #tpu.memory_space<vmem>>, vector<1x128xf32>
    %100 = vector.broadcast %99 : vector<1x128xf32> to vector<32x128xf32>
    %101 = arith.mulf %98, %100 : vector<32x128xf32>
    %c0_41 = arith.constant 0 : index
    %c0_42 = arith.constant 0 : index
    %102 = vector.load %arg13[%c0_41, %c0_42] : memref<1x128xf32, #tpu.memory_space<vmem>>, vector<1x128xf32>
    %103 = vector.broadcast %102 : vector<1x128xf32> to vector<32x128xf32>
    %104 = arith.addf %101, %103 : vector<32x128xf32>
    %105 = arith.truncf %104 : vector<32x128xf32> to vector<32x128xbf16>
    %c0_43 = arith.constant 0 : index
    %c0_44 = arith.constant 0 : index
    %106 = vector.load %arg14[%c0_43, %c0_44] : memref<128x256xbf16, #tpu.memory_space<vmem>>, vector<128x256xbf16>
    %cst_45 = arith.constant dense<0.000000e+00> : vector<32x256xf32>
    %107 = tpu.matmul %105, %106, %cst_45 {dimension_numbers = #tpu.dot_dimension_numbers<[1], [0], [0], [1], [0, 0, 1, 1], [], []>} : vector<32x128xbf16>, vector<128x256xbf16>, vector<32x256xf32> -> vector<32x256xf32>
    %c0_46 = arith.constant 0 : index
    %c0_47 = arith.constant 0 : index
    %108 = vector.load %arg15[%c0_46, %c0_47] : memref<1x256xf32, #tpu.memory_space<vmem>>, vector<1x256xf32>
    %109 = vector.broadcast %108 : vector<1x256xf32> to vector<32x256xf32>
    %110 = arith.addf %107, %109 : vector<32x256xf32>
    %cst_48 = arith.constant 5.000000e-01 : f32
    %111 = vector.broadcast %cst_48 : f32 to vector<32x256xf32>
    %112 = arith.mulf %111, %110 : vector<32x256xf32>
    %cst_49 = arith.constant 4.471500e-02 : f32
    %113 = vector.broadcast %cst_49 : f32 to vector<32x256xf32>
    %114 = arith.mulf %113, %110 : vector<32x256xf32>
    %115 = arith.mulf %114, %110 : vector<32x256xf32>
    %116 = arith.mulf %115, %110 : vector<32x256xf32>
    %117 = arith.addf %110, %116 : vector<32x256xf32>
    %cst_50 = arith.constant 0.797884583 : f32
    %118 = vector.broadcast %cst_50 : f32 to vector<32x256xf32>
    %119 = arith.mulf %118, %117 : vector<32x256xf32>
    %120 = math.tanh %119 : vector<32x256xf32>
    %cst_51 = arith.constant 1.000000e+00 : f32
    %121 = vector.broadcast %cst_51 : f32 to vector<32x256xf32>
    %122 = arith.addf %121, %120 : vector<32x256xf32>
    %123 = arith.mulf %112, %122 : vector<32x256xf32>
    %124 = arith.truncf %123 : vector<32x256xf32> to vector<32x256xbf16>
    %c0_52 = arith.constant 0 : index
    %c0_53 = arith.constant 0 : index
    %125 = vector.load %arg16[%c0_52, %c0_53] : memref<256x128xbf16, #tpu.memory_space<vmem>>, vector<256x128xbf16>
    %cst_54 = arith.constant dense<0.000000e+00> : vector<32x128xf32>
    %126 = tpu.matmul %124, %125, %cst_54 {dimension_numbers = #tpu.dot_dimension_numbers<[1], [0], [0], [1], [0, 0, 1, 1], [], []>} : vector<32x256xbf16>, vector<256x128xbf16>, vector<32x128xf32> -> vector<32x128xf32>
    %c0_55 = arith.constant 0 : index
    %c0_56 = arith.constant 0 : index
    %127 = vector.load %arg17[%c0_55, %c0_56] : memref<1x128xf32, #tpu.memory_space<vmem>>, vector<1x128xf32>
    %128 = vector.broadcast %127 : vector<1x128xf32> to vector<32x128xf32>
    %129 = arith.addf %126, %128 : vector<32x128xf32>
    %130 = arith.addf %129, %104 : vector<32x128xf32>
    %cst_57 = arith.constant dense<0.000000e+00> : vector<32xf32>
    %131 = vector.multi_reduction <add>, %130, %cst_57 [1] : vector<32x128xf32> to vector<32xf32>
    %132 = vector.shape_cast %131 : vector<32xf32> to vector<32x1xf32>
    %cst_58 = arith.constant 1.280000e+02 : f32
    %133 = vector.broadcast %cst_58 : f32 to vector<32x1xf32>
    %134 = arith.divf %132, %133 : vector<32x1xf32>
    %135 = vector.broadcast %134 : vector<32x1xf32> to vector<32x128xf32>
    %136 = arith.subf %130, %135 : vector<32x128xf32>
    %137 = arith.mulf %136, %136 : vector<32x128xf32>
    %cst_59 = arith.constant dense<0.000000e+00> : vector<32xf32>
    %138 = vector.multi_reduction <add>, %137, %cst_59 [1] : vector<32x128xf32> to vector<32xf32>
    %139 = vector.shape_cast %138 : vector<32xf32> to vector<32x1xf32>
    %cst_60 = arith.constant 1.280000e+02 : f32
    %140 = vector.broadcast %cst_60 : f32 to vector<32x1xf32>
    %141 = arith.divf %139, %140 : vector<32x1xf32>
    %142 = vector.broadcast %134 : vector<32x1xf32> to vector<32x128xf32>
    %143 = arith.subf %130, %142 : vector<32x128xf32>
    %cst_61 = arith.constant 9.99999996E-13 : f32
    %144 = vector.broadcast %cst_61 : f32 to vector<32x1xf32>
    %145 = arith.addf %141, %144 : vector<32x1xf32>
    %146 = math.rsqrt %145 : vector<32x1xf32>
    %147 = vector.broadcast %146 : vector<32x1xf32> to vector<32x128xf32>
    %148 = arith.mulf %143, %147 : vector<32x128xf32>
    %c0_62 = arith.constant 0 : index
    %c0_63 = arith.constant 0 : index
    %149 = vector.load %arg18[%c0_62, %c0_63] : memref<1x128xf32, #tpu.memory_space<vmem>>, vector<1x128xf32>
    %150 = vector.broadcast %149 : vector<1x128xf32> to vector<32x128xf32>
    %151 = arith.mulf %148, %150 : vector<32x128xf32>
    %c0_64 = arith.constant 0 : index
    %c0_65 = arith.constant 0 : index
    %152 = vector.load %arg19[%c0_64, %c0_65] : memref<1x128xf32, #tpu.memory_space<vmem>>, vector<1x128xf32>
    %153 = vector.broadcast %152 : vector<1x128xf32> to vector<32x128xf32>
    %154 = arith.addf %151, %153 : vector<32x128xf32>
    %155 = vector.shape_cast %154 : vector<32x128xf32> to vector<4x8x128xf32>
    %c0_66 = arith.constant 0 : index
    %c0_67 = arith.constant 0 : index
    %c0_68 = arith.constant 0 : index
    %156 = vector.load %arg20[%c0_66, %c0_67, %c0_68] : memref<4x8x128xf32, #tpu.memory_space<vmem>>, vector<4x8x128xf32>
    tpu.vector_store %arg20[%c0_66, %c0_67, %c0_68], %155 {strides = array<i32>} : memref<4x8x128xf32, #tpu.memory_space<vmem>>, vector<4x8x128xf32>,
    return
  }
  func.func @transform_0(%arg0: i32) -> (i32, i32, i32) {
    %c0_i32 = arith.constant 0 : i32
    %c0_i32_0 = arith.constant 0 : i32
    %c0_i32_1 = arith.constant 0 : i32
    return %arg0, %c0_i32, %c0_i32_0 : i32, i32, i32
  }
  func.func @transform_1(%arg0: i32) -> (i32, i32, i32) {
    %c0_i32 = arith.constant 0 : i32
    %c0_i32_0 = arith.constant 0 : i32
    %c0_i32_1 = arith.constant 0 : i32
    return %arg0, %c0_i32, %c0_i32_0 : i32, i32, i32
  }
  func.func @transform_2(%arg0: i32) -> (i32, i32) {
    %c0_i32 = arith.constant 0 : i32
    %c0_i32_0 = arith.constant 0 : i32
    %c0_i32_1 = arith.constant 0 : i32
    return %c0_i32, %c0_i32_0 : i32, i32
  }
  func.func @transform_3(%arg0: i32) -> (i32, i32) {
    %c0_i32 = arith.constant 0 : i32
    %c0_i32_0 = arith.constant 0 : i32
    %c0_i32_1 = arith.constant 0 : i32
    return %c0_i32, %c0_i32_0 : i32, i32
  }
  func.func @transform_4(%arg0: i32) -> (i32, i32) {
    %c0_i32 = arith.constant 0 : i32
    %c0_i32_0 = arith.constant 0 : i32
    %c0_i32_1 = arith.constant 0 : i32
    return %c0_i32, %c0_i32_0 : i32, i32
  }
  func.func @transform_5(%arg0: i32) -> (i32, i32) {
    %c0_i32 = arith.constant 0 : i32
    %c0_i32_0 = arith.constant 0 : i32
    %c0_i32_1 = arith.constant 0 : i32
    return %c0_i32, %c0_i32_0 : i32, i32
  }
  func.func @transform_6(%arg0: i32) -> (i32, i32) {
    %c0_i32 = arith.constant 0 : i32
    %c0_i32_0 = arith.constant 0 : i32
    %c0_i32_1 = arith.constant 0 : i32
    return %c0_i32, %c0_i32_0 : i32, i32
  }
  func.func @transform_7(%arg0: i32) -> (i32, i32) {
    %c0_i32 = arith.constant 0 : i32
    %c0_i32_0 = arith.constant 0 : i32
    %c0_i32_1 = arith.constant 0 : i32
    return %c0_i32, %c0_i32_0 : i32, i32
  }
  func.func @transform_8(%arg0: i32) -> (i32, i32) {
    %c0_i32 = arith.constant 0 : i32
    %c0_i32_0 = arith.constant 0 : i32
    %c0_i32_1 = arith.constant 0 : i32
    return %c0_i32, %c0_i32_0 : i32, i32
  }
  func.func @transform_9(%arg0: i32) -> (i32, i32) {
    %c0_i32 = arith.constant 0 : i32
    %c0_i32_0 = arith.constant 0 : i32
    %c0_i32_1 = arith.constant 0 : i32
    return %c0_i32, %c0_i32_0 : i32, i32
  }
  func.func @transform_10(%arg0: i32) -> (i32, i32) {
    %c0_i32 = arith.constant 0 : i32
    %c0_i32_0 = arith.constant 0 : i32
    %c0_i32_1 = arith.constant 0 : i32
    return %c0_i32, %c0_i32_0 : i32, i32
  }
  func.func @transform_11(%arg0: i32) -> (i32, i32) {
    %c0_i32 = arith.constant 0 : i32
    %c0_i32_0 = arith.constant 0 : i32
    %c0_i32_1 = arith.constant 0 : i32
    return %c0_i32, %c0_i32_0 : i32, i32
  }
  func.func @transform_12(%arg0: i32) -> (i32, i32) {
    %c0_i32 = arith.constant 0 : i32
    %c0_i32_0 = arith.constant 0 : i32
    %c0_i32_1 = arith.constant 0 : i32
    return %c0_i32, %c0_i32_0 : i32, i32
  }
  func.func @transform_13(%arg0: i32) -> (i32, i32) {
    %c0_i32 = arith.constant 0 : i32
    %c0_i32_0 = arith.constant 0 : i32
    %c0_i32_1 = arith.constant 0 : i32
    return %c0_i32, %c0_i32_0 : i32, i32
  }
  func.func @transform_14(%arg0: i32) -> (i32, i32) {
    %c0_i32 = arith.constant 0 : i32
    %c0_i32_0 = arith.constant 0 : i32
    %c0_i32_1 = arith.constant 0 : i32
    return %c0_i32, %c0_i32_0 : i32, i32
  }
  func.func @transform_15(%arg0: i32) -> (i32, i32) {
    %c0_i32 = arith.constant 0 : i32
    %c0_i32_0 = arith.constant 0 : i32
    %c0_i32_1 = arith.constant 0 : i32
    return %c0_i32, %c0_i32_0 : i32, i32
  }
  func.func @transform_16(%arg0: i32) -> (i32, i32) {
    %c0_i32 = arith.constant 0 : i32
    %c0_i32_0 = arith.constant 0 : i32
    %c0_i32_1 = arith.constant 0 : i32
    return %c0_i32, %c0_i32_0 : i32, i32
  }
  func.func @transform_17(%arg0: i32) -> (i32, i32) {
    %c0_i32 = arith.constant 0 : i32
    %c0_i32_0 = arith.constant 0 : i32
    %c0_i32_1 = arith.constant 0 : i32
    return %c0_i32, %c0_i32_0 : i32, i32
  }
  func.func @transform_18(%arg0: i32) -> (i32, i32) {
    %c0_i32 = arith.constant 0 : i32
    %c0_i32_0 = arith.constant 0 : i32
    %c0_i32_1 = arith.constant 0 : i32
    return %c0_i32, %c0_i32_0 : i32, i32
  }
  func.func @transform_19(%arg0: i32) -> (i32, i32, i32) {
    %c0_i32 = arith.constant 0 : i32
    %c0_i32_0 = arith.constant 0 : i32
    %c0_i32_1 = arith.constant 0 : i32
    return %arg0, %c0_i32, %c0_i32_0 : i32, i32, i32
  }
}

</mosaic_0001>

<llo_original>
// kernel: tpu_custom_call.1
$region0: #{tpu_custom_call.1}
  #allocation0 [shape = 'u32[]', space=smem, size = 0x4, offset = 0x4, fixed_abs, tag = 'smem constant byte address 0x4 - core index']
  #allocation1 [shape = 'u32[144,128]{1,0:T(1,128)}', space=vmem, size = 0x12000, scoped, tag = 'internal scratch']
  %s0 = inlined_call_operand.vmem [shape: f32[8,8,128], index: 0, kind: input, shape index: {}]
  %s1 = inlined_call_operand.hbm [shape: f32[8,1,8], index: 1, kind: input, shape index: {}]
  %s2 = inlined_call_operand.vmem [shape: f32[4,128], index: 2, kind: input, shape index: {}]
  %s3 = inlined_call_operand.hbm [shape: bf16[128,384], index: 3, kind: input, shape index: {}]
  %s4 = inlined_call_operand.vmem [shape: f32[1,384], index: 4, kind: input, shape index: {}]
  %s5 = inlined_call_operand.vmem [shape: bf16[128,4], index: 5, kind: input, shape index: {}]
  %s6 = inlined_call_operand.vmem [shape: f32[1,4], index: 6, kind: input, shape index: {}]
  %s7 = inlined_call_operand.hbm [shape: bf16[128,128], index: 7, kind: input, shape index: {}]
  %s8 = inlined_call_operand.vmem [shape: f32[1,128], index: 8, kind: input, shape index: {}]
  %s9 = inlined_call_operand.hbm [shape: bf16[128,128], index: 9, kind: input, shape index: {}]
  %s10 = inlined_call_operand.vmem [shape: f32[1,128], index: 10, kind: input, shape index: {}]
  %s11 = inlined_call_operand.vmem [shape: f32[1,128], index: 11, kind: input, shape index: {}]
  %s12 = inlined_call_operand.vmem [shape: f32[1,128], index: 12, kind: input, shape index: {}]
  %s13 = inlined_call_operand.hbm [shape: bf16[128,256], index: 13, kind: input, shape index: {}]
  %s14 = inlined_call_operand.vmem [shape: f32[1,256], index: 14, kind: input, shape index: {}]
  %s15 = inlined_call_operand.hbm [shape: bf16[256,128], index: 15, kind: input, shape index: {}]
  %s16 = inlined_call_operand.vmem [shape: f32[1,128], index: 16, kind: input, shape index: {}]
  %s17 = inlined_call_operand.vmem [shape: f32[1,128], index: 17, kind: input, shape index: {}]
  %s18 = inlined_call_operand.vmem [shape: f32[1,128], index: 18, kind: input, shape index: {}]
  %s19 = inlined_call_operand.hbm [shape: f32[8,8,128], index: 19, kind: output, shape index: {}]
  %s20 = sld [smem:[#allocation0]]
  $region133: #{tpu_custom_call.1} parent=0
    _
  %s22 = ssub.s32 1, %s20
  %s23 = scalar_select 0, %s22, %s20
  $region1: #{tpu_custom_call.1} parent=0
    #allocation2 [shape = 'u8[4096]{0}', space=vmem, size = 0x1000, scoped, tag = 'input window, operand 1']
    #allocation3 [shape = 's32[2]{0}', space=sflag, size = 0x8, scoped, tag = 'scoped memory for tpu_custom_call.1']
    #allocation4 [shape = 's32[2]{0}', space=sflag, size = 0x8, scoped, tag = 'scoped memory for tpu_custom_call.1']
    #allocation5 [shape = 'u8[98304]{0}', space=vmem, size = 0x18000, scoped, tag = 'input window, operand 3, single buffered']
    #allocation6 [shape = 's32[1]{0}', space=sflag, size = 0x4, scoped, tag = 'scoped memory for tpu_custom_call.1']
    #allocation7 [shape = 'u8[32768]{0}', space=vmem, size = 0x8000, scoped, tag = 'input window, operand 7, single buffered']
    #allocation8 [shape = 'u8[32768]{0}', space=vmem, size = 0x8000, scoped, tag = 'input window, operand 9, single buffered']
    #allocation9 [shape = 's32[1]{0}', space=sflag, size = 0x4, scoped, tag = 'scoped memory for tpu_custom_call.1']
    #allocation10 [shape = 'u8[65536]{0}', space=vmem, size = 0x10000, scoped, tag = 'input window, operand 13, single buffered']
    #allocation11 [shape = 'u8[65536]{0}', space=vmem, size = 0x10000, scoped, tag = 'input window, operand 15, single buffered']
    #allocation12 [shape = 's32[1]{0}', space=sflag, size = 0x4, scoped, tag = 'scoped memory for tpu_custom_call.1']
    #allocation13 [shape = 'u8[32768]{0}', space=vmem, size = 0x8000, scoped, tag = 'output window, operand 0']
    %24 = vsyncpa [#allocation3], 0
    %s25 = scalar_lea.sflag [#allocation3], 1
    %26 = vsyncpa %s25, 0
    %27 = vsyncpa [#allocation6], 0
    %28 = vsyncpa [#allocation9], 0
    %29 = vsyncpa [#allocation12], 0
    %30 = vsyncpa [#allocation4], 0
    %s31 = scalar_lea.sflag [#allocation4], 1
    %32 = vsyncpa %s31, 0
    loop: start=0, step=1, limit=4
    $region2: #{tpu_custom_call.1} parent=1 // loop_pre_header
      _
    $region3: #{tpu_custom_call.1} parent=1 // loop_header
      %s34 = sphi 0, %s38
      %p35 = scmp.ge.s32.totalorder %s34, 4
      %s44 = sphi 0, %s46
      %s47 = sphi 0, %s44
      %s48 = sphi 0, %s47
      %s64 = sphi 0, %s48
      %s70 = sphi 0, %s72
      %s73 = sphi 0, %s70
      %s74 = sphi 0, %s73
      %s90 = sphi 0, %s74
      %s94 = sphi 0, %s94
      %s96 = sphi 0, %s94
      %s97 = sphi 0, %s96
      %s111 = sphi 0, %s97
      %s115 = sphi 0, %s115
      %s117 = sphi 0, %s115
      %s118 = sphi 0, %s117
      %s132 = sphi 0, %s118
      %s136 = sphi 0, %s136
      %s138 = sphi 0, %s136
      %s139 = sphi 0, %s138
      %s153 = sphi 0, %s139
      %s157 = sphi 0, %s157
      %s159 = sphi 0, %s157
      %s160 = sphi 0, %s159
      %s174 = sphi 0, %s160
      %s178 = sphi 0, %s178
      %s180 = sphi 0, %s178
      %s181 = sphi 0, %s180
      %s195 = sphi 0, %s181
      %s199 = sphi 0, %s199
      %s201 = sphi 0, %s199
      %s202 = sphi 0, %s201
      %s216 = sphi 0, %s202
      %s220 = sphi 0, %s220
      %s222 = sphi 0, %s220
      %s223 = sphi 0, %s222
      %s237 = sphi 0, %s223
      %s241 = sphi 0, %s241
      %s243 = sphi 0, %s241
      %s244 = sphi 0, %s243
      %s258 = sphi 0, %s244
      %s262 = sphi 0, %s262
      %s264 = sphi 0, %s262
      %s265 = sphi 0, %s264
      %s279 = sphi 0, %s265
      %s283 = sphi 0, %s283
      %s285 = sphi 0, %s283
      %s286 = sphi 0, %s285
      %s300 = sphi 0, %s286
      %s304 = sphi 0, %s304
      %s306 = sphi 0, %s304
      %s307 = sphi 0, %s306
      %s321 = sphi 0, %s307
      %s325 = sphi 0, %s325
      %s327 = sphi 0, %s325
      %s328 = sphi 0, %s327
      %s342 = sphi 0, %s328
      %s346 = sphi 0, %s346
      %s348 = sphi 0, %s346
      %s349 = sphi 0, %s348
      %s363 = sphi 0, %s349
      %s367 = sphi 0, %s367
      %s369 = sphi 0, %s367
      %s370 = sphi 0, %s369
      %s384 = sphi 0, %s370
      %s388 = sphi 0, %s388
      %s390 = sphi 0, %s388
      %s391 = sphi 0, %s390
      %s405 = sphi 0, %s391
      %s409 = sphi 0, %s409
      %s411 = sphi 0, %s409
      %s412 = sphi 0, %s411
      %s426 = sphi 0, %s412
      %s430 = sphi 0, %s430
      %s432 = sphi 0, %s430
      %s433 = sphi 0, %s432
      %s447 = sphi 0, %s433
      %s453 = sphi 0, %s455
      %s456 = sphi 0, %s453
      %s457 = sphi 0, %s456
      %s473 = sphi 0, %s457
    $region4: #{tpu_custom_call.1} parent=1 // loop_header_branch
      %37 = sbr.rel (%p35) target = $region8
    $region5: #{tpu_custom_call.1} parent=1 // loop_body
      %s39 = ssub.s32 %s34, 1
      %s40 = ssub.s32 %s34, 2
      %s41 = sadd.s32 %s34, 1
      %s42 = ssub.s32 %s34, %s41
      %p43 = scmp.eq.s32.totalorder %s42, 0
      %s45 = sadd.s32 %s44, 1
      %s46 = scalar_select %p43, %s44, %s45
      %p49 = pneg %p43
      %p50 = scmp.eq.s32.totalorder %s34, 1
      %p51 = por %p49, %p50
      %p52 = scmp.ne.s32.totalorder %s44, %s47
      %p53 = scmp.eq.s32.totalorder %s34, 0
      %p54 = por %p52, %p53
      %p55 = scmp.ne.s32.totalorder %s44, %s47
      %p56 = scmp.eq.s32.totalorder %s39, 1
      %p57 = por %p55, %p56
      %p58 = scmp.ne.s32.totalorder %s47, %s48
      %p59 = scmp.eq.s32.totalorder %s39, 0
      %p60 = por %p58, %p59
      %p61 = scmp.ne.s32.totalorder %s47, %s48
      %p62 = scmp.eq.s32.totalorder %s40, 1
      %p63 = por %p61, %p62
      %p65 = scmp.ne.s32.totalorder %s48, %s64
      %p66 = scmp.eq.s32.totalorder %s40, 0
      %p67 = por %p65, %p66
      %s68 = ssub.s32 %s34, %s41
      %p69 = scmp.eq.s32.totalorder %s68, 0
      %s71 = sadd.s32 %s70, 1
      %s72 = scalar_select %p69, %s70, %s71
      %p75 = pneg %p69
      %p76 = scmp.eq.s32.totalorder %s34, 1
      %p77 = por %p75, %p76
      %p78 = scmp.ne.s32.totalorder %s70, %s73
      %p79 = scmp.eq.s32.totalorder %s34, 0
      %p80 = por %p78, %p79
      %p81 = scmp.ne.s32.totalorder %s70, %s73
      %p82 = scmp.eq.s32.totalorder %s39, 1
      %p83 = por %p81, %p82
      %p84 = scmp.ne.s32.totalorder %s73, %s74
      %p85 = scmp.eq.s32.totalorder %s39, 0
      %p86 = por %p84, %p85
      %p87 = scmp.ne.s32.totalorder %s73, %s74
      %p88 = scmp.eq.s32.totalorder %s40, 1
      %p89 = por %p87, %p88
      %p91 = scmp.ne.s32.totalorder %s74, %s90
      %p92 = scmp.eq.s32.totalorder %s40, 0
      %p93 = por %p91, %p92
      %s95 = sadd.s32 %s94, 1
      %p98 = scmp.eq.s32.totalorder %s34, 1
      %p99 = scmp.ne.s32.totalorder %s94, %s96
      %p100 = scmp.eq.s32.totalorder %s34, 0
      %p101 = por %p99, %p100
      %p102 = scmp.ne.s32.totalorder %s94, %s96
      %p103 = scmp.eq.s32.totalorder %s39, 1
      %p104 = por %p102, %p103
      %p105 = scmp.ne.s32.totalorder %s96, %s97
      %p106 = scmp.eq.s32.totalorder %s39, 0
      %p107 = por %p105, %p106
      %p108 = scmp.ne.s32.totalorder %s96, %s97
      %p109 = scmp.eq.s32.totalorder %s40, 1
      %p110 = por %p108, %p109
      %p112 = scmp.ne.s32.totalorder %s97, %s111
      %p113 = scmp.eq.s32.totalorder %s40, 0
      %p114 = por %p112, %p113
      %s116 = sadd.s32 %s115, 1
      %p119 = scmp.eq.s32.totalorder %s34, 1
      %p120 = scmp.ne.s32.totalorder %s115, %s117
      %p121 = scmp.eq.s32.totalorder %s34, 0
      %p122 = por %p120, %p121
      %p123 = scmp.ne.s32.totalorder %s115, %s117
      %p124 = scmp.eq.s32.totalorder %s39, 1
      %p125 = por %p123, %p124
      %p126 = scmp.ne.s32.totalorder %s117, %s118
      %p127 = scmp.eq.s32.totalorder %s39, 0
      %p128 = por %p126, %p127
      %p129 = scmp.ne.s32.totalorder %s117, %s118
      %p130 = scmp.eq.s32.totalorder %s40, 1
      %p131 = por %p129, %p130
      %p133 = scmp.ne.s32.totalorder %s118, %s132
      %p134 = scmp.eq.s32.totalorder %s40, 0
      %p135 = por %p133, %p134
      %s137 = sadd.s32 %s136, 1
      %p140 = scmp.eq.s32.totalorder %s34, 1
      %p141 = scmp.ne.s32.totalorder %s136, %s138
      %p142 = scmp.eq.s32.totalorder %s34, 0
      %p143 = por %p141, %p142
      %p144 = scmp.ne.s32.totalorder %s136, %s138
      %p145 = scmp.eq.s32.totalorder %s39, 1
      %p146 = por %p144, %p145
      %p147 = scmp.ne.s32.totalorder %s138, %s139
      %p148 = scmp.eq.s32.totalorder %s39, 0
      %p149 = por %p147, %p148
      %p150 = scmp.ne.s32.totalorder %s138, %s139
      %p151 = scmp.eq.s32.totalorder %s40, 1
      %p152 = por %p150, %p151
      %p154 = scmp.ne.s32.totalorder %s139, %s153
      %p155 = scmp.eq.s32.totalorder %s40, 0
      %p156 = por %p154, %p155
      %s158 = sadd.s32 %s157, 1
      %p161 = scmp.eq.s32.totalorder %s34, 1
      %p162 = scmp.ne.s32.totalorder %s157, %s159
      %p163 = scmp.eq.s32.totalorder %s34, 0
      %p164 = por %p162, %p163
      %p165 = scmp.ne.s32.totalorder %s157, %s159
      %p166 = scmp.eq.s32.totalorder %s39, 1
      %p167 = por %p165, %p166
      %p168 = scmp.ne.s32.totalorder %s159, %s160
      %p169 = scmp.eq.s32.totalorder %s39, 0
      %p170 = por %p168, %p169
      %p171 = scmp.ne.s32.totalorder %s159, %s160
      %p172 = scmp.eq.s32.totalorder %s40, 1
      %p173 = por %p171, %p172
      %p175 = scmp.ne.s32.totalorder %s160, %s174
      %p176 = scmp.eq.s32.totalorder %s40, 0
      %p177 = por %p175, %p176
      %s179 = sadd.s32 %s178, 1
      %p182 = scmp.eq.s32.totalorder %s34, 1
      %p183 = scmp.ne.s32.totalorder %s178, %s180
      %p184 = scmp.eq.s32.totalorder %s34, 0
      %p185 = por %p183, %p184
      %p186 = scmp.ne.s32.totalorder %s178, %s180
      %p187 = scmp.eq.s32.totalorder %s39, 1
      %p188 = por %p186, %p187
      %p189 = scmp.ne.s32.totalorder %s180, %s181
      %p190 = scmp.eq.s32.totalorder %s39, 0
      %p191 = por %p189, %p190
      %p192 = scmp.ne.s32.totalorder %s180, %s181
      %p193 = scmp.eq.s32.totalorder %s40, 1
      %p194 = por %p192, %p193
      %p196 = scmp.ne.s32.totalorder %s181, %s195
      %p197 = scmp.eq.s32.totalorder %s40, 0
      %p198 = por %p196, %p197
      %s200 = sadd.s32 %s199, 1
      %p203 = scmp.eq.s32.totalorder %s34, 1
      %p204 = scmp.ne.s32.totalorder %s199, %s201
      %p205 = scmp.eq.s32.totalorder %s34, 0
      %p206 = por %p204, %p205
      %p207 = scmp.ne.s32.totalorder %s199, %s201
      %p208 = scmp.eq.s32.totalorder %s39, 1
      %p209 = por %p207, %p208
      %p210 = scmp.ne.s32.totalorder %s201, %s202
      %p211 = scmp.eq.s32.totalorder %s39, 0
      %p212 = por %p210, %p211
      %p213 = scmp.ne.s32.totalorder %s201, %s202
      %p214 = scmp.eq.s32.totalorder %s40, 1
      %p215 = por %p213, %p214
      %p217 = scmp.ne.s32.totalorder %s202, %s216
      %p218 = scmp.eq.s32.totalorder %s40, 0
      %p219 = por %p217, %p218
      %s221 = sadd.s32 %s220, 1
      %p224 = scmp.eq.s32.totalorder %s34, 1
      %p225 = scmp.ne.s32.totalorder %s220, %s222
      %p226 = scmp.eq.s32.totalorder %s34, 0
      %p227 = por %p225, %p226
      %p228 = scmp.ne.s32.totalorder %s220, %s222
      %p229 = scmp.eq.s32.totalorder %s39, 1
      %p230 = por %p228, %p229
      %p231 = scmp.ne.s32.totalorder %s222, %s223
      %p232 = scmp.eq.s32.totalorder %s39, 0
      %p233 = por %p231, %p232
      %p234 = scmp.ne.s32.totalorder %s222, %s223
      %p235 = scmp.eq.s32.totalorder %s40, 1
      %p236 = por %p234, %p235
      %p238 = scmp.ne.s32.totalorder %s223, %s237
      %p239 = scmp.eq.s32.totalorder %s40, 0
      %p240 = por %p238, %p239
      %s242 = sadd.s32 %s241, 1
      %p245 = scmp.eq.s32.totalorder %s34, 1
      %p246 = scmp.ne.s32.totalorder %s241, %s243
      %p247 = scmp.eq.s32.totalorder %s34, 0
      %p248 = por %p246, %p247
      %p249 = scmp.ne.s32.totalorder %s241, %s243
      %p250 = scmp.eq.s32.totalorder %s39, 1
      %p251 = por %p249, %p250
      %p252 = scmp.ne.s32.totalorder %s243, %s244
      %p253 = scmp.eq.s32.totalorder %s39, 0
      %p254 = por %p252, %p253
      %p255 = scmp.ne.s32.totalorder %s243, %s244
      %p256 = scmp.eq.s32.totalorder %s40, 1
      %p257 = por %p255, %p256
      %p259 = scmp.ne.s32.totalorder %s244, %s258
      %p260 = scmp.eq.s32.totalorder %s40, 0
      %p261 = por %p259, %p260
      %s263 = sadd.s32 %s262, 1
      %p266 = scmp.eq.s32.totalorder %s34, 1
      %p267 = scmp.ne.s32.totalorder %s262, %s264
      %p268 = scmp.eq.s32.totalorder %s34, 0
      %p269 = por %p267, %p268
      %p270 = scmp.ne.s32.totalorder %s262, %s264
      %p271 = scmp.eq.s32.totalorder %s39, 1
      %p272 = por %p270, %p271
      %p273 = scmp.ne.s32.totalorder %s264, %s265
      %p274 = scmp.eq.s32.totalorder %s39, 0
      %p275 = por %p273, %p274
      %p276 = scmp.ne.s32.totalorder %s264, %s265
      %p277 = scmp.eq.s32.totalorder %s40, 1
      %p278 = por %p276, %p277
      %p280 = scmp.ne.s32.totalorder %s265, %s279
      %p281 = scmp.eq.s32.totalorder %s40, 0
      %p282 = por %p280, %p281
      %s284 = sadd.s32 %s283, 1
      %p287 = scmp.eq.s32.totalorder %s34, 1
      %p288 = scmp.ne.s32.totalorder %s283, %s285
      %p289 = scmp.eq.s32.totalorder %s34, 0
      %p290 = por %p288, %p289
      %p291 = scmp.ne.s32.totalorder %s283, %s285
      %p292 = scmp.eq.s32.totalorder %s39, 1
      %p293 = por %p291, %p292
      %p294 = scmp.ne.s32.totalorder %s285, %s286
      %p295 = scmp.eq.s32.totalorder %s39, 0
      %p296 = por %p294, %p295
      %p297 = scmp.ne.s32.totalorder %s285, %s286
      %p298 = scmp.eq.s32.totalorder %s40, 1
      %p299 = por %p297, %p298
      %p301 = scmp.ne.s32.totalorder %s286, %s300
      %p302 = scmp.eq.s32.totalorder %s40, 0
      %p303 = por %p301, %p302
      %s305 = sadd.s32 %s304, 1
      %p308 = scmp.eq.s32.totalorder %s34, 1
      %p309 = scmp.ne.s32.totalorder %s304, %s306
      %p310 = scmp.eq.s32.totalorder %s34, 0
      %p311 = por %p309, %p310
      %p312 = scmp.ne.s32.totalorder %s304, %s306
      %p313 = scmp.eq.s32.totalorder %s39, 1
      %p314 = por %p312, %p313
      %p315 = scmp.ne.s32.totalorder %s306, %s307
      %p316 = scmp.eq.s32.totalorder %s39, 0
      %p317 = por %p315, %p316
      %p318 = scmp.ne.s32.totalorder %s306, %s307
      %p319 = scmp.eq.s32.totalorder %s40, 1
      %p320 = por %p318, %p319
      %p322 = scmp.ne.s32.totalorder %s307, %s321
      %p323 = scmp.eq.s32.totalorder %s40, 0
      %p324 = por %p322, %p323
      %s326 = sadd.s32 %s325, 1
      %p329 = scmp.eq.s32.totalorder %s34, 1
      %p330 = scmp.ne.s32.totalorder %s325, %s327
      %p331 = scmp.eq.s32.totalorder %s34, 0
      %p332 = por %p330, %p331
      %p333 = scmp.ne.s32.totalorder %s325, %s327
      %p334 = scmp.eq.s32.totalorder %s39, 1
      %p335 = por %p333, %p334
      %p336 = scmp.ne.s32.totalorder %s327, %s328
      %p337 = scmp.eq.s32.totalorder %s39, 0
      %p338 = por %p336, %p337
      %p339 = scmp.ne.s32.totalorder %s327, %s328
      %p340 = scmp.eq.s32.totalorder %s40, 1
      %p341 = por %p339, %p340
      %p343 = scmp.ne.s32.totalorder %s328, %s342
      %p344 = scmp.eq.s32.totalorder %s40, 0
      %p345 = por %p343, %p344
      %s347 = sadd.s32 %s346, 1
      %p350 = scmp.eq.s32.totalorder %s34, 1
      %p351 = scmp.ne.s32.totalorder %s346, %s348
      %p352 = scmp.eq.s32.totalorder %s34, 0
      %p353 = por %p351, %p352
      %p354 = scmp.ne.s32.totalorder %s346, %s348
      %p355 = scmp.eq.s32.totalorder %s39, 1
      %p356 = por %p354, %p355
      %p357 = scmp.ne.s32.totalorder %s348, %s349
      %p358 = scmp.eq.s32.totalorder %s39, 0
      %p359 = por %p357, %p358
      %p360 = scmp.ne.s32.totalorder %s348, %s349
      %p361 = scmp.eq.s32.totalorder %s40, 1
      %p362 = por %p360, %p361
      %p364 = scmp.ne.s32.totalorder %s349, %s363
      %p365 = scmp.eq.s32.totalorder %s40, 0
      %p366 = por %p364, %p365
      %s368 = sadd.s32 %s367, 1
      %p371 = scmp.eq.s32.totalorder %s34, 1
      %p372 = scmp.ne.s32.totalorder %s367, %s369
      %p373 = scmp.eq.s32.totalorder %s34, 0
      %p374 = por %p372, %p373
      %p375 = scmp.ne.s32.totalorder %s367, %s369
      %p376 = scmp.eq.s32.totalorder %s39, 1
      %p377 = por %p375, %p376
      %p378 = scmp.ne.s32.totalorder %s369, %s370
      %p379 = scmp.eq.s32.totalorder %s39, 0
      %p380 = por %p378, %p379
      %p381 = scmp.ne.s32.totalorder %s369, %s370
      %p382 = scmp.eq.s32.totalorder %s40, 1
      %p383 = por %p381, %p382
      %p385 = scmp.ne.s32.totalorder %s370, %s384
      %p386 = scmp.eq.s32.totalorder %s40, 0
      %p387 = por %p385, %p386
      %s389 = sadd.s32 %s388, 1
      %p392 = scmp.eq.s32.totalorder %s34, 1
      %p393 = scmp.ne.s32.totalorder %s388, %s390
      %p394 = scmp.eq.s32.totalorder %s34, 0
      %p395 = por %p393, %p394
      %p396 = scmp.ne.s32.totalorder %s388, %s390
      %p397 = scmp.eq.s32.totalorder %s39, 1
      %p398 = por %p396, %p397
      %p399 = scmp.ne.s32.totalorder %s390, %s391
      %p400 = scmp.eq.s32.totalorder %s39, 0
      %p401 = por %p399, %p400
      %p402 = scmp.ne.s32.totalorder %s390, %s391
      %p403 = scmp.eq.s32.totalorder %s40, 1
      %p404 = por %p402, %p403
      %p406 = scmp.ne.s32.totalorder %s391, %s405
      %p407 = scmp.eq.s32.totalorder %s40, 0
      %p408 = por %p406, %p407
      %s410 = sadd.s32 %s409, 1
      %p413 = scmp.eq.s32.totalorder %s34, 1
      %p414 = scmp.ne.s32.totalorder %s409, %s411
      %p415 = scmp.eq.s32.totalorder %s34, 0
      %p416 = por %p414, %p415
      %p417 = scmp.ne.s32.totalorder %s409, %s411
      %p418 = scmp.eq.s32.totalorder %s39, 1
      %p419 = por %p417, %p418
      %p420 = scmp.ne.s32.totalorder %s411, %s412
      %p421 = scmp.eq.s32.totalorder %s39, 0
      %p422 = por %p420, %p421
      %p423 = scmp.ne.s32.totalorder %s411, %s412
      %p424 = scmp.eq.s32.totalorder %s40, 1
      %p425 = por %p423, %p424
      %p427 = scmp.ne.s32.totalorder %s412, %s426
      %p428 = scmp.eq.s32.totalorder %s40, 0
      %p429 = por %p427, %p428
      %s431 = sadd.s32 %s430, 1
      %p434 = scmp.eq.s32.totalorder %s34, 1
      %p435 = scmp.ne.s32.totalorder %s430, %s432
      %p436 = scmp.eq.s32.totalorder %s34, 0
      %p437 = por %p435, %p436
      %p438 = scmp.ne.s32.totalorder %s430, %s432
      %p439 = scmp.eq.s32.totalorder %s39, 1
      %p440 = por %p438, %p439
      %p441 = scmp.ne.s32.totalorder %s432, %s433
      %p442 = scmp.eq.s32.totalorder %s39, 0
      %p443 = por %p441, %p442
      %p444 = scmp.ne.s32.totalorder %s432, %s433
      %p445 = scmp.eq.s32.totalorder %s40, 1
      %p446 = por %p444, %p445
      %p448 = scmp.ne.s32.totalorder %s433, %s447
      %p449 = scmp.eq.s32.totalorder %s40, 0
      %p450 = por %p448, %p449
      %s451 = ssub.s32 %s34, %s41
      %p452 = scmp.eq.s32.totalorder %s451, 0
      %s454 = sadd.s32 %s453, 1
      %s455 = scalar_select %p452, %s453, %s454
      %p458 = pneg %p452
      %p459 = scmp.eq.s32.totalorder %s34, 1
      %p460 = por %p458, %p459
      %p461 = scmp.ne.s32.totalorder %s453, %s456
      %p462 = scmp.eq.s32.totalorder %s34, 0
      %p463 = por %p461, %p462
      %p464 = scmp.ne.s32.totalorder %s453, %s456
      %p465 = scmp.eq.s32.totalorder %s39, 1
      %p466 = por %p464, %p465
      %p467 = scmp.ne.s32.totalorder %s456, %s457
      %p468 = scmp.eq.s32.totalorder %s39, 0
      %p469 = por %p467, %p468
      %p470 = scmp.ne.s32.totalorder %s456, %s457
      %p471 = scmp.eq.s32.totalorder %s40, 1
      %p472 = por %p470, %p471
      %p474 = scmp.ne.s32.totalorder %s457, %s473
      %p475 = scmp.eq.s32.totalorder %s40, 0
      %p476 = por %p474, %p475
      %p477 = scmp.le.s32.totalorder 1, %s34
      %p478 = scmp.lt.s32.totalorder %s34, 3
      %p479 = pnand %p477, %p478
      %p480 = pneg %p479
      // Predicated region
      $region9: #{tpu_custom_call.1} parent=5 // pred_check
        _
      $region10: #{tpu_custom_call.1} parent=5 // pred_check_branch
        %482 = sbr.rel (%p479) target = $region12
      $region11: #{tpu_custom_call.1} parent=5 // pred_region
        %s483 = ssub.s32 %s34, 1
        // Predicated region
        $region13: #{tpu_custom_call.1} parent=11 // pred_check
          %p484 = pneg %p107
        $region14: #{tpu_custom_call.1} parent=11 // pred_check_branch
          %486 = sbr.rel (%p484) target = $region16
        $region15: #{tpu_custom_call.1} parent=11 // pred_region
          _
        $region16: #{tpu_custom_call.1} parent=11 // pred_fallthru
          _
        // Predicated region
        $region17: #{tpu_custom_call.1} parent=11 // pred_check
          %p487 = pneg %p128
        $region18: #{tpu_custom_call.1} parent=11 // pred_check_branch
          %489 = sbr.rel (%p487) target = $region20
        $region19: #{tpu_custom_call.1} parent=11 // pred_region
          %s491 = ssub.s32 3072, 3072
          %492 = vsyncadd [#allocation6], %s491
          %s493 = sshll.u32 [#allocation5], 4
          %s494 = int_to_ptr.vmem [resolvable:$true] %s493
          %499 = dma.hbm_to_vmem [thread:$0]  %s3, 3072, %s494, [#allocation6], 192, 192, 12
        $region20: #{tpu_custom_call.1} parent=11 // pred_fallthru
          _
        // Predicated region
        $region21: #{tpu_custom_call.1} parent=11 // pred_check
          %p500 = pneg %p149
        $region22: #{tpu_custom_call.1} parent=11 // pred_check_branch
          %502 = sbr.rel (%p500) target = $region24
        $region23: #{tpu_custom_call.1} parent=11 // pred_region
          _
        $region24: #{tpu_custom_call.1} parent=11 // pred_fallthru
          _
        // Predicated region
        $region25: #{tpu_custom_call.1} parent=11 // pred_check
          %p503 = pneg %p170
        $region26: #{tpu_custom_call.1} parent=11 // pred_check_branch
          %505 = sbr.rel (%p503) target = $region28
        $region27: #{tpu_custom_call.1} parent=11 // pred_region
          _
        $region28: #{tpu_custom_call.1} parent=11 // pred_fallthru
          _
        // Predicated region
        $region29: #{tpu_custom_call.1} parent=11 // pred_check
          %p506 = pneg %p191
        $region30: #{tpu_custom_call.1} parent=11 // pred_check_branch
          %508 = sbr.rel (%p506) target = $region32
        $region31: #{tpu_custom_call.1} parent=11 // pred_region
          _
        $region32: #{tpu_custom_call.1} parent=11 // pred_fallthru
          _
        // Predicated region
        $region33: #{tpu_custom_call.1} parent=11 // pred_check
          %p509 = pneg %p212
        $region34: #{tpu_custom_call.1} parent=11 // pred_check_branch
          %511 = sbr.rel (%p509) target = $region36
        $region35: #{tpu_custom_call.1} parent=11 // pred_region
          %s513 = ssub.s32 1024, 1024
          %514 = vsyncadd [#allocation6], %s513
          %s515 = sshll.u32 [#allocation7], 4
          %s516 = int_to_ptr.vmem [resolvable:$true] %s515
          %521 = dma.hbm_to_vmem [thread:$0]  %s7, 1024, %s516, [#allocation6], 64, 64, 4
        $region36: #{tpu_custom_call.1} parent=11 // pred_fallthru
          _
        // Predicated region
        $region37: #{tpu_custom_call.1} parent=11 // pred_check
          %p522 = pneg %p233
        $region38: #{tpu_custom_call.1} parent=11 // pred_check_branch
          %524 = sbr.rel (%p522) target = $region40
        $region39: #{tpu_custom_call.1} parent=11 // pred_region
          _
        $region40: #{tpu_custom_call.1} parent=11 // pred_fallthru
          _
        // Predicated region
        $region41: #{tpu_custom_call.1} parent=11 // pred_check
          %p525 = pneg %p254
        $region42: #{tpu_custom_call.1} parent=11 // pred_check_branch
          %527 = sbr.rel (%p525) target = $region44
        $region43: #{tpu_custom_call.1} parent=11 // pred_region
          %s529 = ssub.s32 1024, 1024
          %530 = vsyncadd [#allocation9], %s529
          %s531 = sshll.u32 [#allocation8], 4
          %s532 = int_to_ptr.vmem [resolvable:$true] %s531
          %537 = dma.hbm_to_vmem [thread:$0]  %s9, 1024, %s532, [#allocation9], 64, 64, 4
        $region44: #{tpu_custom_call.1} parent=11 // pred_fallthru
          _
        // Predicated region
        $region45: #{tpu_custom_call.1} parent=11 // pred_check
          %p538 = pneg %p275
        $region46: #{tpu_custom_call.1} parent=11 // pred_check_branch
          %540 = sbr.rel (%p538) target = $region48
        $region47: #{tpu_custom_call.1} parent=11 // pred_region
          _
        $region48: #{tpu_custom_call.1} parent=11 // pred_fallthru
          _
        // Predicated region
        $region49: #{tpu_custom_call.1} parent=11 // pred_check
          %p541 = pneg %p296
        $region50: #{tpu_custom_call.1} parent=11 // pred_check_branch
          %543 = sbr.rel (%p541) target = $region52
        $region51: #{tpu_custom_call.1} parent=11 // pred_region
          _
        $region52: #{tpu_custom_call.1} parent=11 // pred_fallthru
          _
        // Predicated region
        $region53: #{tpu_custom_call.1} parent=11 // pred_check
          %p544 = pneg %p317
        $region54: #{tpu_custom_call.1} parent=11 // pred_check_branch
          %546 = sbr.rel (%p544) target = $region56
        $region55: #{tpu_custom_call.1} parent=11 // pred_region
          _
        $region56: #{tpu_custom_call.1} parent=11 // pred_fallthru
          _
        // Predicated region
        $region57: #{tpu_custom_call.1} parent=11 // pred_check
          %p547 = pneg %p338
        $region58: #{tpu_custom_call.1} parent=11 // pred_check_branch
          %549 = sbr.rel (%p547) target = $region60
        $region59: #{tpu_custom_call.1} parent=11 // pred_region
          %s551 = ssub.s32 2048, 2048
          %552 = vsyncadd [#allocation9], %s551
          %s553 = sshll.u32 [#allocation10], 4
          %s554 = int_to_ptr.vmem [resolvable:$true] %s553
          %559 = dma.hbm_to_vmem [thread:$0]  %s13, 2048, %s554, [#allocation9], 128, 128, 8
        $region60: #{tpu_custom_call.1} parent=11 // pred_fallthru
          _
        // Predicated region
        $region61: #{tpu_custom_call.1} parent=11 // pred_check
          %p560 = pneg %p359
        $region62: #{tpu_custom_call.1} parent=11 // pred_check_branch
          %562 = sbr.rel (%p560) target = $region64
        $region63: #{tpu_custom_call.1} parent=11 // pred_region
          _
        $region64: #{tpu_custom_call.1} parent=11 // pred_fallthru
          _
        // Predicated region
        $region65: #{tpu_custom_call.1} parent=11 // pred_check
          %p563 = pneg %p380
        $region66: #{tpu_custom_call.1} parent=11 // pred_check_branch
          %565 = sbr.rel (%p563) target = $region68
        $region67: #{tpu_custom_call.1} parent=11 // pred_region
          %s567 = ssub.s32 2048, 2048
          %568 = vsyncadd [#allocation12], %s567
          %s569 = sshll.u32 [#allocation11], 4
          %s570 = int_to_ptr.vmem [resolvable:$true] %s569
          %575 = dma.hbm_to_vmem [thread:$0]  %s15, 2048, %s570, [#allocation12], 64, 64, 4
        $region68: #{tpu_custom_call.1} parent=11 // pred_fallthru
          _
        // Predicated region
        $region69: #{tpu_custom_call.1} parent=11 // pred_check
          %p576 = pneg %p401
        $region70: #{tpu_custom_call.1} parent=11 // pred_check_branch
          %578 = sbr.rel (%p576) target = $region72
        $region71: #{tpu_custom_call.1} parent=11 // pred_region
          _
        $region72: #{tpu_custom_call.1} parent=11 // pred_fallthru
          _
        // Predicated region
        $region73: #{tpu_custom_call.1} parent=11 // pred_check
          %p579 = pneg %p422
        $region74: #{tpu_custom_call.1} parent=11 // pred_check_branch
          %581 = sbr.rel (%p579) target = $region76
        $region75: #{tpu_custom_call.1} parent=11 // pred_region
          _
        $region76: #{tpu_custom_call.1} parent=11 // pred_fallthru
          _
        // Predicated region
        $region77: #{tpu_custom_call.1} parent=11 // pred_check
          %p582 = pneg %p443
        $region78: #{tpu_custom_call.1} parent=11 // pred_check_branch
          %584 = sbr.rel (%p582) target = $region80
        $region79: #{tpu_custom_call.1} parent=11 // pred_region
          _
        $region80: #{tpu_custom_call.1} parent=11 // pred_fallthru
          _
      $region12: #{tpu_custom_call.1} parent=5 // pred_fallthru
        _
      %p585 = scmp.lt.s32.totalorder %s34, 2
      // Predicated region
      $region81: #{tpu_custom_call.1} parent=5 // pred_check
        %p586 = pneg %p585
      $region82: #{tpu_custom_call.1} parent=5 // pred_check_branch
        %588 = sbr.rel (%p586) target = $region84
      $region83: #{tpu_custom_call.1} parent=5 // pred_region
        // Predicated region
        $region85: #{tpu_custom_call.1} parent=83 // pred_check
          %p589 = pneg %p54
        $region86: #{tpu_custom_call.1} parent=83 // pred_check_branch
          %591 = sbr.rel (%p589) target = $region88
        $region87: #{tpu_custom_call.1} parent=83 // pred_region
          %s592 = smul.u32 4, %s34
          %p593 = scmp.lt.s32.totalorder %s592, 7
          %s594 = scalar_select %p593, %s592, 7
          %s595 = smul.addr %s594, 8
          %s596 = scalar_lea.vmem %s0, %s595
          %s597 = smul.u32 4, %s34
        $region88: #{tpu_custom_call.1} parent=83 // pred_fallthru
          _
        // Predicated region
        $region89: #{tpu_custom_call.1} parent=83 // pred_check
          %p598 = pneg %p80
        $region90: #{tpu_custom_call.1} parent=83 // pred_check_branch
          %600 = sbr.rel (%p598) target = $region92
        $region91: #{tpu_custom_call.1} parent=83 // pred_region
          %s601 = sand.u32 %s70, 1
          %s602 = scalar_lea.sflag [#allocation3], %s601
          %s603 = sand.u32 %s70, 1
          %s604 = smul.addr %s603, 4
          %s605 = scalar_lea.vmem [#allocation2], %s604
          %s606 = smul.u32 4, %s34
          %s608 = ssub.s32 64, 64
          %609 = vsyncadd %s602, %s608
          %s610 = smul.addr %s606, 16
          %s611 = scalar_lea.hbm %s1, %s610
          %s612 = sshll.u32 %s605, 4
          %s613 = int_to_ptr.vmem [resolvable:$true] %s612
          %618 = dma.hbm_to_vmem [thread:$0]  %s611, 64, %s613, %s602, 16, 16, 1
        $region92: #{tpu_custom_call.1} parent=83 // pred_fallthru
          _
      $region84: #{tpu_custom_call.1} parent=5 // pred_fallthru
        _
      %p619 = scmp.le.s32.totalorder 1, %s34
      %p620 = scmp.lt.s32.totalorder %s34, 3
      %p621 = pnand %p619, %p620
      %p622 = pneg %p621
      // Predicated region
      $region93: #{tpu_custom_call.1} parent=5 // pred_check
        _
      $region94: #{tpu_custom_call.1} parent=5 // pred_check_branch
        %624 = sbr.rel (%p621) target = $region96
      $region95: #{tpu_custom_call.1} parent=5 // pred_region
        %s625 = ssub.s32 %s34, 1
        %s626 = sand.u32 %s73, 1
        %s627 = scalar_lea.sflag [#allocation3], %s626
        %s628 = sand.u32 %s73, 1
        %s629 = smul.addr %s628, 4
        %s630 = scalar_lea.vmem [#allocation2], %s629
        // Predicated region
        $region97: #{tpu_custom_call.1} parent=95 // pred_check
          %p631 = pneg %p86
        $region98: #{tpu_custom_call.1} parent=95 // pred_check_branch
          %633 = sbr.rel (%p631) target = $region100
        $region99: #{tpu_custom_call.1} parent=95 // pred_region
          %634 = dma.done %s627, 64
        $region100: #{tpu_custom_call.1} parent=95 // pred_fallthru
          _
        // Predicated region
        $region101: #{tpu_custom_call.1} parent=95 // pred_check
          %p635 = pneg %p128
        $region102: #{tpu_custom_call.1} parent=95 // pred_check_branch
          %637 = sbr.rel (%p635) target = $region104
        $region103: #{tpu_custom_call.1} parent=95 // pred_region
          %638 = dma.done [#allocation6], 3072
        $region104: #{tpu_custom_call.1} parent=95 // pred_fallthru
          _
        // Predicated region
        $region105: #{tpu_custom_call.1} parent=95 // pred_check
          %p639 = pneg %p212
        $region106: #{tpu_custom_call.1} parent=95 // pred_check_branch
          %641 = sbr.rel (%p639) target = $region108
        $region107: #{tpu_custom_call.1} parent=95 // pred_region
          %642 = dma.done [#allocation6], 1024
        $region108: #{tpu_custom_call.1} parent=95 // pred_fallthru
          _
        // Predicated region
        $region109: #{tpu_custom_call.1} parent=95 // pred_check
          %p643 = pneg %p254
        $region110: #{tpu_custom_call.1} parent=95 // pred_check_branch
          %645 = sbr.rel (%p643) target = $region112
        $region111: #{tpu_custom_call.1} parent=95 // pred_region
          %646 = dma.done [#allocation9], 1024
        $region112: #{tpu_custom_call.1} parent=95 // pred_fallthru
          _
        // Predicated region
        $region113: #{tpu_custom_call.1} parent=95 // pred_check
          %p647 = pneg %p338
        $region114: #{tpu_custom_call.1} parent=95 // pred_check_branch
          %649 = sbr.rel (%p647) target = $region116
        $region115: #{tpu_custom_call.1} parent=95 // pred_region
          %650 = dma.done [#allocation9], 2048
        $region116: #{tpu_custom_call.1} parent=95 // pred_fallthru
          _
        // Predicated region
        $region117: #{tpu_custom_call.1} parent=95 // pred_check
          %p651 = pneg %p380
        $region118: #{tpu_custom_call.1} parent=95 // pred_check_branch
          %653 = sbr.rel (%p651) target = $region120
        $region119: #{tpu_custom_call.1} parent=95 // pred_region
          %654 = dma.done [#allocation12], 2048
        $region120: #{tpu_custom_call.1} parent=95 // pred_fallthru
          _
        %s655 = smul.u32 4, %s39
        %p656 = scmp.lt.s32.totalorder %s655, 7
        %s657 = scalar_select %p656, %s655, 7
        %s658 = smul.addr %s657, 8
        %s659 = scalar_lea.vmem %s0, %s658
        %p660 = pneg %p60
        %p661 = pneg %p57
        %s662 = sand.u32 %s73, 1
        %s663 = scalar_lea.sflag [#allocation3], %s662
        %s664 = sand.u32 %s73, 1
        %s665 = smul.addr %s664, 4
        %s666 = scalar_lea.vmem [#allocation2], %s665
        %p667 = pneg %p86
        %p668 = pneg %p83
        %p669 = pneg %p107
        %p670 = pneg %p104
        %p671 = pneg %p128
        %p672 = pneg %p125
        %p673 = pneg %p149
        %p674 = pneg %p146
        %p675 = pneg %p170
        %p676 = pneg %p167
        %p677 = pneg %p191
        %p678 = pneg %p188
        %p679 = pneg %p212
        %p680 = pneg %p209
        %p681 = pneg %p233
        %p682 = pneg %p230
        %p683 = pneg %p254
        %p684 = pneg %p251
        %p685 = pneg %p275
        %p686 = pneg %p272
        %p687 = pneg %p296
        %p688 = pneg %p293
        %p689 = pneg %p317
        %p690 = pneg %p314
        %p691 = pneg %p338
        %p692 = pneg %p335
        %p693 = pneg %p359
        %p694 = pneg %p356
        %p695 = pneg %p380
        %p696 = pneg %p377
        %p697 = pneg %p401
        %p698 = pneg %p398
        %p699 = pneg %p422
        %p700 = pneg %p419
        %p701 = pneg %p443
        %p702 = pneg %p440
        %p703 = pneg %p469
        %p704 = pneg %p466
        %s705 = sand.u32 %s456, 1
        %s706 = scalar_lea.sflag [#allocation4], %s705
        %s707 = sand.u32 %s456, 1
        %s708 = smul.addr %s707, 32
        %s709 = scalar_lea.vmem [#allocation13], %s708
        %s710 = smul.u32 4, %s39
        %p711 = scmp.lt.s32.totalorder %s710, 7
        %s712 = scalar_select %p711, %s710, 7
        %s713 = smul.addr %s712, 8
        %s714 = scalar_lea.vmem %s0, %s713
        %s715 = smul.u32 4, %s39
        %s716 = smul.u32 4, %s39
        %s717 = smul.u32 4, %s39
        %v719 = vld [vmem:[%s714] sm:$0xff]
        %v720 = vld [vmem:[%s714 + $0x8] sm:$0xff]
        %v721 = vld [vmem:[%s714 + $0x10] sm:$0xff]
        %v722 = vld [vmem:[%s714 + $0x18] sm:$0xff]
        %v723 = vld [vmem:[%s630] sm:$0x1]
        %v724 = vld [vmem:[%s630 + $0x1] sm:$0x1]
        %v725 = vld [vmem:[%s630 + $0x2] sm:$0x1]
        %v726 = vld [vmem:[%s630 + $0x3] sm:$0x1]
        %v727 = vld [vmem:[%s2] sm:$0xf]
        %v728 = vpack.c.bf16 %v720, %v719
        %v729 = vpack.c.bf16 %v722, %v721
        %v730 = vld [vmem:[#allocation5] sm:$0xff]
        %v731 = vld [vmem:[#allocation5 + $0x8] sm:$0xf]
        %v732 = vld [vmem:[#allocation5 + $0xc] sm:$0xff]
        %v733 = vld [vmem:[#allocation5 + $0x14] sm:$0xf]
        %v734 = vld [vmem:[#allocation5 + $0x18] sm:$0xff]
        %v735 = vld [vmem:[#allocation5 + $0x20] sm:$0xf]
        %v736 = vld [vmem:[#allocation5 + $0x24] sm:$0xff]
        %v737 = vld [vmem:[#allocation5 + $0x2c] sm:$0xf]
        %v738 = vld [vmem:[#allocation5 + $0x30] sm:$0xff]
        %v739 = vld [vmem:[#allocation5 + $0x38] sm:$0xf]
        %v740 = vld [vmem:[#allocation5 + $0x3c] sm:$0xff]
        %v741 = vld [vmem:[#allocation5 + $0x44] sm:$0xf]
        %v742 = vld [vmem:[#allocation5 + $0x48] sm:$0xff]
        %v743 = vld [vmem:[#allocation5 + $0x50] sm:$0xf]
        %v744 = vld [vmem:[#allocation5 + $0x54] sm:$0xff]
        %v745 = vld [vmem:[#allocation5 + $0x5c] sm:$0xf]
        %v746 = vld [vmem:[#allocation5 + $0x60] sm:$0xff]
        %v747 = vld [vmem:[#allocation5 + $0x68] sm:$0xf]
        %v748 = vld [vmem:[#allocation5 + $0x6c] sm:$0xff]
        %v749 = vld [vmem:[#allocation5 + $0x74] sm:$0xf]
        %v750 = vld [vmem:[#allocation5 + $0x78] sm:$0xff]
        %v751 = vld [vmem:[#allocation5 + $0x80] sm:$0xf]
        %v752 = vld [vmem:[#allocation5 + $0x84] sm:$0xff]
        %v753 = vld [vmem:[#allocation5 + $0x8c] sm:$0xf]
        %v754 = vld [vmem:[#allocation5 + $0x90] sm:$0xff]
        %v755 = vld [vmem:[#allocation5 + $0x98] sm:$0xf]
        %v756 = vld [vmem:[#allocation5 + $0x9c] sm:$0xff]
        %v757 = vld [vmem:[#allocation5 + $0xa4] sm:$0xf]
        %v758 = vld [vmem:[#allocation5 + $0xa8] sm:$0xff]
        %v759 = vld [vmem:[#allocation5 + $0xb0] sm:$0xf]
        %v760 = vld [vmem:[#allocation5 + $0xb4] sm:$0xff]
        %v761 = vld [vmem:[#allocation5 + $0xbc] sm:$0xf]
        %v762 = vld [vmem:[%s4] sm:$0x7]
        %v764 = vlaneseq
        %v765 = vshrl.u32 %v764, 7
        %v766 = vsub.s32 0, %v765
        %v767 = vrot.slane %v762, %v766
        %v768 = vlaneseq
        %v769 = vshrl.u32 %v768, 7
        %v770 = vsub.s32 1, %v769
        %v771 = vrot.slane %v762, %v770
        %v772 = vlaneseq
        %v773 = vshrl.u32 %v772, 7
        %v774 = vsub.s32 2, %v773
        %v775 = vrot.slane %v762, %v774
        %v811 = vunpack.c.l.b16 %v730
        %v812 = vunpack.c.h.b16 %v730
        %v813 = vunpack.c.l.b16 %v731
        %v814 = vunpack.c.l.b16 %v732
        %v815 = vunpack.c.h.b16 %v732
        %v816 = vunpack.c.l.b16 %v733
        %v817 = vunpack.c.l.b16 %v734
        %v818 = vunpack.c.h.b16 %v734
        %v819 = vunpack.c.l.b16 %v735
        %v820 = vunpack.c.l.b16 %v736
        %v821 = vunpack.c.h.b16 %v736
        %v822 = vunpack.c.l.b16 %v737
        %v823 = vunpack.c.l.b16 %v738
        %v824 = vunpack.c.h.b16 %v738
        %v825 = vunpack.c.l.b16 %v739
        %v826 = vunpack.c.l.b16 %v740
        %v827 = vunpack.c.h.b16 %v740
        %v828 = vunpack.c.l.b16 %v741
        %v829 = vunpack.c.l.b16 %v742
        %v830 = vunpack.c.h.b16 %v742
        %v831 = vunpack.c.l.b16 %v743
        %v832 = vunpack.c.l.b16 %v744
        %v833 = vunpack.c.h.b16 %v744
        %v834 = vunpack.c.l.b16 %v745
        %v835 = vunpack.c.l.b16 %v746
        %v836 = vunpack.c.h.b16 %v746
        %v837 = vunpack.c.l.b16 %v747
        %v838 = vunpack.c.l.b16 %v748
        %v839 = vunpack.c.h.b16 %v748
        %v840 = vunpack.c.l.b16 %v749
        %v841 = vunpack.c.l.b16 %v750
        %v842 = vunpack.c.h.b16 %v750
        %v843 = vunpack.c.l.b16 %v751
        %v844 = vunpack.c.l.b16 %v752
        %v845 = vunpack.c.h.b16 %v752
        %v846 = vunpack.c.l.b16 %v753
        %v847 = vunpack.c.l.b16 %v754
        %v848 = vunpack.c.h.b16 %v754
        %v849 = vunpack.c.l.b16 %v755
        %v850 = vunpack.c.l.b16 %v756
        %v851 = vunpack.c.h.b16 %v756
        %v852 = vunpack.c.l.b16 %v757
        %v853 = vunpack.c.l.b16 %v758
        %v854 = vunpack.c.h.b16 %v758
        %v855 = vunpack.c.l.b16 %v759
        %v856 = vunpack.c.l.b16 %v760
        %v857 = vunpack.c.h.b16 %v760
        %v858 = vunpack.c.l.b16 %v761
        %v859 = vpack.c.b16 %v814, %v811
        %v860 = vpack.c.b16 %v815, %v812
        %v861 = vpack.c.b16 %v816, %v813
        %v862 = vpack.c.b16 %v820, %v817
        %v863 = vpack.c.b16 %v821, %v818
        %v864 = vpack.c.b16 %v822, %v819
        %v865 = vpack.c.b16 %v826, %v823
        %v866 = vpack.c.b16 %v827, %v824
        %v867 = vpack.c.b16 %v828, %v825
        %v868 = vpack.c.b16 %v832, %v829
        %v869 = vpack.c.b16 %v833, %v830
        %v870 = vpack.c.b16 %v834, %v831
        %v871 = vpack.c.b16 %v838, %v835
        %v872 = vpack.c.b16 %v839, %v836
        %v873 = vpack.c.b16 %v840, %v837
        %v874 = vpack.c.b16 %v844, %v841
        %v875 = vpack.c.b16 %v845, %v842
        %v876 = vpack.c.b16 %v846, %v843
        %v877 = vpack.c.b16 %v850, %v847
        %v878 = vpack.c.b16 %v851, %v848
        %v879 = vpack.c.b16 %v852, %v849
        %v880 = vpack.c.b16 %v856, %v853
        %v881 = vpack.c.b16 %v857, %v854
        %v882 = vpack.c.b16 %v858, %v855
        %907 = vmatprep.subr.bf16.mxu0 %v881
        %908 = vmatpush1.bf16.msra.mxu0 %v880
        %909 = vmatprep.subr.bf16.mxu0 %v878
        %910 = vmatpush1.bf16.msra.mxu0 %v877
        %911 = vmatprep.subr.bf16.mxu0 %v875
        %912 = vmatpush1.bf16.msra.mxu0 %v874
        %913 = vmatprep.subr.bf16.mxu0 %v872
        %914 = vmatpush1.bf16.msra.mxu0 %v871
        %915 = vmatprep.subr.bf16.mxu0 %v869
        %916 = vmatpush1.bf16.msra.mxu0 %v868
        %917 = vmatprep.subr.bf16.mxu0 %v866
        %918 = vmatpush1.bf16.msra.mxu0 %v865
        %919 = vmatprep.subr.bf16.mxu0 %v863
        %920 = vmatpush1.bf16.msra.mxu0 %v862
        %921 = vmatprep.subr.bf16.mxu0 %v860
        %922 = vmatpush1.bf16.msra.mxu0 %v859
        %923 = vmatprep.subr.bf16.mxu0 0
        %924 = vmatpush2.bf16.msra.mxu0 0
        %925 = vmatprep.subr.bf16.mxu0 0
        %926 = vmatpush2.bf16.msra.mxu0 0
        %927 = vmatprep.subr.bf16.mxu0 0
        %928 = vmatpush2.bf16.msra.mxu0 0
        %929 = vmatprep.subr.bf16.mxu0 0
        %930 = vmatpush2.bf16.msra.mxu0 0
        %931 = vmatprep.subr.bf16.mxu0 0
        %932 = vmatpush2.bf16.msra.mxu0 0
        %933 = vmatprep.subr.bf16.mxu0 0
        %934 = vmatpush2.bf16.msra.mxu0 0
        %935 = vmatprep.subr.bf16.mxu0 0
        %936 = vmatpush2.bf16.msra.mxu0 0
        %937 = vmatprep.subr.bf16.mxu0 0
        %938 = vmatpush2.bf16.msra.mxu0 0
        %939 = vmatprep.mubr.bf16.mxu0 0
        %940 = vmatmul.mubr.bf16.gmra.mxu0 %v728
        %v941 = vpop.f32.mrf.mxu0
        %v942 = vadd.f32 %v767, %v941
        %v943 = vpop.f32.mrf.mxu0
        %v944 = vadd.f32 %v771, %v943
        %v945 = vpop.f32.mrf.mxu0
        %v946 = vadd.f32 %v767, %v945
        %v947 = vpop.f32.mrf.mxu0
        %v948 = vadd.f32 %v771, %v947
        %949 = vmatprep.mubr.bf16.mxu0 0
        %950 = vmatmul.mubr.bf16.gmra.mxu0 %v729
        %v951 = vpop.f32.mrf.mxu0
        %v952 = vadd.f32 %v767, %v951
        %v953 = vpop.f32.mrf.mxu0
        %v954 = vadd.f32 %v771, %v953
        %v955 = vpop.f32.mrf.mxu0
        %v956 = vadd.f32 %v767, %v955
        %v957 = vpop.f32.mrf.mxu0
        %v958 = vadd.f32 %v771, %v957
        %959 = vdwg.mxu0
        %960 = vmatprep.subr.bf16.mxu0 0
        %961 = vmatpush1.bf16.msra.mxu0 %v882
        %962 = vmatprep.subr.bf16.mxu0 0
        %963 = vmatpush1.bf16.msra.mxu0 %v879
        %964 = vmatprep.subr.bf16.mxu0 0
        %965 = vmatpush1.bf16.msra.mxu0 %v876
        %966 = vmatprep.subr.bf16.mxu0 0
        %967 = vmatpush1.bf16.msra.mxu0 %v873
        %968 = vmatprep.subr.bf16.mxu0 0
        %969 = vmatpush1.bf16.msra.mxu0 %v870
        %970 = vmatprep.subr.bf16.mxu0 0
        %971 = vmatpush1.bf16.msra.mxu0 %v867
        %972 = vmatprep.subr.bf16.mxu0 0
        %973 = vmatpush1.bf16.msra.mxu0 %v864
        %974 = vmatprep.subr.bf16.mxu0 0
        %975 = vmatpush1.bf16.msra.mxu0 %v861
        %976 = vmatprep.subr.bf16.mxu0 0
        %977 = vmatpush2.bf16.msra.mxu0 0
        %978 = vmatprep.subr.bf16.mxu0 0
        %979 = vmatpush2.bf16.msra.mxu0 0
        %980 = vmatprep.subr.bf16.mxu0 0
        %981 = vmatpush2.bf16.msra.mxu0 0
        %982 = vmatprep.subr.bf16.mxu0 0
        %983 = vmatpush2.bf16.msra.mxu0 0
        %984 = vmatprep.subr.bf16.mxu0 0
        %985 = vmatpush2.bf16.msra.mxu0 0
        %986 = vmatprep.subr.bf16.mxu0 0
        %987 = vmatpush2.bf16.msra.mxu0 0
        %988 = vmatprep.subr.bf16.mxu0 0
        %989 = vmatpush2.bf16.msra.mxu0 0
        %990 = vmatprep.subr.bf16.mxu0 0
        %991 = vmatpush2.bf16.msra.mxu0 0
        %992 = vmatprep.mubr.bf16.mxu0 0
        %993 = vmatmul.mubr.bf16.gmra.mxu0 %v728
        %v994 = vpop.f32.mrf.mxu0
        %v995 = vadd.f32 %v775, %v994
        %v996 = vpop.f32.mrf.mxu0
        %v997 = vpop.f32.mrf.mxu0
        %v998 = vadd.f32 %v775, %v997
        %v999 = vpop.f32.mrf.mxu0
        %1000 = vmatprep.mubr.bf16.mxu0 0
        %1001 = vmatmul.mubr.bf16.gmra.mxu0 %v729
        %v1002 = vpop.f32.mrf.mxu0
        %v1003 = vadd.f32 %v775, %v1002
        %v1004 = vpop.f32.mrf.mxu0
        %v1005 = vpop.f32.mrf.mxu0
        %v1006 = vadd.f32 %v775, %v1005
        %v1007 = vpop.f32.mrf.mxu0
        %1008 = vdwg.mxu0
        %1009 = vxpose.xlu0.b32.start [1/16] %v995, 128
        %1010 = vxpose.xlu0.b32.cont [2/16] 0.0, 128
        %1011 = vxpose.xlu0.b32.cont [3/16] 0.0, 128
        %1012 = vxpose.xlu0.b32.cont [4/16] 0.0, 128
        %1013 = vxpose.xlu0.b32.cont [5/16] 0.0, 128
        %1014 = vxpose.xlu0.b32.cont [6/16] 0.0, 128
        %1015 = vxpose.xlu0.b32.cont [7/16] 0.0, 128
        %1016 = vxpose.xlu0.b32.cont [8/16] 0.0, 128
        %1017 = vxpose.xlu0.b32.cont [9/16] 0.0, 128
        %1018 = vxpose.xlu0.b32.cont [10/16] 0.0, 128
        %1019 = vxpose.xlu0.b32.cont [11/16] 0.0, 128
        %1020 = vxpose.xlu0.b32.cont [12/16] 0.0, 128
        %1021 = vxpose.xlu0.b32.cont [13/16] 0.0, 128
        %1022 = vxpose.xlu0.b32.cont [14/16] 0.0, 128
        %1023 = vxpose.xlu0.b32.cont [15/16] 0.0, 128
        %1024 = vxpose.xlu0.b32.end [16/16] 0.0, 128
        %v1025 = vpop.trf.xlu0
        %v1026 = vpop.trf.xlu0
        %v1027 = vpop.trf.xlu0
        %v1028 = vpop.trf.xlu0
        %v1029 = vpop.trf.xlu0
        %v1030 = vpop.trf.xlu0
        %v1031 = vpop.trf.xlu0
        %v1032 = vpop.trf.xlu0
        %v1033 = vpop.trf.xlu0
        %v1034 = vpop.trf.xlu0
        %v1035 = vpop.trf.xlu0
        %v1036 = vpop.trf.xlu0
        %v1037 = vpop.trf.xlu0
        %v1038 = vpop.trf.xlu0
        %v1039 = vpop.trf.xlu0
        %v1040 = vpop.trf.xlu0
        %1041 = vxpose.xlu0.b32.start [1/16] %v998, 128
        %1042 = vxpose.xlu0.b32.cont [2/16] 0.0, 128
        %1043 = vxpose.xlu0.b32.cont [3/16] 0.0, 128
        %1044 = vxpose.xlu0.b32.cont [4/16] 0.0, 128
        %1045 = vxpose.xlu0.b32.cont [5/16] 0.0, 128
        %1046 = vxpose.xlu0.b32.cont [6/16] 0.0, 128
        %1047 = vxpose.xlu0.b32.cont [7/16] 0.0, 128
        %1048 = vxpose.xlu0.b32.cont [8/16] 0.0, 128
        %1049 = vxpose.xlu0.b32.cont [9/16] 0.0, 128
        %1050 = vxpose.xlu0.b32.cont [10/16] 0.0, 128
        %1051 = vxpose.xlu0.b32.cont [11/16] 0.0, 128
        %1052 = vxpose.xlu0.b32.cont [12/16] 0.0, 128
        %1053 = vxpose.xlu0.b32.cont [13/16] 0.0, 128
        %1054 = vxpose.xlu0.b32.cont [14/16] 0.0, 128
        %1055 = vxpose.xlu0.b32.cont [15/16] 0.0, 128
        %1056 = vxpose.xlu0.b32.end [16/16] 0.0, 128
        %v1057 = vpop.trf.xlu0
        %v1058 = vpop.trf.xlu0
        %v1059 = vpop.trf.xlu0
        %v1060 = vpop.trf.xlu0
        %v1061 = vpop.trf.xlu0
        %v1062 = vpop.trf.xlu0
        %v1063 = vpop.trf.xlu0
        %v1064 = vpop.trf.xlu0
        %v1065 = vpop.trf.xlu0
        %v1066 = vpop.trf.xlu0
        %v1067 = vpop.trf.xlu0
        %v1068 = vpop.trf.xlu0
        %v1069 = vpop.trf.xlu0
        %v1070 = vpop.trf.xlu0
        %v1071 = vpop.trf.xlu0
        %v1072 = vpop.trf.xlu0
        %1073 = vxpose.xlu0.b32.start [1/16] %v1003, 128
        %1074 = vxpose.xlu0.b32.cont [2/16] 0.0, 128
        %1075 = vxpose.xlu0.b32.cont [3/16] 0.0, 128
        %1076 = vxpose.xlu0.b32.cont [4/16] 0.0, 128
        %1077 = vxpose.xlu0.b32.cont [5/16] 0.0, 128
        %1078 = vxpose.xlu0.b32.cont [6/16] 0.0, 128
        %1079 = vxpose.xlu0.b32.cont [7/16] 0.0, 128
        %1080 = vxpose.xlu0.b32.cont [8/16] 0.0, 128
        %1081 = vxpose.xlu0.b32.cont [9/16] 0.0, 128
        %1082 = vxpose.xlu0.b32.cont [10/16] 0.0, 128
        %1083 = vxpose.xlu0.b32.cont [11/16] 0.0, 128
        %1084 = vxpose.xlu0.b32.cont [12/16] 0.0, 128
        %1085 = vxpose.xlu0.b32.cont [13/16] 0.0, 128
        %1086 = vxpose.xlu0.b32.cont [14/16] 0.0, 128
        %1087 = vxpose.xlu0.b32.cont [15/16] 0.0, 128
        %1088 = vxpose.xlu0.b32.end [16/16] 0.0, 128
        %v1089 = vpop.trf.xlu0
        %v1090 = vpop.trf.xlu0
        %v1091 = vpop.trf.xlu0
        %v1092 = vpop.trf.xlu0
        %v1093 = vpop.trf.xlu0
        %v1094 = vpop.trf.xlu0
        %v1095 = vpop.trf.xlu0
        %v1096 = vpop.trf.xlu0
        %v1097 = vpop.trf.xlu0
        %v1098 = vpop.trf.xlu0
        %v1099 = vpop.trf.xlu0
        %v1100 = vpop.trf.xlu0
        %v1101 = vpop.trf.xlu0
        %v1102 = vpop.trf.xlu0
        %v1103 = vpop.trf.xlu0
        %v1104 = vpop.trf.xlu0
        %1105 = vxpose.xlu0.b32.start [1/16] %v1006, 128
        %1106 = vxpose.xlu0.b32.cont [2/16] 0.0, 128
        %1107 = vxpose.xlu0.b32.cont [3/16] 0.0, 128
        %1108 = vxpose.xlu0.b32.cont [4/16] 0.0, 128
        %1109 = vxpose.xlu0.b32.cont [5/16] 0.0, 128
        %1110 = vxpose.xlu0.b32.cont [6/16] 0.0, 128
        %1111 = vxpose.xlu0.b32.cont [7/16] 0.0, 128
        %1112 = vxpose.xlu0.b32.cont [8/16] 0.0, 128
        %1113 = vxpose.xlu0.b32.cont [9/16] 0.0, 128
        %1114 = vxpose.xlu0.b32.cont [10/16] 0.0, 128
        %1115 = vxpose.xlu0.b32.cont [11/16] 0.0, 128
        %1116 = vxpose.xlu0.b32.cont [12/16] 0.0, 128
        %1117 = vxpose.xlu0.b32.cont [13/16] 0.0, 128
        %1118 = vxpose.xlu0.b32.cont [14/16] 0.0, 128
        %1119 = vxpose.xlu0.b32.cont [15/16] 0.0, 128
        %1120 = vxpose.xlu0.b32.end [16/16] 0.0, 128
        %v1121 = vpop.trf.xlu0
        %v1122 = vpop.trf.xlu0
        %v1123 = vpop.trf.xlu0
        %v1124 = vpop.trf.xlu0
        %v1125 = vpop.trf.xlu0
        %v1126 = vpop.trf.xlu0
        %v1127 = vpop.trf.xlu0
        %v1128 = vpop.trf.xlu0
        %v1129 = vpop.trf.xlu0
        %v1130 = vpop.trf.xlu0
        %v1131 = vpop.trf.xlu0
        %v1132 = vpop.trf.xlu0
        %v1133 = vpop.trf.xlu0
        %v1134 = vpop.trf.xlu0
        %v1135 = vpop.trf.xlu0
        %v1136 = vpop.trf.xlu0
        %v1141 = vlaneseq
        %v1142 = vshrl.u32 %v1141, 7
        %v1143 = vsub.s32 0, %v1142
        %v1144 = vrot.slane %v723, %v1143
        %v1145 = vlaneseq
        %v1146 = vshrl.u32 %v1145, 7
        %v1147 = vsub.s32 0, %v1146
        %v1148 = vrot.slane %v724, %v1147
        %v1149 = vlaneseq
        %v1150 = vshrl.u32 %v1149, 7
        %v1151 = vsub.s32 0, %v1150
        %v1152 = vrot.slane %v725, %v1151
        %v1153 = vlaneseq
        %v1154 = vshrl.u32 %v1153, 7
        %v1155 = vsub.s32 0, %v1154
        %v1156 = vrot.slane %v726, %v1155
        %v1161 = vadd.f32 %v1025, %v1144
        %v1162 = vadd.f32 %v1057, %v1148
        %v1163 = vadd.f32 %v1089, %v1152
        %v1164 = vadd.f32 %v1121, %v1156
        %vm1165 = vcmask 60416
        %v1166 = vsel %vm1165, %v1161, -inf
        %1167 = vmax.xlane.f32.xlu0 %v1166
        %v1168 = vpop.xlane.xlu0 %1167
        %v1169 = vsel %vm1165, %v1162, -inf
        %1170 = vmax.xlane.f32.xlu0 %v1169
        %v1171 = vpop.xlane.xlu0 %1170
        %v1172 = vsel %vm1165, %v1163, -inf
        %1173 = vmax.xlane.f32.xlu0 %v1172
        %v1174 = vpop.xlane.xlu0 %1173
        %v1175 = vsel %vm1165, %v1164, -inf
        %1176 = vmax.xlane.f32.xlu0 %v1175
        %v1177 = vpop.xlane.xlu0 %1176
        %v1178 = vsub.f32 %v1161, %v1168
        %v1179 = vsub.f32 %v1162, %v1171
        %v1180 = vsub.f32 %v1163, %v1174
        %v1181 = vsub.f32 %v1164, %v1177
        %v1182 = vmul.f32 %v1178, 1.442695
        %v1183 = vpow.pop %v1182
        %v1184 = vmul.f32 %v1179, 1.442695
        %v1185 = vpow.pop %v1184
        %v1186 = vmul.f32 %v1180, 1.442695
        %v1187 = vpow.pop %v1186
        %v1188 = vmul.f32 %v1181, 1.442695
        %v1189 = vpow.pop %v1188
        %v1190 = vsel %vm1165, %v1183, 0.0
        %1191 = vadd.xlane.f32.xlu0 %v1190
        %v1192 = vpop.xlane.xlu0 %1191
        %v1193 = vsel %vm1165, %v1185, 0.0
        %1194 = vadd.xlane.f32.xlu0 %v1193
        %v1195 = vpop.xlane.xlu0 %1194
        %v1196 = vsel %vm1165, %v1187, 0.0
        %1197 = vadd.xlane.f32.xlu0 %v1196
        %v1198 = vpop.xlane.xlu0 %1197
        %v1199 = vsel %vm1165, %v1189, 0.0
        %1200 = vadd.xlane.f32.xlu0 %v1199
        %v1201 = vpop.xlane.xlu0 %1200
        %v1202 = vrcp.pop %v1192
        %v1203 = vrcp.pop %v1195
        %v1204 = vrcp.pop %v1198
        %v1205 = vrcp.pop %v1201
        %v1206 = vmul.f32 %v1183, %v1202
        %v1207 = vmul.f32 %v1185, %v1203
        %v1208 = vmul.f32 %v1187, %v1204
        %v1209 = vmul.f32 %v1189, %v1205
        %vm1210 = vcmask 64512
        %v1212 = vsel %vm1210, %v1206, 0
        %1214 = vmatprep.subr.mxu0 0.0
        %1215 = vmatpush1.msra.mxu0 0.0
        %1216 = vmatprep.subr.mxu0 0.0
        %1217 = vmatpush1.msra.mxu0 0.0
        %1218 = vmatprep.subr.mxu0 0.0
        %1219 = vmatpush1.msra.mxu0 0.0
        %1220 = vmatprep.subr.mxu0 0.0
        %1221 = vmatpush1.msra.mxu0 0.0
        %1222 = vmatprep.subr.mxu0 0.0
        %1223 = vmatpush1.msra.mxu0 0.0
        %1224 = vmatprep.subr.mxu0 0.0
        %1225 = vmatpush1.msra.mxu0 0.0
        %1226 = vmatprep.subr.mxu0 0.0
        %1227 = vmatpush1.msra.mxu0 0.0
        %1228 = vmatprep.subr.mxu0 0.0
        %1229 = vmatpush1.msra.mxu0 0.0
        %1230 = vmatprep.subr.mxu0 0.0
        %1231 = vmatpush1.msra.mxu0 0.0
        %1232 = vmatprep.subr.mxu0 0.0
        %1233 = vmatpush1.msra.mxu0 0.0
        %1234 = vmatprep.subr.mxu0 0.0
        %1235 = vmatpush1.msra.mxu0 0.0
        %1236 = vmatprep.subr.mxu0 0.0
        %1237 = vmatpush1.msra.mxu0 0.0
        %1238 = vmatprep.subr.mxu0 0.0
        %1239 = vmatpush1.msra.mxu0 0.0
        %1240 = vmatprep.subr.mxu0 0.0
        %1241 = vmatpush1.msra.mxu0 0.0
        %1242 = vmatprep.subr.mxu0 0.0
        %1243 = vmatpush1.msra.mxu0 0.0
        %1244 = vmatprep.subr.mxu0 0.0
        %1245 = vmatpush1.msra.mxu0 %v942
        %1246 = vmatprep.subr.mxu0 0.0
        %1247 = vmatpush2.msra.mxu0 0.0
        %1248 = vmatprep.subr.mxu0 0.0
        %1249 = vmatpush2.msra.mxu0 0.0
        %1250 = vmatprep.subr.mxu0 0.0
        %1251 = vmatpush2.msra.mxu0 0.0
        %1252 = vmatprep.subr.mxu0 0.0
        %1253 = vmatpush2.msra.mxu0 0.0
        %1254 = vmatprep.subr.mxu0 0.0
        %1255 = vmatpush2.msra.mxu0 0.0
        %1256 = vmatprep.subr.mxu0 0.0
        %1257 = vmatpush2.msra.mxu0 0.0
        %1258 = vmatprep.subr.mxu0 0.0
        %1259 = vmatpush2.msra.mxu0 0.0
        %1260 = vmatprep.subr.mxu0 0.0
        %1261 = vmatpush2.msra.mxu0 0.0
        %1262 = vmatprep.subr.mxu0 0.0
        %1263 = vmatpush2.msra.mxu0 0.0
        %1264 = vmatprep.subr.mxu0 0.0
        %1265 = vmatpush2.msra.mxu0 0.0
        %1266 = vmatprep.subr.mxu0 0.0
        %1267 = vmatpush2.msra.mxu0 0.0
        %1268 = vmatprep.subr.mxu0 0.0
        %1269 = vmatpush2.msra.mxu0 0.0
        %1270 = vmatprep.subr.mxu0 0.0
        %1271 = vmatpush2.msra.mxu0 0.0
        %1272 = vmatprep.subr.mxu0 0.0
        %1273 = vmatpush2.msra.mxu0 0.0
        %1274 = vmatprep.subr.mxu0 0.0
        %1275 = vmatpush2.msra.mxu0 0.0
        %1276 = vmatprep.subr.mxu0 0.0
        %1277 = vmatpush2.msra.mxu0 0.0
        %1278 = vmatprep.mubr.f32.mxu0 0.0
        %1279 = vmatmul.mubr.f32.gmra.mxu0 %v1212
        %v1280 = vpop.f32.mrf.mxu0
        %v1281 = vadd.f32 0.0, %v1280
        %v1282 = vpop.f32.mrf.mxu0
        %1283 = vdwg.mxu0
        %v1285 = vsel %vm1210, %v1207, 0
        %1287 = vmatprep.subr.mxu0 0.0
        %1288 = vmatpush1.msra.mxu0 0.0
        %1289 = vmatprep.subr.mxu0 0.0
        %1290 = vmatpush1.msra.mxu0 0.0
        %1291 = vmatprep.subr.mxu0 0.0
        %1292 = vmatpush1.msra.mxu0 0.0
        %1293 = vmatprep.subr.mxu0 0.0
        %1294 = vmatpush1.msra.mxu0 0.0
        %1295 = vmatprep.subr.mxu0 0.0
        %1296 = vmatpush1.msra.mxu0 0.0
        %1297 = vmatprep.subr.mxu0 0.0
        %1298 = vmatpush1.msra.mxu0 0.0
        %1299 = vmatprep.subr.mxu0 0.0
        %1300 = vmatpush1.msra.mxu0 0.0
        %1301 = vmatprep.subr.mxu0 0.0
        %1302 = vmatpush1.msra.mxu0 0.0
        %1303 = vmatprep.subr.mxu0 0.0
        %1304 = vmatpush1.msra.mxu0 0.0
        %1305 = vmatprep.subr.mxu0 0.0
        %1306 = vmatpush1.msra.mxu0 0.0
        %1307 = vmatprep.subr.mxu0 0.0
        %1308 = vmatpush1.msra.mxu0 0.0
        %1309 = vmatprep.subr.mxu0 0.0
        %1310 = vmatpush1.msra.mxu0 0.0
        %1311 = vmatprep.subr.mxu0 0.0
        %1312 = vmatpush1.msra.mxu0 0.0
        %1313 = vmatprep.subr.mxu0 0.0
        %1314 = vmatpush1.msra.mxu0 0.0
        %1315 = vmatprep.subr.mxu0 0.0
        %1316 = vmatpush1.msra.mxu0 0.0
        %1317 = vmatprep.subr.mxu0 0.0
        %1318 = vmatpush1.msra.mxu0 %v946
        %1319 = vmatprep.subr.mxu0 0.0
        %1320 = vmatpush2.msra.mxu0 0.0
        %1321 = vmatprep.subr.mxu0 0.0
        %1322 = vmatpush2.msra.mxu0 0.0
        %1323 = vmatprep.subr.mxu0 0.0
        %1324 = vmatpush2.msra.mxu0 0.0
        %1325 = vmatprep.subr.mxu0 0.0
        %1326 = vmatpush2.msra.mxu0 0.0
        %1327 = vmatprep.subr.mxu0 0.0
        %1328 = vmatpush2.msra.mxu0 0.0
        %1329 = vmatprep.subr.mxu0 0.0
        %1330 = vmatpush2.msra.mxu0 0.0
        %1331 = vmatprep.subr.mxu0 0.0
        %1332 = vmatpush2.msra.mxu0 0.0
        %1333 = vmatprep.subr.mxu0 0.0
        %1334 = vmatpush2.msra.mxu0 0.0
        %1335 = vmatprep.subr.mxu0 0.0
        %1336 = vmatpush2.msra.mxu0 0.0
        %1337 = vmatprep.subr.mxu0 0.0
        %1338 = vmatpush2.msra.mxu0 0.0
        %1339 = vmatprep.subr.mxu0 0.0
        %1340 = vmatpush2.msra.mxu0 0.0
        %1341 = vmatprep.subr.mxu0 0.0
        %1342 = vmatpush2.msra.mxu0 0.0
        %1343 = vmatprep.subr.mxu0 0.0
        %1344 = vmatpush2.msra.mxu0 0.0
        %1345 = vmatprep.subr.mxu0 0.0
        %1346 = vmatpush2.msra.mxu0 0.0
        %1347 = vmatprep.subr.mxu0 0.0
        %1348 = vmatpush2.msra.mxu0 0.0
        %1349 = vmatprep.subr.mxu0 0.0
        %1350 = vmatpush2.msra.mxu0 0.0
        %1351 = vmatprep.mubr.f32.mxu0 0.0
        %1352 = vmatmul.mubr.f32.gmra.mxu0 %v1285
        %v1353 = vpop.f32.mrf.mxu0
        %v1354 = vadd.f32 0.0, %v1353
        %v1355 = vpop.f32.mrf.mxu0
        %1356 = vdwg.mxu0
        %v1358 = vsel %vm1210, %v1208, 0
        %1360 = vmatprep.subr.mxu0 0.0
        %1361 = vmatpush1.msra.mxu0 0.0
        %1362 = vmatprep.subr.mxu0 0.0
        %1363 = vmatpush1.msra.mxu0 0.0
        %1364 = vmatprep.subr.mxu0 0.0
        %1365 = vmatpush1.msra.mxu0 0.0
        %1366 = vmatprep.subr.mxu0 0.0
        %1367 = vmatpush1.msra.mxu0 0.0
        %1368 = vmatprep.subr.mxu0 0.0
        %1369 = vmatpush1.msra.mxu0 0.0
        %1370 = vmatprep.subr.mxu0 0.0
        %1371 = vmatpush1.msra.mxu0 0.0
        %1372 = vmatprep.subr.mxu0 0.0
        %1373 = vmatpush1.msra.mxu0 0.0
        %1374 = vmatprep.subr.mxu0 0.0
        %1375 = vmatpush1.msra.mxu0 0.0
        %1376 = vmatprep.subr.mxu0 0.0
        %1377 = vmatpush1.msra.mxu0 0.0
        %1378 = vmatprep.subr.mxu0 0.0
        %1379 = vmatpush1.msra.mxu0 0.0
        %1380 = vmatprep.subr.mxu0 0.0
        %1381 = vmatpush1.msra.mxu0 0.0
        %1382 = vmatprep.subr.mxu0 0.0
        %1383 = vmatpush1.msra.mxu0 0.0
        %1384 = vmatprep.subr.mxu0 0.0
        %1385 = vmatpush1.msra.mxu0 0.0
        %1386 = vmatprep.subr.mxu0 0.0
        %1387 = vmatpush1.msra.mxu0 0.0
        %1388 = vmatprep.subr.mxu0 0.0
        %1389 = vmatpush1.msra.mxu0 0.0
        %1390 = vmatprep.subr.mxu0 0.0
        %1391 = vmatpush1.msra.mxu0 %v952
        %1392 = vmatprep.subr.mxu0 0.0
        %1393 = vmatpush2.msra.mxu0 0.0
        %1394 = vmatprep.subr.mxu0 0.0
        %1395 = vmatpush2.msra.mxu0 0.0
        %1396 = vmatprep.subr.mxu0 0.0
        %1397 = vmatpush2.msra.mxu0 0.0
        %1398 = vmatprep.subr.mxu0 0.0
        %1399 = vmatpush2.msra.mxu0 0.0
        %1400 = vmatprep.subr.mxu0 0.0
        %1401 = vmatpush2.msra.mxu0 0.0
        %1402 = vmatprep.subr.mxu0 0.0
        %1403 = vmatpush2.msra.mxu0 0.0
        %1404 = vmatprep.subr.mxu0 0.0
        %1405 = vmatpush2.msra.mxu0 0.0
        %1406 = vmatprep.subr.mxu0 0.0
        %1407 = vmatpush2.msra.mxu0 0.0
        %1408 = vmatprep.subr.mxu0 0.0
        %1409 = vmatpush2.msra.mxu0 0.0
        %1410 = vmatprep.subr.mxu0 0.0
        %1411 = vmatpush2.msra.mxu0 0.0
        %1412 = vmatprep.subr.mxu0 0.0
        %1413 = vmatpush2.msra.mxu0 0.0
        %1414 = vmatprep.subr.mxu0 0.0
        %1415 = vmatpush2.msra.mxu0 0.0
        %1416 = vmatprep.subr.mxu0 0.0
        %1417 = vmatpush2.msra.mxu0 0.0
        %1418 = vmatprep.subr.mxu0 0.0
        %1419 = vmatpush2.msra.mxu0 0.0
        %1420 = vmatprep.subr.mxu0 0.0
        %1421 = vmatpush2.msra.mxu0 0.0
        %1422 = vmatprep.subr.mxu0 0.0
        %1423 = vmatpush2.msra.mxu0 0.0
        %1424 = vmatprep.mubr.f32.mxu0 0.0
        %1425 = vmatmul.mubr.f32.gmra.mxu0 %v1358
        %v1426 = vpop.f32.mrf.mxu0
        %v1427 = vadd.f32 0.0, %v1426
        %v1428 = vpop.f32.mrf.mxu0
        %1429 = vdwg.mxu0
        %v1431 = vsel %vm1210, %v1209, 0
        %1433 = vmatprep.subr.mxu0 0.0
        %1434 = vmatpush1.msra.mxu0 0.0
        %1435 = vmatprep.subr.mxu0 0.0
        %1436 = vmatpush1.msra.mxu0 0.0
        %1437 = vmatprep.subr.mxu0 0.0
        %1438 = vmatpush1.msra.mxu0 0.0
        %1439 = vmatprep.subr.mxu0 0.0
        %1440 = vmatpush1.msra.mxu0 0.0
        %1441 = vmatprep.subr.mxu0 0.0
        %1442 = vmatpush1.msra.mxu0 0.0
        %1443 = vmatprep.subr.mxu0 0.0
        %1444 = vmatpush1.msra.mxu0 0.0
        %1445 = vmatprep.subr.mxu0 0.0
        %1446 = vmatpush1.msra.mxu0 0.0
        %1447 = vmatprep.subr.mxu0 0.0
        %1448 = vmatpush1.msra.mxu0 0.0
        %1449 = vmatprep.subr.mxu0 0.0
        %1450 = vmatpush1.msra.mxu0 0.0
        %1451 = vmatprep.subr.mxu0 0.0
        %1452 = vmatpush1.msra.mxu0 0.0
        %1453 = vmatprep.subr.mxu0 0.0
        %1454 = vmatpush1.msra.mxu0 0.0
        %1455 = vmatprep.subr.mxu0 0.0
        %1456 = vmatpush1.msra.mxu0 0.0
        %1457 = vmatprep.subr.mxu0 0.0
        %1458 = vmatpush1.msra.mxu0 0.0
        %1459 = vmatprep.subr.mxu0 0.0
        %1460 = vmatpush1.msra.mxu0 0.0
        %1461 = vmatprep.subr.mxu0 0.0
        %1462 = vmatpush1.msra.mxu0 0.0
        %1463 = vmatprep.subr.mxu0 0.0
        %1464 = vmatpush1.msra.mxu0 %v956
        %1465 = vmatprep.subr.mxu0 0.0
        %1466 = vmatpush2.msra.mxu0 0.0
        %1467 = vmatprep.subr.mxu0 0.0
        %1468 = vmatpush2.msra.mxu0 0.0
        %1469 = vmatprep.subr.mxu0 0.0
        %1470 = vmatpush2.msra.mxu0 0.0
        %1471 = vmatprep.subr.mxu0 0.0
        %1472 = vmatpush2.msra.mxu0 0.0
        %1473 = vmatprep.subr.mxu0 0.0
        %1474 = vmatpush2.msra.mxu0 0.0
        %1475 = vmatprep.subr.mxu0 0.0
        %1476 = vmatpush2.msra.mxu0 0.0
        %1477 = vmatprep.subr.mxu0 0.0
        %1478 = vmatpush2.msra.mxu0 0.0
        %1479 = vmatprep.subr.mxu0 0.0
        %1480 = vmatpush2.msra.mxu0 0.0
        %1481 = vmatprep.subr.mxu0 0.0
        %1482 = vmatpush2.msra.mxu0 0.0
        %1483 = vmatprep.subr.mxu0 0.0
        %1484 = vmatpush2.msra.mxu0 0.0
        %1485 = vmatprep.subr.mxu0 0.0
        %1486 = vmatpush2.msra.mxu0 0.0
        %1487 = vmatprep.subr.mxu0 0.0
        %1488 = vmatpush2.msra.mxu0 0.0
        %1489 = vmatprep.subr.mxu0 0.0
        %1490 = vmatpush2.msra.mxu0 0.0
        %1491 = vmatprep.subr.mxu0 0.0
        %1492 = vmatpush2.msra.mxu0 0.0
        %1493 = vmatprep.subr.mxu0 0.0
        %1494 = vmatpush2.msra.mxu0 0.0
        %1495 = vmatprep.subr.mxu0 0.0
        %1496 = vmatpush2.msra.mxu0 0.0
        %1497 = vmatprep.mubr.f32.mxu0 0.0
        %1498 = vmatmul.mubr.f32.gmra.mxu0 %v1431
        %v1499 = vpop.f32.mrf.mxu0
        %v1500 = vadd.f32 0.0, %v1499
        %v1501 = vpop.f32.mrf.mxu0
        %1502 = vdwg.mxu0
        %v1503 = vmul.f32 %v1281, %v727
        %v1504 = vmul.f32 %v1354, %v727
        %v1505 = vmul.f32 %v1427, %v727
        %v1506 = vmul.f32 %v1500, %v727
        %vm1507 = vcmask 1043456
        %v1508 = vsel %vm1507, %v1503, 0.0
        %v1509 = vrot.slane %v1508, 4
        %v1510 = vadd.f32 %v1508, %v1509
        %v1511 = vrot.slane %v1510, 2
        %v1512 = vadd.f32 %v1510, %v1511
        %v1513 = vrot.slane %v1512, 1
        %v1514 = vadd.f32 %v1512, %v1513
        %v1515 = vsel %vm1507, %v1504, 0.0
        %v1516 = vrot.slane %v1515, 4
        %v1517 = vadd.f32 %v1515, %v1516
        %v1518 = vrot.slane %v1517, 2
        %v1519 = vadd.f32 %v1517, %v1518
        %v1520 = vrot.slane %v1519, 1
        %v1521 = vadd.f32 %v1519, %v1520
        %v1522 = vsel %vm1507, %v1505, 0.0
        %v1523 = vrot.slane %v1522, 4
        %v1524 = vadd.f32 %v1522, %v1523
        %v1525 = vrot.slane %v1524, 2
        %v1526 = vadd.f32 %v1524, %v1525
        %v1527 = vrot.slane %v1526, 1
        %v1528 = vadd.f32 %v1526, %v1527
        %v1529 = vsel %vm1507, %v1506, 0.0
        %v1530 = vrot.slane %v1529, 4
        %v1531 = vadd.f32 %v1529, %v1530
        %v1532 = vrot.slane %v1531, 2
        %v1533 = vadd.f32 %v1531, %v1532
        %v1534 = vrot.slane %v1533, 1
        %v1535 = vadd.f32 %v1533, %v1534
        %v1536 = vmul.f32 %v944, %v1514
        %v1537 = vmul.f32 %v948, %v1521
        %v1538 = vmul.f32 %v954, %v1528
        %v1539 = vmul.f32 %v958, %v1535
        %v1540 = vpack.c.bf16 %v1537, %v1536
        %v1541 = vpack.c.bf16 %v1539, %v1538
        %v1542 = vld [vmem:[%s5] sm:$0xf]
        %v1543 = vld [vmem:[%s5 + $0x4] sm:$0xf]
        %v1544 = vld [vmem:[%s5 + $0x8] sm:$0xf]
        %v1545 = vld [vmem:[%s5 + $0xc] sm:$0xf]
        %v1546 = vld [vmem:[%s5 + $0x10] sm:$0xf]
        %v1547 = vld [vmem:[%s5 + $0x14] sm:$0xf]
        %v1548 = vld [vmem:[%s5 + $0x18] sm:$0xf]
        %v1549 = vld [vmem:[%s5 + $0x1c] sm:$0xf]
        %v1550 = vld [vmem:[%s5 + $0x20] sm:$0xf]
        %v1551 = vld [vmem:[%s5 + $0x24] sm:$0xf]
        %v1552 = vld [vmem:[%s5 + $0x28] sm:$0xf]
        %v1553 = vld [vmem:[%s5 + $0x2c] sm:$0xf]
        %v1554 = vld [vmem:[%s5 + $0x30] sm:$0xf]
        %v1555 = vld [vmem:[%s5 + $0x34] sm:$0xf]
        %v1556 = vld [vmem:[%s5 + $0x38] sm:$0xf]
        %v1557 = vld [vmem:[%s5 + $0x3c] sm:$0xf]
        %v1558 = vld [vmem:[%s6] sm:$0x1]
        %v1560 = vlaneseq
        %v1561 = vshrl.u32 %v1560, 7
        %v1562 = vsub.s32 0, %v1561
        %v1563 = vrot.slane %v1558, %v1562
        %v1581 = vunpack.c.l.b16 %v1542
        %v1582 = vunpack.c.l.b16 %v1543
        %v1583 = vunpack.c.l.b16 %v1544
        %v1584 = vunpack.c.l.b16 %v1545
        %v1585 = vunpack.c.l.b16 %v1546
        %v1586 = vunpack.c.l.b16 %v1547
        %v1587 = vunpack.c.l.b16 %v1548
        %v1588 = vunpack.c.l.b16 %v1549
        %v1589 = vunpack.c.l.b16 %v1550
        %v1590 = vunpack.c.l.b16 %v1551
        %v1591 = vunpack.c.l.b16 %v1552
        %v1592 = vunpack.c.l.b16 %v1553
        %v1593 = vunpack.c.l.b16 %v1554
        %v1594 = vunpack.c.l.b16 %v1555
        %v1595 = vunpack.c.l.b16 %v1556
        %v1596 = vunpack.c.l.b16 %v1557
        %v1597 = vpack.c.b16 %v1582, %v1581
        %v1598 = vpack.c.b16 %v1584, %v1583
        %v1599 = vpack.c.b16 %v1586, %v1585
        %v1600 = vpack.c.b16 %v1588, %v1587
        %v1601 = vpack.c.b16 %v1590, %v1589
        %v1602 = vpack.c.b16 %v1592, %v1591
        %v1603 = vpack.c.b16 %v1594, %v1593
        %v1604 = vpack.c.b16 %v1596, %v1595
        %1613 = vmatprep.subr.bf16.mxu0 0
        %1614 = vmatpush1.bf16.msra.mxu0 %v1604
        %1615 = vmatprep.subr.bf16.mxu0 0
        %1616 = vmatpush1.bf16.msra.mxu0 %v1603
        %1617 = vmatprep.subr.bf16.mxu0 0
        %1618 = vmatpush1.bf16.msra.mxu0 %v1602
        %1619 = vmatprep.subr.bf16.mxu0 0
        %1620 = vmatpush1.bf16.msra.mxu0 %v1601
        %1621 = vmatprep.subr.bf16.mxu0 0
        %1622 = vmatpush1.bf16.msra.mxu0 %v1600
        %1623 = vmatprep.subr.bf16.mxu0 0
        %1624 = vmatpush1.bf16.msra.mxu0 %v1599
        %1625 = vmatprep.subr.bf16.mxu0 0
        %1626 = vmatpush1.bf16.msra.mxu0 %v1598
        %1627 = vmatprep.subr.bf16.mxu0 0
        %1628 = vmatpush1.bf16.msra.mxu0 %v1597
        %1629 = vmatprep.subr.bf16.mxu0 0
        %1630 = vmatpush2.bf16.msra.mxu0 0
        %1631 = vmatprep.subr.bf16.mxu0 0
        %1632 = vmatpush2.bf16.msra.mxu0 0
        %1633 = vmatprep.subr.bf16.mxu0 0
        %1634 = vmatpush2.bf16.msra.mxu0 0
        %1635 = vmatprep.subr.bf16.mxu0 0
        %1636 = vmatpush2.bf16.msra.mxu0 0
        %1637 = vmatprep.subr.bf16.mxu0 0
        %1638 = vmatpush2.bf16.msra.mxu0 0
        %1639 = vmatprep.subr.bf16.mxu0 0
        %1640 = vmatpush2.bf16.msra.mxu0 0
        %1641 = vmatprep.subr.bf16.mxu0 0
        %1642 = vmatpush2.bf16.msra.mxu0 0
        %1643 = vmatprep.subr.bf16.mxu0 0
        %1644 = vmatpush2.bf16.msra.mxu0 0
        %1645 = vmatprep.mubr.bf16.mxu0 0
        %1646 = vmatmul.mubr.bf16.gmra.mxu0 %v1540
        %v1647 = vpop.f32.mrf.mxu0
        %v1648 = vadd.f32 %v1563, %v1647
        %v1649 = vpop.f32.mrf.mxu0
        %v1650 = vpop.f32.mrf.mxu0
        %v1651 = vadd.f32 %v1563, %v1650
        %v1652 = vpop.f32.mrf.mxu0
        %1653 = vmatprep.mubr.bf16.mxu0 0
        %1654 = vmatmul.mubr.bf16.gmra.mxu0 %v1541
        %v1655 = vpop.f32.mrf.mxu0
        %v1656 = vadd.f32 %v1563, %v1655
        %v1657 = vpop.f32.mrf.mxu0
        %v1658 = vpop.f32.mrf.mxu0
        %v1659 = vadd.f32 %v1563, %v1658
        %v1660 = vpop.f32.mrf.mxu0
        %1661 = vdwg.mxu0
        %1662 = vxpose.xlu0.b32.start [1/16] %v1648, 128
        %1663 = vxpose.xlu0.b32.cont [2/16] 0.0, 128
        %1664 = vxpose.xlu0.b32.cont [3/16] 0.0, 128
        %1665 = vxpose.xlu0.b32.cont [4/16] 0.0, 128
        %1666 = vxpose.xlu0.b32.cont [5/16] 0.0, 128
        %1667 = vxpose.xlu0.b32.cont [6/16] 0.0, 128
        %1668 = vxpose.xlu0.b32.cont [7/16] 0.0, 128
        %1669 = vxpose.xlu0.b32.cont [8/16] 0.0, 128
        %1670 = vxpose.xlu0.b32.cont [9/16] 0.0, 128
        %1671 = vxpose.xlu0.b32.cont [10/16] 0.0, 128
        %1672 = vxpose.xlu0.b32.cont [11/16] 0.0, 128
        %1673 = vxpose.xlu0.b32.cont [12/16] 0.0, 128
        %1674 = vxpose.xlu0.b32.cont [13/16] 0.0, 128
        %1675 = vxpose.xlu0.b32.cont [14/16] 0.0, 128
        %1676 = vxpose.xlu0.b32.cont [15/16] 0.0, 128
        %1677 = vxpose.xlu0.b32.end [16/16] 0.0, 128
        %v1678 = vpop.trf.xlu0
        %v1679 = vpop.trf.xlu0
        %v1680 = vpop.trf.xlu0
        %v1681 = vpop.trf.xlu0
        %v1682 = vpop.trf.xlu0
        %v1683 = vpop.trf.xlu0
        %v1684 = vpop.trf.xlu0
        %v1685 = vpop.trf.xlu0
        %v1686 = vpop.trf.xlu0
        %v1687 = vpop.trf.xlu0
        %v1688 = vpop.trf.xlu0
        %v1689 = vpop.trf.xlu0
        %v1690 = vpop.trf.xlu0
        %v1691 = vpop.trf.xlu0
        %v1692 = vpop.trf.xlu0
        %v1693 = vpop.trf.xlu0
        %1694 = vxpose.xlu0.b32.start [1/16] %v1651, 128
        %1695 = vxpose.xlu0.b32.cont [2/16] 0.0, 128
        %1696 = vxpose.xlu0.b32.cont [3/16] 0.0, 128
        %1697 = vxpose.xlu0.b32.cont [4/16] 0.0, 128
        %1698 = vxpose.xlu0.b32.cont [5/16] 0.0, 128
        %1699 = vxpose.xlu0.b32.cont [6/16] 0.0, 128
        %1700 = vxpose.xlu0.b32.cont [7/16] 0.0, 128
        %1701 = vxpose.xlu0.b32.cont [8/16] 0.0, 128
        %1702 = vxpose.xlu0.b32.cont [9/16] 0.0, 128
        %1703 = vxpose.xlu0.b32.cont [10/16] 0.0, 128
        %1704 = vxpose.xlu0.b32.cont [11/16] 0.0, 128
        %1705 = vxpose.xlu0.b32.cont [12/16] 0.0, 128
        %1706 = vxpose.xlu0.b32.cont [13/16] 0.0, 128
        %1707 = vxpose.xlu0.b32.cont [14/16] 0.0, 128
        %1708 = vxpose.xlu0.b32.cont [15/16] 0.0, 128
        %1709 = vxpose.xlu0.b32.end [16/16] 0.0, 128
        %v1710 = vpop.trf.xlu0
        %v1711 = vpop.trf.xlu0
        %v1712 = vpop.trf.xlu0
        %v1713 = vpop.trf.xlu0
        %v1714 = vpop.trf.xlu0
        %v1715 = vpop.trf.xlu0
        %v1716 = vpop.trf.xlu0
        %v1717 = vpop.trf.xlu0
        %v1718 = vpop.trf.xlu0
        %v1719 = vpop.trf.xlu0
        %v1720 = vpop.trf.xlu0
        %v1721 = vpop.trf.xlu0
        %v1722 = vpop.trf.xlu0
        %v1723 = vpop.trf.xlu0
        %v1724 = vpop.trf.xlu0
        %v1725 = vpop.trf.xlu0
        %1726 = vxpose.xlu0.b32.start [1/16] %v1656, 128
        %1727 = vxpose.xlu0.b32.cont [2/16] 0.0, 128
        %1728 = vxpose.xlu0.b32.cont [3/16] 0.0, 128
        %1729 = vxpose.xlu0.b32.cont [4/16] 0.0, 128
        %1730 = vxpose.xlu0.b32.cont [5/16] 0.0, 128
        %1731 = vxpose.xlu0.b32.cont [6/16] 0.0, 128
        %1732 = vxpose.xlu0.b32.cont [7/16] 0.0, 128
        %1733 = vxpose.xlu0.b32.cont [8/16] 0.0, 128
        %1734 = vxpose.xlu0.b32.cont [9/16] 0.0, 128
        %1735 = vxpose.xlu0.b32.cont [10/16] 0.0, 128
        %1736 = vxpose.xlu0.b32.cont [11/16] 0.0, 128
        %1737 = vxpose.xlu0.b32.cont [12/16] 0.0, 128
        %1738 = vxpose.xlu0.b32.cont [13/16] 0.0, 128
        %1739 = vxpose.xlu0.b32.cont [14/16] 0.0, 128
        %1740 = vxpose.xlu0.b32.cont [15/16] 0.0, 128
        %1741 = vxpose.xlu0.b32.end [16/16] 0.0, 128
        %v1742 = vpop.trf.xlu0
        %v1743 = vpop.trf.xlu0
        %v1744 = vpop.trf.xlu0
        %v1745 = vpop.trf.xlu0
        %v1746 = vpop.trf.xlu0
        %v1747 = vpop.trf.xlu0
        %v1748 = vpop.trf.xlu0
        %v1749 = vpop.trf.xlu0
        %v1750 = vpop.trf.xlu0
        %v1751 = vpop.trf.xlu0
        %v1752 = vpop.trf.xlu0
        %v1753 = vpop.trf.xlu0
        %v1754 = vpop.trf.xlu0
        %v1755 = vpop.trf.xlu0
        %v1756 = vpop.trf.xlu0
        %v1757 = vpop.trf.xlu0
        %1758 = vxpose.xlu0.b32.start [1/16] %v1659, 128
        %1759 = vxpose.xlu0.b32.cont [2/16] 0.0, 128
        %1760 = vxpose.xlu0.b32.cont [3/16] 0.0, 128
        %1761 = vxpose.xlu0.b32.cont [4/16] 0.0, 128
        %1762 = vxpose.xlu0.b32.cont [5/16] 0.0, 128
        %1763 = vxpose.xlu0.b32.cont [6/16] 0.0, 128
        %1764 = vxpose.xlu0.b32.cont [7/16] 0.0, 128
        %1765 = vxpose.xlu0.b32.cont [8/16] 0.0, 128
        %1766 = vxpose.xlu0.b32.cont [9/16] 0.0, 128
        %1767 = vxpose.xlu0.b32.cont [10/16] 0.0, 128
        %1768 = vxpose.xlu0.b32.cont [11/16] 0.0, 128
        %1769 = vxpose.xlu0.b32.cont [12/16] 0.0, 128
        %1770 = vxpose.xlu0.b32.cont [13/16] 0.0, 128
        %1771 = vxpose.xlu0.b32.cont [14/16] 0.0, 128
        %1772 = vxpose.xlu0.b32.cont [15/16] 0.0, 128
        %1773 = vxpose.xlu0.b32.end [16/16] 0.0, 128
        %v1774 = vpop.trf.xlu0
        %v1775 = vpop.trf.xlu0
        %v1776 = vpop.trf.xlu0
        %v1777 = vpop.trf.xlu0
        %v1778 = vpop.trf.xlu0
        %v1779 = vpop.trf.xlu0
        %v1780 = vpop.trf.xlu0
        %v1781 = vpop.trf.xlu0
        %v1782 = vpop.trf.xlu0
        %v1783 = vpop.trf.xlu0
        %v1784 = vpop.trf.xlu0
        %v1785 = vpop.trf.xlu0
        %v1786 = vpop.trf.xlu0
        %v1787 = vpop.trf.xlu0
        %v1788 = vpop.trf.xlu0
        %v1789 = vpop.trf.xlu0
        %v1790 = vadd.f32 %v1678, %v1144
        %v1791 = vadd.f32 %v1710, %v1148
        %v1792 = vadd.f32 %v1742, %v1152
        %v1793 = vadd.f32 %v1774, %v1156
        %v1794 = vsel %vm1165, %v1790, -inf
        %1795 = vmax.xlane.f32.xlu0 %v1794
        %v1796 = vpop.xlane.xlu0 %1795
        %v1797 = vsel %vm1165, %v1791, -inf
        %1798 = vmax.xlane.f32.xlu0 %v1797
        %v1799 = vpop.xlane.xlu0 %1798
        %v1800 = vsel %vm1165, %v1792, -inf
        %1801 = vmax.xlane.f32.xlu0 %v1800
        %v1802 = vpop.xlane.xlu0 %1801
        %v1803 = vsel %vm1165, %v1793, -inf
        %1804 = vmax.xlane.f32.xlu0 %v1803
        %v1805 = vpop.xlane.xlu0 %1804
        %v1806 = vsub.f32 %v1790, %v1796
        %v1807 = vsub.f32 %v1791, %v1799
        %v1808 = vsub.f32 %v1792, %v1802
        %v1809 = vsub.f32 %v1793, %v1805
        %v1810 = vmul.f32 %v1806, 1.442695
        %v1811 = vpow.pop %v1810
        %v1812 = vmul.f32 %v1807, 1.442695
        %v1813 = vpow.pop %v1812
        %v1814 = vmul.f32 %v1808, 1.442695
        %v1815 = vpow.pop %v1814
        %v1816 = vmul.f32 %v1809, 1.442695
        %v1817 = vpow.pop %v1816
        %v1818 = vsel %vm1165, %v1811, 0.0
        %1819 = vadd.xlane.f32.xlu0 %v1818
        %v1820 = vpop.xlane.xlu0 %1819
        %v1821 = vsel %vm1165, %v1813, 0.0
        %1822 = vadd.xlane.f32.xlu0 %v1821
        %v1823 = vpop.xlane.xlu0 %1822
        %v1824 = vsel %vm1165, %v1815, 0.0
        %1825 = vadd.xlane.f32.xlu0 %v1824
        %v1826 = vpop.xlane.xlu0 %1825
        %v1827 = vsel %vm1165, %v1817, 0.0
        %1828 = vadd.xlane.f32.xlu0 %v1827
        %v1829 = vpop.xlane.xlu0 %1828
        %v1830 = vrcp.pop %v1820
        %v1831 = vrcp.pop %v1823
        %v1832 = vrcp.pop %v1826
        %v1833 = vrcp.pop %v1829
        %v1834 = vmul.f32 %v1811, %v1830
        %v1835 = vmul.f32 %v1813, %v1831
        %v1836 = vmul.f32 %v1815, %v1832
        %v1837 = vmul.f32 %v1817, %v1833
        %v1839 = vsel %vm1210, %v1834, 0
        %1841 = vmatprep.subr.mxu0 0.0
        %1842 = vmatpush1.msra.mxu0 0.0
        %1843 = vmatprep.subr.mxu0 0.0
        %1844 = vmatpush1.msra.mxu0 0.0
        %1845 = vmatprep.subr.mxu0 0.0
        %1846 = vmatpush1.msra.mxu0 0.0
        %1847 = vmatprep.subr.mxu0 0.0
        %1848 = vmatpush1.msra.mxu0 0.0
        %1849 = vmatprep.subr.mxu0 0.0
        %1850 = vmatpush1.msra.mxu0 0.0
        %1851 = vmatprep.subr.mxu0 0.0
        %1852 = vmatpush1.msra.mxu0 0.0
        %1853 = vmatprep.subr.mxu0 0.0
        %1854 = vmatpush1.msra.mxu0 0.0
        %1855 = vmatprep.subr.mxu0 0.0
        %1856 = vmatpush1.msra.mxu0 0.0
        %1857 = vmatprep.subr.mxu0 0.0
        %1858 = vmatpush1.msra.mxu0 0.0
        %1859 = vmatprep.subr.mxu0 0.0
        %1860 = vmatpush1.msra.mxu0 0.0
        %1861 = vmatprep.subr.mxu0 0.0
        %1862 = vmatpush1.msra.mxu0 0.0
        %1863 = vmatprep.subr.mxu0 0.0
        %1864 = vmatpush1.msra.mxu0 0.0
        %1865 = vmatprep.subr.mxu0 0.0
        %1866 = vmatpush1.msra.mxu0 0.0
        %1867 = vmatprep.subr.mxu0 0.0
        %1868 = vmatpush1.msra.mxu0 0.0
        %1869 = vmatprep.subr.mxu0 0.0
        %1870 = vmatpush1.msra.mxu0 0.0
        %1871 = vmatprep.subr.mxu0 0.0
        %1872 = vmatpush1.msra.mxu0 %v1536
        %1873 = vmatprep.subr.mxu0 0.0
        %1874 = vmatpush2.msra.mxu0 0.0
        %1875 = vmatprep.subr.mxu0 0.0
        %1876 = vmatpush2.msra.mxu0 0.0
        %1877 = vmatprep.subr.mxu0 0.0
        %1878 = vmatpush2.msra.mxu0 0.0
        %1879 = vmatprep.subr.mxu0 0.0
        %1880 = vmatpush2.msra.mxu0 0.0
        %1881 = vmatprep.subr.mxu0 0.0
        %1882 = vmatpush2.msra.mxu0 0.0
        %1883 = vmatprep.subr.mxu0 0.0
        %1884 = vmatpush2.msra.mxu0 0.0
        %1885 = vmatprep.subr.mxu0 0.0
        %1886 = vmatpush2.msra.mxu0 0.0
        %1887 = vmatprep.subr.mxu0 0.0
        %1888 = vmatpush2.msra.mxu0 0.0
        %1889 = vmatprep.subr.mxu0 0.0
        %1890 = vmatpush2.msra.mxu0 0.0
        %1891 = vmatprep.subr.mxu0 0.0
        %1892 = vmatpush2.msra.mxu0 0.0
        %1893 = vmatprep.subr.mxu0 0.0
        %1894 = vmatpush2.msra.mxu0 0.0
        %1895 = vmatprep.subr.mxu0 0.0
        %1896 = vmatpush2.msra.mxu0 0.0
        %1897 = vmatprep.subr.mxu0 0.0
        %1898 = vmatpush2.msra.mxu0 0.0
        %1899 = vmatprep.subr.mxu0 0.0
        %1900 = vmatpush2.msra.mxu0 0.0
        %1901 = vmatprep.subr.mxu0 0.0
        %1902 = vmatpush2.msra.mxu0 0.0
        %1903 = vmatprep.subr.mxu0 0.0
        %1904 = vmatpush2.msra.mxu0 0.0
        %1905 = vmatprep.mubr.f32.mxu0 0.0
        %1906 = vmatmul.mubr.f32.gmra.mxu0 %v1839
        %v1907 = vpop.f32.mrf.mxu0
        %v1908 = vadd.f32 0.0, %v1907
        %v1909 = vpop.f32.mrf.mxu0
        %1910 = vdwg.mxu0
        %v1912 = vsel %vm1210, %v1835, 0
        %1914 = vmatprep.subr.mxu0 0.0
        %1915 = vmatpush1.msra.mxu0 0.0
        %1916 = vmatprep.subr.mxu0 0.0
        %1917 = vmatpush1.msra.mxu0 0.0
        %1918 = vmatprep.subr.mxu0 0.0
        %1919 = vmatpush1.msra.mxu0 0.0
        %1920 = vmatprep.subr.mxu0 0.0
        %1921 = vmatpush1.msra.mxu0 0.0
        %1922 = vmatprep.subr.mxu0 0.0
        %1923 = vmatpush1.msra.mxu0 0.0
        %1924 = vmatprep.subr.mxu0 0.0
        %1925 = vmatpush1.msra.mxu0 0.0
        %1926 = vmatprep.subr.mxu0 0.0
        %1927 = vmatpush1.msra.mxu0 0.0
        %1928 = vmatprep.subr.mxu0 0.0
        %1929 = vmatpush1.msra.mxu0 0.0
        %1930 = vmatprep.subr.mxu0 0.0
        %1931 = vmatpush1.msra.mxu0 0.0
        %1932 = vmatprep.subr.mxu0 0.0
        %1933 = vmatpush1.msra.mxu0 0.0
        %1934 = vmatprep.subr.mxu0 0.0
        %1935 = vmatpush1.msra.mxu0 0.0
        %1936 = vmatprep.subr.mxu0 0.0
        %1937 = vmatpush1.msra.mxu0 0.0
        %1938 = vmatprep.subr.mxu0 0.0
        %1939 = vmatpush1.msra.mxu0 0.0
        %1940 = vmatprep.subr.mxu0 0.0
        %1941 = vmatpush1.msra.mxu0 0.0
        %1942 = vmatprep.subr.mxu0 0.0
        %1943 = vmatpush1.msra.mxu0 0.0
        %1944 = vmatprep.subr.mxu0 0.0
        %1945 = vmatpush1.msra.mxu0 %v1537
        %1946 = vmatprep.subr.mxu0 0.0
        %1947 = vmatpush2.msra.mxu0 0.0
        %1948 = vmatprep.subr.mxu0 0.0
        %1949 = vmatpush2.msra.mxu0 0.0
        %1950 = vmatprep.subr.mxu0 0.0
        %1951 = vmatpush2.msra.mxu0 0.0
        %1952 = vmatprep.subr.mxu0 0.0
        %1953 = vmatpush2.msra.mxu0 0.0
        %1954 = vmatprep.subr.mxu0 0.0
        %1955 = vmatpush2.msra.mxu0 0.0
        %1956 = vmatprep.subr.mxu0 0.0
        %1957 = vmatpush2.msra.mxu0 0.0
        %1958 = vmatprep.subr.mxu0 0.0
        %1959 = vmatpush2.msra.mxu0 0.0
        %1960 = vmatprep.subr.mxu0 0.0
        %1961 = vmatpush2.msra.mxu0 0.0
        %1962 = vmatprep.subr.mxu0 0.0
        %1963 = vmatpush2.msra.mxu0 0.0
        %1964 = vmatprep.subr.mxu0 0.0
        %1965 = vmatpush2.msra.mxu0 0.0
        %1966 = vmatprep.subr.mxu0 0.0
        %1967 = vmatpush2.msra.mxu0 0.0
        %1968 = vmatprep.subr.mxu0 0.0
        %1969 = vmatpush2.msra.mxu0 0.0
        %1970 = vmatprep.subr.mxu0 0.0
        %1971 = vmatpush2.msra.mxu0 0.0
        %1972 = vmatprep.subr.mxu0 0.0
        %1973 = vmatpush2.msra.mxu0 0.0
        %1974 = vmatprep.subr.mxu0 0.0
        %1975 = vmatpush2.msra.mxu0 0.0
        %1976 = vmatprep.subr.mxu0 0.0
        %1977 = vmatpush2.msra.mxu0 0.0
        %1978 = vmatprep.mubr.f32.mxu0 0.0
        %1979 = vmatmul.mubr.f32.gmra.mxu0 %v1912
        %v1980 = vpop.f32.mrf.mxu0
        %v1981 = vadd.f32 0.0, %v1980
        %v1982 = vpop.f32.mrf.mxu0
        %1983 = vdwg.mxu0
        %v1985 = vsel %vm1210, %v1836, 0
        %1987 = vmatprep.subr.mxu0 0.0
        %1988 = vmatpush1.msra.mxu0 0.0
        %1989 = vmatprep.subr.mxu0 0.0
        %1990 = vmatpush1.msra.mxu0 0.0
        %1991 = vmatprep.subr.mxu0 0.0
        %1992 = vmatpush1.msra.mxu0 0.0
        %1993 = vmatprep.subr.mxu0 0.0
        %1994 = vmatpush1.msra.mxu0 0.0
        %1995 = vmatprep.subr.mxu0 0.0
        %1996 = vmatpush1.msra.mxu0 0.0
        %1997 = vmatprep.subr.mxu0 0.0
        %1998 = vmatpush1.msra.mxu0 0.0
        %1999 = vmatprep.subr.mxu0 0.0
        %2000 = vmatpush1.msra.mxu0 0.0
        %2001 = vmatprep.subr.mxu0 0.0
        %2002 = vmatpush1.msra.mxu0 0.0
        %2003 = vmatprep.subr.mxu0 0.0
        %2004 = vmatpush1.msra.mxu0 0.0
        %2005 = vmatprep.subr.mxu0 0.0
        %2006 = vmatpush1.msra.mxu0 0.0
        %2007 = vmatprep.subr.mxu0 0.0
        %2008 = vmatpush1.msra.mxu0 0.0
        %2009 = vmatprep.subr.mxu0 0.0
        %2010 = vmatpush1.msra.mxu0 0.0
        %2011 = vmatprep.subr.mxu0 0.0
        %2012 = vmatpush1.msra.mxu0 0.0
        %2013 = vmatprep.subr.mxu0 0.0
        %2014 = vmatpush1.msra.mxu0 0.0
        %2015 = vmatprep.subr.mxu0 0.0
        %2016 = vmatpush1.msra.mxu0 0.0
        %2017 = vmatprep.subr.mxu0 0.0
        %2018 = vmatpush1.msra.mxu0 %v1538
        %2019 = vmatprep.subr.mxu0 0.0
        %2020 = vmatpush2.msra.mxu0 0.0
        %2021 = vmatprep.subr.mxu0 0.0
        %2022 = vmatpush2.msra.mxu0 0.0
        %2023 = vmatprep.subr.mxu0 0.0
        %2024 = vmatpush2.msra.mxu0 0.0
        %2025 = vmatprep.subr.mxu0 0.0
        %2026 = vmatpush2.msra.mxu0 0.0
        %2027 = vmatprep.subr.mxu0 0.0
        %2028 = vmatpush2.msra.mxu0 0.0
        %2029 = vmatprep.subr.mxu0 0.0
        %2030 = vmatpush2.msra.mxu0 0.0
        %2031 = vmatprep.subr.mxu0 0.0
        %2032 = vmatpush2.msra.mxu0 0.0
        %2033 = vmatprep.subr.mxu0 0.0
        %2034 = vmatpush2.msra.mxu0 0.0
        %2035 = vmatprep.subr.mxu0 0.0
        %2036 = vmatpush2.msra.mxu0 0.0
        %2037 = vmatprep.subr.mxu0 0.0
        %2038 = vmatpush2.msra.mxu0 0.0
        %2039 = vmatprep.subr.mxu0 0.0
        %2040 = vmatpush2.msra.mxu0 0.0
        %2041 = vmatprep.subr.mxu0 0.0
        %2042 = vmatpush2.msra.mxu0 0.0
        %2043 = vmatprep.subr.mxu0 0.0
        %2044 = vmatpush2.msra.mxu0 0.0
        %2045 = vmatprep.subr.mxu0 0.0
        %2046 = vmatpush2.msra.mxu0 0.0
        %2047 = vmatprep.subr.mxu0 0.0
        %2048 = vmatpush2.msra.mxu0 0.0
        %2049 = vmatprep.subr.mxu0 0.0
        %2050 = vmatpush2.msra.mxu0 0.0
        %2051 = vmatprep.mubr.f32.mxu0 0.0
        %2052 = vmatmul.mubr.f32.gmra.mxu0 %v1985
        %v2053 = vpop.f32.mrf.mxu0
        %v2054 = vadd.f32 0.0, %v2053
        %v2055 = vpop.f32.mrf.mxu0
        %2056 = vdwg.mxu0
        %v2058 = vsel %vm1210, %v1837, 0
        %2060 = vmatprep.subr.mxu0 0.0
        %2061 = vmatpush1.msra.mxu0 0.0
        %2062 = vmatprep.subr.mxu0 0.0
        %2063 = vmatpush1.msra.mxu0 0.0
        %2064 = vmatprep.subr.mxu0 0.0
        %2065 = vmatpush1.msra.mxu0 0.0
        %2066 = vmatprep.subr.mxu0 0.0
        %2067 = vmatpush1.msra.mxu0 0.0
        %2068 = vmatprep.subr.mxu0 0.0
        %2069 = vmatpush1.msra.mxu0 0.0
        %2070 = vmatprep.subr.mxu0 0.0
        %2071 = vmatpush1.msra.mxu0 0.0
        %2072 = vmatprep.subr.mxu0 0.0
        %2073 = vmatpush1.msra.mxu0 0.0
        %2074 = vmatprep.subr.mxu0 0.0
        %2075 = vmatpush1.msra.mxu0 0.0
        %2076 = vmatprep.subr.mxu0 0.0
        %2077 = vmatpush1.msra.mxu0 0.0
        %2078 = vmatprep.subr.mxu0 0.0
        %2079 = vmatpush1.msra.mxu0 0.0
        %2080 = vmatprep.subr.mxu0 0.0
        %2081 = vmatpush1.msra.mxu0 0.0
        %2082 = vmatprep.subr.mxu0 0.0
        %2083 = vmatpush1.msra.mxu0 0.0
        %2084 = vmatprep.subr.mxu0 0.0
        %2085 = vmatpush1.msra.mxu0 0.0
        %2086 = vmatprep.subr.mxu0 0.0
        %2087 = vmatpush1.msra.mxu0 0.0
        %2088 = vmatprep.subr.mxu0 0.0
        %2089 = vmatpush1.msra.mxu0 0.0
        %2090 = vmatprep.subr.mxu0 0.0
        %2091 = vmatpush1.msra.mxu0 %v1539
        %2092 = vmatprep.subr.mxu0 0.0
        %2093 = vmatpush2.msra.mxu0 0.0
        %2094 = vmatprep.subr.mxu0 0.0
        %2095 = vmatpush2.msra.mxu0 0.0
        %2096 = vmatprep.subr.mxu0 0.0
        %2097 = vmatpush2.msra.mxu0 0.0
        %2098 = vmatprep.subr.mxu0 0.0
        %2099 = vmatpush2.msra.mxu0 0.0
        %2100 = vmatprep.subr.mxu0 0.0
        %2101 = vmatpush2.msra.mxu0 0.0
        %2102 = vmatprep.subr.mxu0 0.0
        %2103 = vmatpush2.msra.mxu0 0.0
        %2104 = vmatprep.subr.mxu0 0.0
        %2105 = vmatpush2.msra.mxu0 0.0
        %2106 = vmatprep.subr.mxu0 0.0
        %2107 = vmatpush2.msra.mxu0 0.0
        %2108 = vmatprep.subr.mxu0 0.0
        %2109 = vmatpush2.msra.mxu0 0.0
        %2110 = vmatprep.subr.mxu0 0.0
        %2111 = vmatpush2.msra.mxu0 0.0
        %2112 = vmatprep.subr.mxu0 0.0
        %2113 = vmatpush2.msra.mxu0 0.0
        %2114 = vmatprep.subr.mxu0 0.0
        %2115 = vmatpush2.msra.mxu0 0.0
        %2116 = vmatprep.subr.mxu0 0.0
        %2117 = vmatpush2.msra.mxu0 0.0
        %2118 = vmatprep.subr.mxu0 0.0
        %2119 = vmatpush2.msra.mxu0 0.0
        %2120 = vmatprep.subr.mxu0 0.0
        %2121 = vmatpush2.msra.mxu0 0.0
        %2122 = vmatprep.subr.mxu0 0.0
        %2123 = vmatpush2.msra.mxu0 0.0
        %2124 = vmatprep.mubr.f32.mxu0 0.0
        %2125 = vmatmul.mubr.f32.gmra.mxu0 %v2058
        %v2126 = vpop.f32.mrf.mxu0
        %v2127 = vadd.f32 0.0, %v2126
        %v2128 = vpop.f32.mrf.mxu0
        %2129 = vdwg.mxu0
        %v2130 = vmul.f32 %v1908, %v727
        %v2131 = vmul.f32 %v1981, %v727
        %v2132 = vmul.f32 %v2054, %v727
        %v2133 = vmul.f32 %v2127, %v727
        %v2134 = vsel %vm1507, %v2130, 0.0
        %v2135 = vrot.slane %v2134, 4
        %v2136 = vadd.f32 %v2134, %v2135
        %v2137 = vrot.slane %v2136, 2
        %v2138 = vadd.f32 %v2136, %v2137
        %v2139 = vrot.slane %v2138, 1
        %v2140 = vadd.f32 %v2138, %v2139
        %v2141 = vsel %vm1507, %v2131, 0.0
        %v2142 = vrot.slane %v2141, 4
        %v2143 = vadd.f32 %v2141, %v2142
        %v2144 = vrot.slane %v2143, 2
        %v2145 = vadd.f32 %v2143, %v2144
        %v2146 = vrot.slane %v2145, 1
        %v2147 = vadd.f32 %v2145, %v2146
        %v2148 = vsel %vm1507, %v2132, 0.0
        %v2149 = vrot.slane %v2148, 4
        %v2150 = vadd.f32 %v2148, %v2149
        %v2151 = vrot.slane %v2150, 2
        %v2152 = vadd.f32 %v2150, %v2151
        %v2153 = vrot.slane %v2152, 1
        %v2154 = vadd.f32 %v2152, %v2153
        %v2155 = vsel %vm1507, %v2133, 0.0
        %v2156 = vrot.slane %v2155, 4
        %v2157 = vadd.f32 %v2155, %v2156
        %v2158 = vrot.slane %v2157, 2
        %v2159 = vadd.f32 %v2157, %v2158
        %v2160 = vrot.slane %v2159, 1
        %v2161 = vadd.f32 %v2159, %v2160
        %v2162 = vmul.f32 %v942, %v2140
        %v2163 = vmul.f32 %v946, %v2147
        %v2164 = vmul.f32 %v952, %v2154
        %v2165 = vmul.f32 %v956, %v2161
        %v2166 = vpack.c.bf16 %v2163, %v2162
        %v2167 = vpack.c.bf16 %v2165, %v2164
        %v2168 = vld [vmem:[#allocation7] sm:$0xf]
        %v2169 = vld [vmem:[#allocation7 + $0x4] sm:$0xf]
        %v2170 = vld [vmem:[#allocation7 + $0x8] sm:$0xf]
        %v2171 = vld [vmem:[#allocation7 + $0xc] sm:$0xf]
        %v2172 = vld [vmem:[#allocation7 + $0x10] sm:$0xf]
        %v2173 = vld [vmem:[#allocation7 + $0x14] sm:$0xf]
        %v2174 = vld [vmem:[#allocation7 + $0x18] sm:$0xf]
        %v2175 = vld [vmem:[#allocation7 + $0x1c] sm:$0xf]
        %v2176 = vld [vmem:[#allocation7 + $0x20] sm:$0xf]
        %v2177 = vld [vmem:[#allocation7 + $0x24] sm:$0xf]
        %v2178 = vld [vmem:[#allocation7 + $0x28] sm:$0xf]
        %v2179 = vld [vmem:[#allocation7 + $0x2c] sm:$0xf]
        %v2180 = vld [vmem:[#allocation7 + $0x30] sm:$0xf]
        %v2181 = vld [vmem:[#allocation7 + $0x34] sm:$0xf]
        %v2182 = vld [vmem:[#allocation7 + $0x38] sm:$0xf]
        %v2183 = vld [vmem:[#allocation7 + $0x3c] sm:$0xf]
        %v2184 = vld [vmem:[%s8] sm:$0x1]
        %v2186 = vlaneseq
        %v2187 = vshrl.u32 %v2186, 7
        %v2188 = vsub.s32 0, %v2187
        %v2189 = vrot.slane %v2184, %v2188
        %v2207 = vunpack.c.l.b16 %v2168
        %v2208 = vunpack.c.l.b16 %v2169
        %v2209 = vunpack.c.l.b16 %v2170
        %v2210 = vunpack.c.l.b16 %v2171
        %v2211 = vunpack.c.l.b16 %v2172
        %v2212 = vunpack.c.l.b16 %v2173
        %v2213 = vunpack.c.l.b16 %v2174
        %v2214 = vunpack.c.l.b16 %v2175
        %v2215 = vunpack.c.l.b16 %v2176
        %v2216 = vunpack.c.l.b16 %v2177
        %v2217 = vunpack.c.l.b16 %v2178
        %v2218 = vunpack.c.l.b16 %v2179
        %v2219 = vunpack.c.l.b16 %v2180
        %v2220 = vunpack.c.l.b16 %v2181
        %v2221 = vunpack.c.l.b16 %v2182
        %v2222 = vunpack.c.l.b16 %v2183
        %v2223 = vpack.c.b16 %v2208, %v2207
        %v2224 = vpack.c.b16 %v2210, %v2209
        %v2225 = vpack.c.b16 %v2212, %v2211
        %v2226 = vpack.c.b16 %v2214, %v2213
        %v2227 = vpack.c.b16 %v2216, %v2215
        %v2228 = vpack.c.b16 %v2218, %v2217
        %v2229 = vpack.c.b16 %v2220, %v2219
        %v2230 = vpack.c.b16 %v2222, %v2221
        %2239 = vmatprep.subr.bf16.mxu0 0
        %2240 = vmatpush1.bf16.msra.mxu0 %v2230
        %2241 = vmatprep.subr.bf16.mxu0 0
        %2242 = vmatpush1.bf16.msra.mxu0 %v2229
        %2243 = vmatprep.subr.bf16.mxu0 0
        %2244 = vmatpush1.bf16.msra.mxu0 %v2228
        %2245 = vmatprep.subr.bf16.mxu0 0
        %2246 = vmatpush1.bf16.msra.mxu0 %v2227
        %2247 = vmatprep.subr.bf16.mxu0 0
        %2248 = vmatpush1.bf16.msra.mxu0 %v2226
        %2249 = vmatprep.subr.bf16.mxu0 0
        %2250 = vmatpush1.bf16.msra.mxu0 %v2225
        %2251 = vmatprep.subr.bf16.mxu0 0
        %2252 = vmatpush1.bf16.msra.mxu0 %v2224
        %2253 = vmatprep.subr.bf16.mxu0 0
        %2254 = vmatpush1.bf16.msra.mxu0 %v2223
        %2255 = vmatprep.subr.bf16.mxu0 0
        %2256 = vmatpush2.bf16.msra.mxu0 0
        %2257 = vmatprep.subr.bf16.mxu0 0
        %2258 = vmatpush2.bf16.msra.mxu0 0
        %2259 = vmatprep.subr.bf16.mxu0 0
        %2260 = vmatpush2.bf16.msra.mxu0 0
        %2261 = vmatprep.subr.bf16.mxu0 0
        %2262 = vmatpush2.bf16.msra.mxu0 0
        %2263 = vmatprep.subr.bf16.mxu0 0
        %2264 = vmatpush2.bf16.msra.mxu0 0
        %2265 = vmatprep.subr.bf16.mxu0 0
        %2266 = vmatpush2.bf16.msra.mxu0 0
        %2267 = vmatprep.subr.bf16.mxu0 0
        %2268 = vmatpush2.bf16.msra.mxu0 0
        %2269 = vmatprep.subr.bf16.mxu0 0
        %2270 = vmatpush2.bf16.msra.mxu0 0
        %2271 = vmatprep.mubr.bf16.mxu0 0
        %2272 = vmatmul.mubr.bf16.gmra.mxu0 %v2166
        %v2273 = vpop.f32.mrf.mxu0
        %v2274 = vadd.f32 %v2189, %v2273
        %v2275 = vpop.f32.mrf.mxu0
        %v2276 = vpop.f32.mrf.mxu0
        %v2277 = vadd.f32 %v2189, %v2276
        %v2278 = vpop.f32.mrf.mxu0
        %2279 = vmatprep.mubr.bf16.mxu0 0
        %2280 = vmatmul.mubr.bf16.gmra.mxu0 %v2167
        %v2281 = vpop.f32.mrf.mxu0
        %v2282 = vadd.f32 %v2189, %v2281
        %v2283 = vpop.f32.mrf.mxu0
        %v2284 = vpop.f32.mrf.mxu0
        %v2285 = vadd.f32 %v2189, %v2284
        %v2286 = vpop.f32.mrf.mxu0
        %2287 = vdwg.mxu0
        %v2288 = vadd.f32 %v2274, %v942
        %v2289 = vadd.f32 %v2277, %v946
        %v2290 = vadd.f32 %v2282, %v952
        %v2291 = vadd.f32 %v2285, %v956
        %v2292 = vpack.c.bf16 %v2289, %v2288
        %v2293 = vpack.c.bf16 %v2291, %v2290
        %v2294 = vld [vmem:[#allocation8] sm:$0xf]
        %v2295 = vld [vmem:[#allocation8 + $0x4] sm:$0xf]
        %v2296 = vld [vmem:[#allocation8 + $0x8] sm:$0xf]
        %v2297 = vld [vmem:[#allocation8 + $0xc] sm:$0xf]
        %v2298 = vld [vmem:[#allocation8 + $0x10] sm:$0xf]
        %v2299 = vld [vmem:[#allocation8 + $0x14] sm:$0xf]
        %v2300 = vld [vmem:[#allocation8 + $0x18] sm:$0xf]
        %v2301 = vld [vmem:[#allocation8 + $0x1c] sm:$0xf]
        %v2302 = vld [vmem:[#allocation8 + $0x20] sm:$0xf]
        %v2303 = vld [vmem:[#allocation8 + $0x24] sm:$0xf]
        %v2304 = vld [vmem:[#allocation8 + $0x28] sm:$0xf]
        %v2305 = vld [vmem:[#allocation8 + $0x2c] sm:$0xf]
        %v2306 = vld [vmem:[#allocation8 + $0x30] sm:$0xf]
        %v2307 = vld [vmem:[#allocation8 + $0x34] sm:$0xf]
        %v2308 = vld [vmem:[#allocation8 + $0x38] sm:$0xf]
        %v2309 = vld [vmem:[#allocation8 + $0x3c] sm:$0xf]
        %v2310 = vld [vmem:[%s10] sm:$0x1]
        %v2312 = vlaneseq
        %v2313 = vshrl.u32 %v2312, 7
        %v2314 = vsub.s32 0, %v2313
        %v2315 = vrot.slane %v2310, %v2314
        %v2333 = vunpack.c.l.b16 %v2294
        %v2334 = vunpack.c.l.b16 %v2295
        %v2335 = vunpack.c.l.b16 %v2296
        %v2336 = vunpack.c.l.b16 %v2297
        %v2337 = vunpack.c.l.b16 %v2298
        %v2338 = vunpack.c.l.b16 %v2299
        %v2339 = vunpack.c.l.b16 %v2300
        %v2340 = vunpack.c.l.b16 %v2301
        %v2341 = vunpack.c.l.b16 %v2302
        %v2342 = vunpack.c.l.b16 %v2303
        %v2343 = vunpack.c.l.b16 %v2304
        %v2344 = vunpack.c.l.b16 %v2305
        %v2345 = vunpack.c.l.b16 %v2306
        %v2346 = vunpack.c.l.b16 %v2307
        %v2347 = vunpack.c.l.b16 %v2308
        %v2348 = vunpack.c.l.b16 %v2309
        %v2349 = vpack.c.b16 %v2334, %v2333
        %v2350 = vpack.c.b16 %v2336, %v2335
        %v2351 = vpack.c.b16 %v2338, %v2337
        %v2352 = vpack.c.b16 %v2340, %v2339
        %v2353 = vpack.c.b16 %v2342, %v2341
        %v2354 = vpack.c.b16 %v2344, %v2343
        %v2355 = vpack.c.b16 %v2346, %v2345
        %v2356 = vpack.c.b16 %v2348, %v2347
        %2365 = vmatprep.subr.bf16.mxu0 0
        %2366 = vmatpush1.bf16.msra.mxu0 %v2356
        %2367 = vmatprep.subr.bf16.mxu0 0
        %2368 = vmatpush1.bf16.msra.mxu0 %v2355
        %2369 = vmatprep.subr.bf16.mxu0 0
        %2370 = vmatpush1.bf16.msra.mxu0 %v2354
        %2371 = vmatprep.subr.bf16.mxu0 0
        %2372 = vmatpush1.bf16.msra.mxu0 %v2353
        %2373 = vmatprep.subr.bf16.mxu0 0
        %2374 = vmatpush1.bf16.msra.mxu0 %v2352
        %2375 = vmatprep.subr.bf16.mxu0 0
        %2376 = vmatpush1.bf16.msra.mxu0 %v2351
        %2377 = vmatprep.subr.bf16.mxu0 0
        %2378 = vmatpush1.bf16.msra.mxu0 %v2350
        %2379 = vmatprep.subr.bf16.mxu0 0
        %2380 = vmatpush1.bf16.msra.mxu0 %v2349
        %2381 = vmatprep.subr.bf16.mxu0 0
        %2382 = vmatpush2.bf16.msra.mxu0 0
        %2383 = vmatprep.subr.bf16.mxu0 0
        %2384 = vmatpush2.bf16.msra.mxu0 0
        %2385 = vmatprep.subr.bf16.mxu0 0
        %2386 = vmatpush2.bf16.msra.mxu0 0
        %2387 = vmatprep.subr.bf16.mxu0 0
        %2388 = vmatpush2.bf16.msra.mxu0 0
        %2389 = vmatprep.subr.bf16.mxu0 0
        %2390 = vmatpush2.bf16.msra.mxu0 0
        %2391 = vmatprep.subr.bf16.mxu0 0
        %2392 = vmatpush2.bf16.msra.mxu0 0
        %2393 = vmatprep.subr.bf16.mxu0 0
        %2394 = vmatpush2.bf16.msra.mxu0 0
        %2395 = vmatprep.subr.bf16.mxu0 0
        %2396 = vmatpush2.bf16.msra.mxu0 0
        %2397 = vmatprep.mubr.bf16.mxu0 0
        %2398 = vmatmul.mubr.bf16.gmra.mxu0 %v2292
        %v2399 = vpop.f32.mrf.mxu0
        %v2400 = vadd.f32 %v2315, %v2399
        %v2401 = vpop.f32.mrf.mxu0
        %v2402 = vpop.f32.mrf.mxu0
        %v2403 = vadd.f32 %v2315, %v2402
        %v2404 = vpop.f32.mrf.mxu0
        %2405 = vmatprep.mubr.bf16.mxu0 0
        %2406 = vmatmul.mubr.bf16.gmra.mxu0 %v2293
        %v2407 = vpop.f32.mrf.mxu0
        %v2408 = vadd.f32 %v2315, %v2407
        %v2409 = vpop.f32.mrf.mxu0
        %v2410 = vpop.f32.mrf.mxu0
        %v2411 = vadd.f32 %v2315, %v2410
        %v2412 = vpop.f32.mrf.mxu0
        %2413 = vdwg.mxu0
        %v2414 = vadd.f32 %v2400, %v719
        %v2415 = vadd.f32 %v2403, %v720
        %v2416 = vadd.f32 %v2408, %v721
        %v2417 = vadd.f32 %v2411, %v722
        %2418 = vadd.xlane.f32.xlu0 %v2414
        %v2419 = vpop.xlane.xlu0 %2418
        %2420 = vadd.xlane.f32.xlu0 %v2415
        %v2421 = vpop.xlane.xlu0 %2420
        %2422 = vadd.xlane.f32.xlu0 %v2416
        %v2423 = vpop.xlane.xlu0 %2422
        %2424 = vadd.xlane.f32.xlu0 %v2417
        %v2425 = vpop.xlane.xlu0 %2424
        %v2426 = vrcp.pop 128.0
        %v2427 = vmul.f32 %v2419, %v2426
        %v2428 = vmul.f32 %v2421, %v2426
        %v2429 = vmul.f32 %v2423, %v2426
        %v2430 = vmul.f32 %v2425, %v2426
        %v2431 = vsub.f32 %v2414, %v2427
        %v2432 = vsub.f32 %v2415, %v2428
        %v2433 = vsub.f32 %v2416, %v2429
        %v2434 = vsub.f32 %v2417, %v2430
        %v2435 = vmul.f32 %v2431, %v2431
        %v2436 = vmul.f32 %v2432, %v2432
        %v2437 = vmul.f32 %v2433, %v2433
        %v2438 = vmul.f32 %v2434, %v2434
        %2439 = vadd.xlane.f32.xlu0 %v2435
        %v2440 = vpop.xlane.xlu0 %2439
        %2441 = vadd.xlane.f32.xlu0 %v2436
        %v2442 = vpop.xlane.xlu0 %2441
        %2443 = vadd.xlane.f32.xlu0 %v2437
        %v2444 = vpop.xlane.xlu0 %2443
        %2445 = vadd.xlane.f32.xlu0 %v2438
        %v2446 = vpop.xlane.xlu0 %2445
        %v2447 = vmul.f32 %v2440, %v2426
        %v2448 = vmul.f32 %v2442, %v2426
        %v2449 = vmul.f32 %v2444, %v2426
        %v2450 = vmul.f32 %v2446, %v2426
        %v2451 = vadd.f32 %v2447, 1e-12
        %v2452 = vadd.f32 %v2448, 1e-12
        %v2453 = vadd.f32 %v2449, 1e-12
        %v2454 = vadd.f32 %v2450, 1e-12
        %v2455 = vrsqrt.pop %v2451
        %v2456 = vrsqrt.pop %v2452
        %v2457 = vrsqrt.pop %v2453
        %v2458 = vrsqrt.pop %v2454
        %v2459 = vmul.f32 %v2431, %v2455
        %v2460 = vmul.f32 %v2432, %v2456
        %v2461 = vmul.f32 %v2433, %v2457
        %v2462 = vmul.f32 %v2434, %v2458
        %v2463 = vld [vmem:[%s11] sm:$0x1]
        %v2465 = vlaneseq
        %v2466 = vshrl.u32 %v2465, 7
        %v2467 = vsub.s32 0, %v2466
        %v2468 = vrot.slane %v2463, %v2467
        %v2470 = vmul.f32 %v2459, %v2468
        %v2471 = vmul.f32 %v2460, %v2468
        %v2472 = vmul.f32 %v2461, %v2468
        %v2473 = vmul.f32 %v2462, %v2468
        %v2474 = vld [vmem:[%s12] sm:$0x1]
        %v2476 = vlaneseq
        %v2477 = vshrl.u32 %v2476, 7
        %v2478 = vsub.s32 0, %v2477
        %v2479 = vrot.slane %v2474, %v2478
        %v2481 = vadd.f32 %v2470, %v2479
        %v2482 = vadd.f32 %v2471, %v2479
        %v2483 = vadd.f32 %v2472, %v2479
        %v2484 = vadd.f32 %v2473, %v2479
        %v2485 = vpack.c.bf16 %v2482, %v2481
        %v2486 = vpack.c.bf16 %v2484, %v2483
        %v2487 = vld [vmem:[#allocation10] sm:$0xff]
        %v2488 = vld [vmem:[#allocation10 + $0x8] sm:$0xff]
        %v2489 = vld [vmem:[#allocation10 + $0x10] sm:$0xff]
        %v2490 = vld [vmem:[#allocation10 + $0x18] sm:$0xff]
        %v2491 = vld [vmem:[#allocation10 + $0x20] sm:$0xff]
        %v2492 = vld [vmem:[#allocation10 + $0x28] sm:$0xff]
        %v2493 = vld [vmem:[#allocation10 + $0x30] sm:$0xff]
        %v2494 = vld [vmem:[#allocation10 + $0x38] sm:$0xff]
        %v2495 = vld [vmem:[#allocation10 + $0x40] sm:$0xff]
        %v2496 = vld [vmem:[#allocation10 + $0x48] sm:$0xff]
        %v2497 = vld [vmem:[#allocation10 + $0x50] sm:$0xff]
        %v2498 = vld [vmem:[#allocation10 + $0x58] sm:$0xff]
        %v2499 = vld [vmem:[#allocation10 + $0x60] sm:$0xff]
        %v2500 = vld [vmem:[#allocation10 + $0x68] sm:$0xff]
        %v2501 = vld [vmem:[#allocation10 + $0x70] sm:$0xff]
        %v2502 = vld [vmem:[#allocation10 + $0x78] sm:$0xff]
        %v2503 = vld [vmem:[%s14] sm:$0x3]
        %v2505 = vlaneseq
        %v2506 = vshrl.u32 %v2505, 7
        %v2507 = vsub.s32 0, %v2506
        %v2508 = vrot.slane %v2503, %v2507
        %v2509 = vlaneseq
        %v2510 = vshrl.u32 %v2509, 7
        %v2511 = vsub.s32 1, %v2510
        %v2512 = vrot.slane %v2503, %v2511
        %v2531 = vunpack.c.l.b16 %v2487
        %v2532 = vunpack.c.h.b16 %v2487
        %v2533 = vunpack.c.l.b16 %v2488
        %v2534 = vunpack.c.h.b16 %v2488
        %v2535 = vunpack.c.l.b16 %v2489
        %v2536 = vunpack.c.h.b16 %v2489
        %v2537 = vunpack.c.l.b16 %v2490
        %v2538 = vunpack.c.h.b16 %v2490
        %v2539 = vunpack.c.l.b16 %v2491
        %v2540 = vunpack.c.h.b16 %v2491
        %v2541 = vunpack.c.l.b16 %v2492
        %v2542 = vunpack.c.h.b16 %v2492
        %v2543 = vunpack.c.l.b16 %v2493
        %v2544 = vunpack.c.h.b16 %v2493
        %v2545 = vunpack.c.l.b16 %v2494
        %v2546 = vunpack.c.h.b16 %v2494
        %v2547 = vunpack.c.l.b16 %v2495
        %v2548 = vunpack.c.h.b16 %v2495
        %v2549 = vunpack.c.l.b16 %v2496
        %v2550 = vunpack.c.h.b16 %v2496
        %v2551 = vunpack.c.l.b16 %v2497
        %v2552 = vunpack.c.h.b16 %v2497
        %v2553 = vunpack.c.l.b16 %v2498
        %v2554 = vunpack.c.h.b16 %v2498
        %v2555 = vunpack.c.l.b16 %v2499
        %v2556 = vunpack.c.h.b16 %v2499
        %v2557 = vunpack.c.l.b16 %v2500
        %v2558 = vunpack.c.h.b16 %v2500
        %v2559 = vunpack.c.l.b16 %v2501
        %v2560 = vunpack.c.h.b16 %v2501
        %v2561 = vunpack.c.l.b16 %v2502
        %v2562 = vunpack.c.h.b16 %v2502
        %v2563 = vpack.c.b16 %v2533, %v2531
        %v2564 = vpack.c.b16 %v2534, %v2532
        %v2565 = vpack.c.b16 %v2537, %v2535
        %v2566 = vpack.c.b16 %v2538, %v2536
        %v2567 = vpack.c.b16 %v2541, %v2539
        %v2568 = vpack.c.b16 %v2542, %v2540
        %v2569 = vpack.c.b16 %v2545, %v2543
        %v2570 = vpack.c.b16 %v2546, %v2544
        %v2571 = vpack.c.b16 %v2549, %v2547
        %v2572 = vpack.c.b16 %v2550, %v2548
        %v2573 = vpack.c.b16 %v2553, %v2551
        %v2574 = vpack.c.b16 %v2554, %v2552
        %v2575 = vpack.c.b16 %v2557, %v2555
        %v2576 = vpack.c.b16 %v2558, %v2556
        %v2577 = vpack.c.b16 %v2561, %v2559
        %v2578 = vpack.c.b16 %v2562, %v2560
        %2595 = vmatprep.subr.bf16.mxu0 %v2578
        %2596 = vmatpush1.bf16.msra.mxu0 %v2577
        %2597 = vmatprep.subr.bf16.mxu0 %v2576
        %2598 = vmatpush1.bf16.msra.mxu0 %v2575
        %2599 = vmatprep.subr.bf16.mxu0 %v2574
        %2600 = vmatpush1.bf16.msra.mxu0 %v2573
        %2601 = vmatprep.subr.bf16.mxu0 %v2572
        %2602 = vmatpush1.bf16.msra.mxu0 %v2571
        %2603 = vmatprep.subr.bf16.mxu0 %v2570
        %2604 = vmatpush1.bf16.msra.mxu0 %v2569
        %2605 = vmatprep.subr.bf16.mxu0 %v2568
        %2606 = vmatpush1.bf16.msra.mxu0 %v2567
        %2607 = vmatprep.subr.bf16.mxu0 %v2566
        %2608 = vmatpush1.bf16.msra.mxu0 %v2565
        %2609 = vmatprep.subr.bf16.mxu0 %v2564
        %2610 = vmatpush1.bf16.msra.mxu0 %v2563
        %2611 = vmatprep.subr.bf16.mxu0 0
        %2612 = vmatpush2.bf16.msra.mxu0 0
        %2613 = vmatprep.subr.bf16.mxu0 0
        %2614 = vmatpush2.bf16.msra.mxu0 0
        %2615 = vmatprep.subr.bf16.mxu0 0
        %2616 = vmatpush2.bf16.msra.mxu0 0
        %2617 = vmatprep.subr.bf16.mxu0 0
        %2618 = vmatpush2.bf16.msra.mxu0 0
        %2619 = vmatprep.subr.bf16.mxu0 0
        %2620 = vmatpush2.bf16.msra.mxu0 0
        %2621 = vmatprep.subr.bf16.mxu0 0
        %2622 = vmatpush2.bf16.msra.mxu0 0
        %2623 = vmatprep.subr.bf16.mxu0 0
        %2624 = vmatpush2.bf16.msra.mxu0 0
        %2625 = vmatprep.subr.bf16.mxu0 0
        %2626 = vmatpush2.bf16.msra.mxu0 0
        %2627 = vmatprep.mubr.bf16.mxu0 0
        %2628 = vmatmul.mubr.bf16.gmra.mxu0 %v2485
        %v2629 = vpop.f32.mrf.mxu0
        %v2630 = vadd.f32 %v2508, %v2629
        %v2631 = vpop.f32.mrf.mxu0
        %v2632 = vadd.f32 %v2512, %v2631
        %v2633 = vpop.f32.mrf.mxu0
        %v2634 = vadd.f32 %v2508, %v2633
        %v2635 = vpop.f32.mrf.mxu0
        %v2636 = vadd.f32 %v2512, %v2635
        %2637 = vmatprep.mubr.bf16.mxu0 0
        %2638 = vmatmul.mubr.bf16.gmra.mxu0 %v2486
        %v2639 = vpop.f32.mrf.mxu0
        %v2640 = vadd.f32 %v2508, %v2639
        %v2641 = vpop.f32.mrf.mxu0
        %v2642 = vadd.f32 %v2512, %v2641
        %v2643 = vpop.f32.mrf.mxu0
        %v2644 = vadd.f32 %v2508, %v2643
        %v2645 = vpop.f32.mrf.mxu0
        %v2646 = vadd.f32 %v2512, %v2645
        %2647 = vdwg.mxu0
        %v2648 = vmul.f32 %v2630, 0.5
        %v2649 = vmul.f32 %v2632, 0.5
        %v2650 = vmul.f32 %v2634, 0.5
        %v2651 = vmul.f32 %v2636, 0.5
        %v2652 = vmul.f32 %v2640, 0.5
        %v2653 = vmul.f32 %v2642, 0.5
        %v2654 = vmul.f32 %v2644, 0.5
        %v2655 = vmul.f32 %v2646, 0.5
        %v2656 = vmul.f32 %v2630, 0.044715
        %v2657 = vmul.f32 %v2632, 0.044715
        %v2658 = vmul.f32 %v2634, 0.044715
        %v2659 = vmul.f32 %v2636, 0.044715
        %v2660 = vmul.f32 %v2640, 0.044715
        %v2661 = vmul.f32 %v2642, 0.044715
        %v2662 = vmul.f32 %v2644, 0.044715
        %v2663 = vmul.f32 %v2646, 0.044715
        %v2664 = vmul.f32 %v2656, %v2630
        %v2665 = vmul.f32 %v2657, %v2632
        %v2666 = vmul.f32 %v2658, %v2634
        %v2667 = vmul.f32 %v2659, %v2636
        %v2668 = vmul.f32 %v2660, %v2640
        %v2669 = vmul.f32 %v2661, %v2642
        %v2670 = vmul.f32 %v2662, %v2644
        %v2671 = vmul.f32 %v2663, %v2646
        %v2672 = vmul.f32 %v2664, %v2630
        %v2673 = vmul.f32 %v2665, %v2632
        %v2674 = vmul.f32 %v2666, %v2634
        %v2675 = vmul.f32 %v2667, %v2636
        %v2676 = vmul.f32 %v2668, %v2640
        %v2677 = vmul.f32 %v2669, %v2642
        %v2678 = vmul.f32 %v2670, %v2644
        %v2679 = vmul.f32 %v2671, %v2646
        %v2680 = vadd.f32 %v2630, %v2672
        %v2681 = vadd.f32 %v2632, %v2673
        %v2682 = vadd.f32 %v2634, %v2674
        %v2683 = vadd.f32 %v2636, %v2675
        %v2684 = vadd.f32 %v2640, %v2676
        %v2685 = vadd.f32 %v2642, %v2677
        %v2686 = vadd.f32 %v2644, %v2678
        %v2687 = vadd.f32 %v2646, %v2679
        %v2688 = vmul.f32 %v2680, 0.7978846
        %v2689 = vmul.f32 %v2681, 0.7978846
        %v2690 = vmul.f32 %v2682, 0.7978846
        %v2691 = vmul.f32 %v2683, 0.7978846
        %v2692 = vmul.f32 %v2684, 0.7978846
        %v2693 = vmul.f32 %v2685, 0.7978846
        %v2694 = vmul.f32 %v2686, 0.7978846
        %v2695 = vmul.f32 %v2687, 0.7978846
        %v2696 = vtanh.pop %v2688
        %v2697 = vtanh.pop %v2689
        %v2698 = vtanh.pop %v2690
        %v2699 = vtanh.pop %v2691
        %v2700 = vtanh.pop %v2692
        %v2701 = vtanh.pop %v2693
        %v2702 = vtanh.pop %v2694
        %v2703 = vtanh.pop %v2695
        %v2704 = vadd.f32 %v2696, 1.0
        %v2705 = vadd.f32 %v2697, 1.0
        %v2706 = vadd.f32 %v2698, 1.0
        %v2707 = vadd.f32 %v2699, 1.0
        %v2708 = vadd.f32 %v2700, 1.0
        %v2709 = vadd.f32 %v2701, 1.0
        %v2710 = vadd.f32 %v2702, 1.0
        %v2711 = vadd.f32 %v2703, 1.0
        %v2712 = vmul.f32 %v2648, %v2704
        %v2713 = vmul.f32 %v2649, %v2705
        %v2714 = vmul.f32 %v2650, %v2706
        %v2715 = vmul.f32 %v2651, %v2707
        %v2716 = vmul.f32 %v2652, %v2708
        %v2717 = vmul.f32 %v2653, %v2709
        %v2718 = vmul.f32 %v2654, %v2710
        %v2719 = vmul.f32 %v2655, %v2711
        %v2720 = vpack.c.bf16 %v2714, %v2712
        %v2721 = vpack.c.bf16 %v2715, %v2713
        %v2722 = vpack.c.bf16 %v2718, %v2716
        %v2723 = vpack.c.bf16 %v2719, %v2717
        %v2724 = vld [vmem:[#allocation11] sm:$0xf]
        %v2725 = vld [vmem:[#allocation11 + $0x4] sm:$0xf]
        %v2726 = vld [vmem:[#allocation11 + $0x8] sm:$0xf]
        %v2727 = vld [vmem:[#allocation11 + $0xc] sm:$0xf]
        %v2728 = vld [vmem:[#allocation11 + $0x10] sm:$0xf]
        %v2729 = vld [vmem:[#allocation11 + $0x14] sm:$0xf]
        %v2730 = vld [vmem:[#allocation11 + $0x18] sm:$0xf]
        %v2731 = vld [vmem:[#allocation11 + $0x1c] sm:$0xf]
        %v2732 = vld [vmem:[#allocation11 + $0x20] sm:$0xf]
        %v2733 = vld [vmem:[#allocation11 + $0x24] sm:$0xf]
        %v2734 = vld [vmem:[#allocation11 + $0x28] sm:$0xf]
        %v2735 = vld [vmem:[#allocation11 + $0x2c] sm:$0xf]
        %v2736 = vld [vmem:[#allocation11 + $0x30] sm:$0xf]
        %v2737 = vld [vmem:[#allocation11 + $0x34] sm:$0xf]
        %v2738 = vld [vmem:[#allocation11 + $0x38] sm:$0xf]
        %v2739 = vld [vmem:[#allocation11 + $0x3c] sm:$0xf]
        %v2740 = vld [vmem:[#allocation11 + $0x40] sm:$0xf]
        %v2741 = vld [vmem:[#allocation11 + $0x44] sm:$0xf]
        %v2742 = vld [vmem:[#allocation11 + $0x48] sm:$0xf]
        %v2743 = vld [vmem:[#allocation11 + $0x4c] sm:$0xf]
        %v2744 = vld [vmem:[#allocation11 + $0x50] sm:$0xf]
        %v2745 = vld [vmem:[#allocation11 + $0x54] sm:$0xf]
        %v2746 = vld [vmem:[#allocation11 + $0x58] sm:$0xf]
        %v2747 = vld [vmem:[#allocation11 + $0x5c] sm:$0xf]
        %v2748 = vld [vmem:[#allocation11 + $0x60] sm:$0xf]
        %v2749 = vld [vmem:[#allocation11 + $0x64] sm:$0xf]
        %v2750 = vld [vmem:[#allocation11 + $0x68] sm:$0xf]
        %v2751 = vld [vmem:[#allocation11 + $0x6c] sm:$0xf]
        %v2752 = vld [vmem:[#allocation11 + $0x70] sm:$0xf]
        %v2753 = vld [vmem:[#allocation11 + $0x74] sm:$0xf]
        %v2754 = vld [vmem:[#allocation11 + $0x78] sm:$0xf]
        %v2755 = vld [vmem:[#allocation11 + $0x7c] sm:$0xf]
        %v2756 = vld [vmem:[%s16] sm:$0x1]
        %v2758 = vlaneseq
        %v2759 = vshrl.u32 %v2758, 7
        %v2760 = vsub.s32 0, %v2759
        %v2761 = vrot.slane %v2756, %v2760
        %v2795 = vunpack.c.l.b16 %v2724
        %v2796 = vunpack.c.l.b16 %v2725
        %v2797 = vunpack.c.l.b16 %v2726
        %v2798 = vunpack.c.l.b16 %v2727
        %v2799 = vunpack.c.l.b16 %v2728
        %v2800 = vunpack.c.l.b16 %v2729
        %v2801 = vunpack.c.l.b16 %v2730
        %v2802 = vunpack.c.l.b16 %v2731
        %v2803 = vunpack.c.l.b16 %v2732
        %v2804 = vunpack.c.l.b16 %v2733
        %v2805 = vunpack.c.l.b16 %v2734
        %v2806 = vunpack.c.l.b16 %v2735
        %v2807 = vunpack.c.l.b16 %v2736
        %v2808 = vunpack.c.l.b16 %v2737
        %v2809 = vunpack.c.l.b16 %v2738
        %v2810 = vunpack.c.l.b16 %v2739
        %v2811 = vunpack.c.l.b16 %v2740
        %v2812 = vunpack.c.l.b16 %v2741
        %v2813 = vunpack.c.l.b16 %v2742
        %v2814 = vunpack.c.l.b16 %v2743
        %v2815 = vunpack.c.l.b16 %v2744
        %v2816 = vunpack.c.l.b16 %v2745
        %v2817 = vunpack.c.l.b16 %v2746
        %v2818 = vunpack.c.l.b16 %v2747
        %v2819 = vunpack.c.l.b16 %v2748
        %v2820 = vunpack.c.l.b16 %v2749
        %v2821 = vunpack.c.l.b16 %v2750
        %v2822 = vunpack.c.l.b16 %v2751
        %v2823 = vunpack.c.l.b16 %v2752
        %v2824 = vunpack.c.l.b16 %v2753
        %v2825 = vunpack.c.l.b16 %v2754
        %v2826 = vunpack.c.l.b16 %v2755
        %v2827 = vpack.c.b16 %v2796, %v2795
        %v2828 = vpack.c.b16 %v2798, %v2797
        %v2829 = vpack.c.b16 %v2800, %v2799
        %v2830 = vpack.c.b16 %v2802, %v2801
        %v2831 = vpack.c.b16 %v2804, %v2803
        %v2832 = vpack.c.b16 %v2806, %v2805
        %v2833 = vpack.c.b16 %v2808, %v2807
        %v2834 = vpack.c.b16 %v2810, %v2809
        %v2835 = vpack.c.b16 %v2812, %v2811
        %v2836 = vpack.c.b16 %v2814, %v2813
        %v2837 = vpack.c.b16 %v2816, %v2815
        %v2838 = vpack.c.b16 %v2818, %v2817
        %v2839 = vpack.c.b16 %v2820, %v2819
        %v2840 = vpack.c.b16 %v2822, %v2821
        %v2841 = vpack.c.b16 %v2824, %v2823
        %v2842 = vpack.c.b16 %v2826, %v2825
        %2859 = vmatprep.subr.bf16.mxu0 0
        %2860 = vmatpush1.bf16.msra.mxu0 %v2834
        %2861 = vmatprep.subr.bf16.mxu0 0
        %2862 = vmatpush1.bf16.msra.mxu0 %v2833
        %2863 = vmatprep.subr.bf16.mxu0 0
        %2864 = vmatpush1.bf16.msra.mxu0 %v2832
        %2865 = vmatprep.subr.bf16.mxu0 0
        %2866 = vmatpush1.bf16.msra.mxu0 %v2831
        %2867 = vmatprep.subr.bf16.mxu0 0
        %2868 = vmatpush1.bf16.msra.mxu0 %v2830
        %2869 = vmatprep.subr.bf16.mxu0 0
        %2870 = vmatpush1.bf16.msra.mxu0 %v2829
        %2871 = vmatprep.subr.bf16.mxu0 0
        %2872 = vmatpush1.bf16.msra.mxu0 %v2828
        %2873 = vmatprep.subr.bf16.mxu0 0
        %2874 = vmatpush1.bf16.msra.mxu0 %v2827
        %2875 = vmatprep.subr.bf16.mxu0 0
        %2876 = vmatpush2.bf16.msra.mxu0 %v2842
        %2877 = vmatprep.subr.bf16.mxu0 0
        %2878 = vmatpush2.bf16.msra.mxu0 %v2841
        %2879 = vmatprep.subr.bf16.mxu0 0
        %2880 = vmatpush2.bf16.msra.mxu0 %v2840
        %2881 = vmatprep.subr.bf16.mxu0 0
        %2882 = vmatpush2.bf16.msra.mxu0 %v2839
        %2883 = vmatprep.subr.bf16.mxu0 0
        %2884 = vmatpush2.bf16.msra.mxu0 %v2838
        %2885 = vmatprep.subr.bf16.mxu0 0
        %2886 = vmatpush2.bf16.msra.mxu0 %v2837
        %2887 = vmatprep.subr.bf16.mxu0 0
        %2888 = vmatpush2.bf16.msra.mxu0 %v2836
        %2889 = vmatprep.subr.bf16.mxu0 0
        %2890 = vmatpush2.bf16.msra.mxu0 %v2835
        %2891 = vmatprep.mubr.bf16.mxu0 %v2721
        %2892 = vmatmul.mubr.bf16.gmra.mxu0 %v2720
        %v2893 = vpop.f32.mrf.mxu0
        %v2894 = vadd.f32 %v2761, %v2893
        %v2895 = vpop.f32.mrf.mxu0
        %v2896 = vpop.f32.mrf.mxu0
        %v2897 = vadd.f32 %v2761, %v2896
        %v2898 = vpop.f32.mrf.mxu0
        %2899 = vmatprep.mubr.bf16.mxu0 %v2723
        %2900 = vmatmul.mubr.bf16.gmra.mxu0 %v2722
        %v2901 = vpop.f32.mrf.mxu0
        %v2902 = vadd.f32 %v2761, %v2901
        %v2903 = vpop.f32.mrf.mxu0
        %v2904 = vpop.f32.mrf.mxu0
        %v2905 = vadd.f32 %v2761, %v2904
        %v2906 = vpop.f32.mrf.mxu0
        %2907 = vdwg.mxu0
        %v2908 = vadd.f32 %v2894, %v2481
        %v2909 = vadd.f32 %v2897, %v2482
        %v2910 = vadd.f32 %v2902, %v2483
        %v2911 = vadd.f32 %v2905, %v2484
        %2912 = vadd.xlane.f32.xlu0 %v2908
        %v2913 = vpop.xlane.xlu0 %2912
        %2914 = vadd.xlane.f32.xlu0 %v2909
        %v2915 = vpop.xlane.xlu0 %2914
        %2916 = vadd.xlane.f32.xlu0 %v2910
        %v2917 = vpop.xlane.xlu0 %2916
        %2918 = vadd.xlane.f32.xlu0 %v2911
        %v2919 = vpop.xlane.xlu0 %2918
        %v2920 = vmul.f32 %v2913, %v2426
        %v2921 = vmul.f32 %v2915, %v2426
        %v2922 = vmul.f32 %v2917, %v2426
        %v2923 = vmul.f32 %v2919, %v2426
        %v2924 = vsub.f32 %v2908, %v2920
        %v2925 = vsub.f32 %v2909, %v2921
        %v2926 = vsub.f32 %v2910, %v2922
        %v2927 = vsub.f32 %v2911, %v2923
        %v2928 = vmul.f32 %v2924, %v2924
        %v2929 = vmul.f32 %v2925, %v2925
        %v2930 = vmul.f32 %v2926, %v2926
        %v2931 = vmul.f32 %v2927, %v2927
        %2932 = vadd.xlane.f32.xlu0 %v2928
        %v2933 = vpop.xlane.xlu0 %2932
        %2934 = vadd.xlane.f32.xlu0 %v2929
        %v2935 = vpop.xlane.xlu0 %2934
        %2936 = vadd.xlane.f32.xlu0 %v2930
        %v2937 = vpop.xlane.xlu0 %2936
        %2938 = vadd.xlane.f32.xlu0 %v2931
        %v2939 = vpop.xlane.xlu0 %2938
        %v2940 = vmul.f32 %v2933, %v2426
        %v2941 = vmul.f32 %v2935, %v2426
        %v2942 = vmul.f32 %v2937, %v2426
        %v2943 = vmul.f32 %v2939, %v2426
        %v2944 = vadd.f32 %v2940, 1e-12
        %v2945 = vadd.f32 %v2941, 1e-12
        %v2946 = vadd.f32 %v2942, 1e-12
        %v2947 = vadd.f32 %v2943, 1e-12
        %v2948 = vrsqrt.pop %v2944
        %v2949 = vrsqrt.pop %v2945
        %v2950 = vrsqrt.pop %v2946
        %v2951 = vrsqrt.pop %v2947
        %v2952 = vmul.f32 %v2924, %v2948
        %v2953 = vmul.f32 %v2925, %v2949
        %v2954 = vmul.f32 %v2926, %v2950
        %v2955 = vmul.f32 %v2927, %v2951
        %v2956 = vld [vmem:[%s17] sm:$0x1]
        %v2958 = vlaneseq
        %v2959 = vshrl.u32 %v2958, 7
        %v2960 = vsub.s32 0, %v2959
        %v2961 = vrot.slane %v2956, %v2960
        %v2963 = vmul.f32 %v2952, %v2961
        %v2964 = vmul.f32 %v2953, %v2961
        %v2965 = vmul.f32 %v2954, %v2961
        %v2966 = vmul.f32 %v2955, %v2961
        %v2967 = vld [vmem:[%s18] sm:$0x1]
        %v2969 = vlaneseq
        %v2970 = vshrl.u32 %v2969, 7
        %v2971 = vsub.s32 0, %v2970
        %v2972 = vrot.slane %v2967, %v2971
        %v2974 = vadd.f32 %v2963, %v2972
        %v2975 = vadd.f32 %v2964, %v2972
        %v2976 = vadd.f32 %v2965, %v2972
        %v2977 = vadd.f32 %v2966, %v2972
        %2978 = vst [vmem:[%s709] sm:$0xff] %v2974
        %2979 = vst [vmem:[%s709 + $0x8] sm:$0xff] %v2975
        %2980 = vst [vmem:[%s709 + $0x10] sm:$0xff] %v2976
        %2981 = vst [vmem:[%s709 + $0x18] sm:$0xff] %v2977
        %s2982 = sand.u32 %s456, 1
        %s2983 = scalar_lea.sflag [#allocation4], %s2982
        %s2984 = sand.u32 %s456, 1
        %s2985 = smul.addr %s2984, 32
        %s2986 = scalar_lea.vmem [#allocation13], %s2985
        // Predicated region
        $region121: #{tpu_custom_call.1} parent=95 // pred_check
          %p2987 = pneg %p466
        $region122: #{tpu_custom_call.1} parent=95 // pred_check_branch
          %2989 = sbr.rel (%p2987) target = $region124
        $region123: #{tpu_custom_call.1} parent=95 // pred_region
          %s2990 = smul.u32 4, %s39
          %s2992 = ssub.s32 512, 512
          %2993 = vsyncadd %s2983, %s2992
          %s2994 = smul.addr %s2990, 128
          %s2995 = scalar_lea.hbm %s19, %s2994
          %s2996 = sshll.u32 %s2986, 4
          %s2997 = int_to_ptr.vmem [resolvable:$true] %s2996
          %3002 = dma.vmem_to_hbm [thread:$0]  %s2997, 512, %s2995, %s2983, 128, 128, 8
        $region124: #{tpu_custom_call.1} parent=95 // pred_fallthru
          _
      $region96: #{tpu_custom_call.1} parent=5 // pred_fallthru
        _
      %p3003 = scmp.le.s32.totalorder 2, %s34
      // Predicated region
      $region125: #{tpu_custom_call.1} parent=5 // pred_check
        %p3004 = pneg %p3003
      $region126: #{tpu_custom_call.1} parent=5 // pred_check_branch
        %3006 = sbr.rel (%p3004) target = $region128
      $region127: #{tpu_custom_call.1} parent=5 // pred_region
        %s3007 = ssub.s32 %s34, 2
        // Predicated region
        $region129: #{tpu_custom_call.1} parent=127 // pred_check
          %p3008 = pneg %p472
        $region130: #{tpu_custom_call.1} parent=127 // pred_check_branch
          %3010 = sbr.rel (%p3008) target = $region132
        $region131: #{tpu_custom_call.1} parent=127 // pred_region
          %s3011 = sand.u32 %s457, 1
          %s3012 = scalar_lea.sflag [#allocation4], %s3011
          %s3013 = sand.u32 %s457, 1
          %s3014 = smul.addr %s3013, 32
          %s3015 = scalar_lea.vmem [#allocation13], %s3014
          %3016 = dma.done %s3012, 512
        $region132: #{tpu_custom_call.1} parent=127 // pred_fallthru
          _
      $region128: #{tpu_custom_call.1} parent=5 // pred_fallthru
        _
    $region6: #{tpu_custom_call.1} parent=1 // loop_footer
      %s38 = sadd.s32 1, %s34
    $region7: #{tpu_custom_call.1} parent=1 // loop_footer_branch
      %33 = sbr.rel target = $region3
    $region8: #{tpu_custom_call.1} parent=1 // loop_exit
      _
    %3017 = vsyncpa [#allocation3], 1
    %s3018 = scalar_lea.sflag [#allocation3], 1
    %3019 = vsyncpa %s3018, 1
    %3020 = vsyncpa [#allocation6], 1
    %3021 = vsyncpa [#allocation9], 1
    %3022 = vsyncpa [#allocation12], 1
    %3023 = vsyncpa [#allocation4], 1
    %s3024 = scalar_lea.sflag [#allocation4], 1
    %3025 = vsyncpa %s3024, 1

</llo_original>
